<compile_context>
chip_gen: v7x
topology: tpu7x:2x2x1
jax: 0.10.0
libtpu: 0.0.40
codegen_flags: <defaults>
</compile_context>

<pallas_src>
import functools

import jax
import jax.numpy as jnp
from jax.experimental import pallas as pl
from jax.experimental.pallas import tpu as pltpu

LANE = 128


def _round_up(x, m):
    return (x + m - 1) // m * m


def _basic_block_kernel(x_ref, w1_ref, b1_ref, w2_ref, b2_ref, o_ref,
                        xpad_ref, hpad_ref):
    """Fused conv1+bn1+relu -> conv2+bn2+relu for one batch element.

    x_ref:    (1, H, W, C1)   bf16 channel-padded input (NHWC)
    w1_ref:   (9*C1, C2)      bf16, BN1 scale folded in, rows ordered (dy,dx,cin)
    b1_ref:   (1, C2)         f32 folded BN1 bias
    w2_ref:   (9*C2, C2)      bf16, BN2 scale folded in
    b2_ref:   (1, C2)         f32 folded BN2 bias
    o_ref:    (1, H, W, C2)   f32 output
    xpad_ref: (H+2, W+2, C1)  bf16 VMEM scratch (zero spatial halo)
    hpad_ref: (H+2, W+2, C2)  bf16 VMEM scratch (zero spatial halo)
    """
    H, W = o_ref.shape[1], o_ref.shape[2]

    def conv3x3_bias_relu(src_ref, w_ref, b_ref):
        xp = src_ref[...]                           # (H+2, W+2, C)
        c = xp.shape[-1]
        # im2col: 9 shifted views concatenated along K -> ONE MXU matmul.
        cols = [xp[dy:dy + H, dx:dx + W, :]
                for dy in range(3) for dx in range(3)]
        patch = jnp.concatenate(cols, axis=-1).reshape(H * W, 9 * c)
        acc = jnp.dot(patch, w_ref[...], preferred_element_type=jnp.float32)
        return jnp.maximum(acc + b_ref[...], 0.0)   # (H*W, Cout) f32

    # ---- stage 1: zero halo built in VMEM (no HBM pad copy) ----
    xpad_ref[...] = jnp.zeros_like(xpad_ref)
    xpad_ref[pl.ds(1, H), pl.ds(1, W), :] = x_ref[0]
    y1 = conv3x3_bias_relu(xpad_ref, w1_ref, b1_ref)

    # ---- stage 2: intermediate activation stays in VMEM (bf16) ----
    c2 = hpad_ref.shape[-1]
    hpad_ref[...] = jnp.zeros_like(hpad_ref)
    hpad_ref[pl.ds(1, H), pl.ds(1, W), :] = (
        y1.reshape(H, W, c2).astype(hpad_ref.dtype))
    y2 = conv3x3_bias_relu(hpad_ref, w2_ref, b2_ref)

    o_ref[0] = y2.reshape(H, W, c2).astype(o_ref.dtype)


def basic_block_forward(params, x_nchw, *, planes):
    """Public entry point. Input/output are NCHW like the PyTorch module."""
    N, cin, H, W = x_nchw.shape
    w1, b1, w2, b2 = params["w1"], params["b1"], params["w2"], params["b2"]
    c1 = w1.shape[0] // 9     # lane-padded Cin
    c2 = w1.shape[1]          # lane-padded planes

    # NCHW -> NHWC, bf16 cast, channel pad to lane-dense width (fused in XLA).
    x = jnp.transpose(x_nchw, (0, 2, 3, 1)).astype(jnp.bfloat16)
    x = jnp.pad(x, ((0, 0), (0, 0), (0, 0), (0, c1 - cin)))

    out = pl.pallas_call(
        _basic_block_kernel,
        out_shape=jax.ShapeDtypeStruct((N, H, W, c2), jnp.float32),
        grid=(N,),
        in_specs=[
            pl.BlockSpec((1, H, W, c1), lambda n: (n, 0, 0, 0)),
            pl.BlockSpec((9 * c1, c2), lambda n: (0, 0)),
            pl.BlockSpec((1, c2), lambda n: (0, 0)),
            pl.BlockSpec((9 * c2, c2), lambda n: (0, 0)),
            pl.BlockSpec((1, c2), lambda n: (0, 0)),
        ],
        out_specs=pl.BlockSpec((1, H, W, c2), lambda n: (n, 0, 0, 0)),
        scratch_shapes=[
            pltpu.VMEM((H + 2, W + 2, c1), jnp.bfloat16),
            pltpu.VMEM((H + 2, W + 2, c2), jnp.bfloat16),
        ],
        compiler_params=pltpu.CompilerParams(
            dimension_semantics=("parallel",)),
    )(x, w1, b1, w2, b2)

    out = out[..., :planes]                     # drop lane padding
    return jnp.transpose(out, (0, 3, 1, 2))     # NHWC -> NCHW


def _fold_bn(gamma, beta, running_mean, running_var, eps=1e-5):
    scale = gamma / jnp.sqrt(running_var + eps)
    bias = beta - running_mean * scale
    return scale, bias


def _pack_conv_weight(w_hwio, scale, cin_pad, cout_pad):
    """(3,3,Cin,Cout) f32 -> (9*cin_pad, cout_pad) bf16 with BN scale folded."""
    kh, kw, cin, cout = w_hwio.shape
    wf = w_hwio * scale[None, None, None, :]
    wf = jnp.pad(wf, ((0, 0), (0, 0), (0, cin_pad - cin), (0, cout_pad - cout)))
    return wf.reshape(kh * kw * cin_pad, cout_pad).astype(jnp.bfloat16)


def init_basic_block_params(key, in_planes, planes):
    """Mirrors the module __init__: kaiming_normal convs, default BatchNorm."""
    k1, k2 = jax.random.split(key)
    # kaiming_normal (fan_in, relu gain): std = sqrt(2 / fan_in)
    w1_oihw = jax.random.normal(k1, (planes, in_planes, 3, 3), jnp.float32) \
        * jnp.sqrt(2.0 / (in_planes * 9))
    w2_oihw = jax.random.normal(k2, (planes, planes, 3, 3), jnp.float32) \
        * jnp.sqrt(2.0 / (planes * 9))
    w1 = jnp.transpose(w1_oihw, (2, 3, 1, 0))   # -> (kh, kw, Cin, Cout)
    w2 = jnp.transpose(w2_oihw, (2, 3, 1, 0))

    # BatchNorm2d defaults: gamma=1, beta=0, running_mean=0, running_var=1
    gamma = jnp.ones((planes,), jnp.float32)
    beta = jnp.zeros((planes,), jnp.float32)
    rmean = jnp.zeros((planes,), jnp.float32)
    rvar = jnp.ones((planes,), jnp.float32)
    scale1, bias1 = _fold_bn(gamma, beta, rmean, rvar)
    scale2, bias2 = _fold_bn(gamma, beta, rmean, rvar)

    c1 = max(_round_up(in_planes, LANE), LANE)
    c2 = max(_round_up(planes, LANE), LANE)

    kernel_params = dict(
        w1=_pack_conv_weight(w1, scale1, c1, c2),
        b1=jnp.pad(bias1, (0, c2 - planes)).reshape(1, c2).astype(jnp.float32),
        w2=_pack_conv_weight(w2, scale2, c2, c2),
        b2=jnp.pad(bias2, (0, c2 - planes)).reshape(1, c2).astype(jnp.float32),
    )
    ref_params = dict(w1=w1, scale1=scale1, bias1=bias1,
                      w2=w2, scale2=scale2, bias2=bias2)
    return kernel_params, ref_params


def _reference_forward(ref_params, x_nchw):
    """Pure-JAX f32 reference of the module's forward pass."""
    def conv(x, w):
        return jax.lax.conv_general_dilated(
            x, w, window_strides=(1, 1), padding=((1, 1), (1, 1)),
            dimension_numbers=("NCHW", "HWIO", "NCHW"))

    def bn_relu(y, scale, bias):
        return jnp.maximum(
            y * scale[None, :, None, None] + bias[None, :, None, None], 0.0)

    y = bn_relu(conv(x_nchw, ref_params["w1"]),
                ref_params["scale1"], ref_params["bias1"])
    y = bn_relu(conv(y, ref_params["w2"]),
                ref_params["scale2"], ref_params["bias2"])
    return y


if __name__ == "__main__":
    key = jax.random.PRNGKey(0)
    k_x, k_p = jax.random.split(key)

    N, C_in, H, W = 2, 4, 16, 16
    planes = 8

    x = jax.random.normal(k_x, (N, C_in, H, W), jnp.float32)
    kernel_params, ref_params = init_basic_block_params(k_p, C_in, planes)

    fwd = jax.jit(functools.partial(basic_block_forward, planes=planes))
    out = fwd(kernel_params, x)
    jax.block_until_ready(out)

    assert out.shape == (N, planes, H, W), out.shape
    assert bool(jnp.all(out >= 0.0)), "ReLU output must be non-negative"

    # Sanity check vs. pure-JAX f32 reference (generous bf16-matmul tolerance).
    ref = _reference_forward(ref_params, x)
    max_err = float(jnp.max(jnp.abs(out - ref)))
    assert max_err < 0.5, f"max abs error vs reference: {max_err}"

    print("KERNEL_OK")
</pallas_src>

<mosaic_0001>
module attributes {stable_mosaic.version = 11 : i64} {
  func.func @_basic_block_kernel(%arg0: i32, %arg1: memref<1x16x16x128xbf16, #tpu.memory_space<vmem>>, %arg2: memref<1152x128xbf16, #tpu.memory_space<vmem>>, %arg3: memref<1x128xf32, #tpu.memory_space<vmem>>, %arg4: memref<1152x128xbf16, #tpu.memory_space<vmem>>, %arg5: memref<1x128xf32, #tpu.memory_space<vmem>>, %arg6: memref<1x16x16x128xf32, #tpu.memory_space<vmem>>, %arg7: memref<18x18x128xbf16, #tpu.memory_space<vmem>>, %arg8: memref<18x18x128xbf16, #tpu.memory_space<vmem>>) attributes {dimension_semantics = [#tpu.dimension_semantics<parallel>], iteration_bounds = array<i64: 2>, scalar_prefetch = 0 : i64, scratch_operands = 2 : i64, tpu.core_type = #tpu.core_type<tc>, window_params = [{transform_indices = @transform_0, window_bounds = array<i64: 1, 16, 16, 128>}, {pipeline_mode = #tpu.pipeline_mode<synchronous>, transform_indices = @transform_1, window_bounds = array<i64: 1152, 128>}, {pipeline_mode = #tpu.pipeline_mode<synchronous>, transform_indices = @transform_2, window_bounds = array<i64: 1, 128>}, {pipeline_mode = #tpu.pipeline_mode<synchronous>, transform_indices = @transform_3, window_bounds = array<i64: 1152, 128>}, {pipeline_mode = #tpu.pipeline_mode<synchronous>, transform_indices = @transform_4, window_bounds = array<i64: 1, 128>}, {transform_indices = @transform_5, window_bounds = array<i64: 1, 16, 16, 128>}]} {
    %cst = arith.constant 0.000000e+00 : bf16
    %0 = vector.broadcast %cst : bf16 to vector<18x18x128xbf16>
    %c0 = arith.constant 0 : index
    %c0_0 = arith.constant 0 : index
    %c0_1 = arith.constant 0 : index
    %1 = vector.load %arg7[%c0, %c0_0, %c0_1] : memref<18x18x128xbf16, #tpu.memory_space<vmem>>, vector<18x18x128xbf16>
    tpu.vector_store %arg7[%c0, %c0_0, %c0_1], %0 {strides = array<i32>} : memref<18x18x128xbf16, #tpu.memory_space<vmem>>, vector<18x18x128xbf16>,
    %c0_2 = arith.constant 0 : index
    %c0_3 = arith.constant 0 : index
    %c0_4 = arith.constant 0 : index
    %c0_5 = arith.constant 0 : index
    %2 = vector.load %arg1[%c0_2, %c0_3, %c0_4, %c0_5] : memref<1x16x16x128xbf16, #tpu.memory_space<vmem>>, vector<1x16x16x128xbf16>
    %3 = vector.shape_cast %2 : vector<1x16x16x128xbf16> to vector<16x16x128xbf16>
    %c1 = arith.constant 1 : index
    %c1_6 = arith.constant 1 : index
    %c0_7 = arith.constant 0 : index
    %4 = vector.load %arg7[%c1, %c1_6, %c0_7] : memref<18x18x128xbf16, #tpu.memory_space<vmem>>, vector<16x16x128xbf16>
    tpu.vector_store %arg7[%c1, %c1_6, %c0_7], %3 {strides = array<i32>} : memref<18x18x128xbf16, #tpu.memory_space<vmem>>, vector<16x16x128xbf16>,
    %c0_8 = arith.constant 0 : index
    %c0_9 = arith.constant 0 : index
    %c0_10 = arith.constant 0 : index
    %5 = vector.load %arg7[%c0_8, %c0_9, %c0_10] : memref<18x18x128xbf16, #tpu.memory_space<vmem>>, vector<18x18x128xbf16>
    %6 = vector.extract_strided_slice %5 {offsets = [0, 0, 0], sizes = [16, 16, 128], strides = [1, 1, 1]} : vector<18x18x128xbf16> to vector<16x16x128xbf16>
    %7 = vector.extract_strided_slice %5 {offsets = [0, 1, 0], sizes = [16, 16, 128], strides = [1, 1, 1]} : vector<18x18x128xbf16> to vector<16x16x128xbf16>
    %8 = vector.extract_strided_slice %5 {offsets = [0, 2, 0], sizes = [16, 16, 128], strides = [1, 1, 1]} : vector<18x18x128xbf16> to vector<16x16x128xbf16>
    %9 = vector.extract_strided_slice %5 {offsets = [1, 0, 0], sizes = [16, 16, 128], strides = [1, 1, 1]} : vector<18x18x128xbf16> to vector<16x16x128xbf16>
    %10 = vector.extract_strided_slice %5 {offsets = [1, 1, 0], sizes = [16, 16, 128], strides = [1, 1, 1]} : vector<18x18x128xbf16> to vector<16x16x128xbf16>
    %11 = vector.extract_strided_slice %5 {offsets = [1, 2, 0], sizes = [16, 16, 128], strides = [1, 1, 1]} : vector<18x18x128xbf16> to vector<16x16x128xbf16>
    %12 = vector.extract_strided_slice %5 {offsets = [2, 0, 0], sizes = [16, 16, 128], strides = [1, 1, 1]} : vector<18x18x128xbf16> to vector<16x16x128xbf16>
    %13 = vector.extract_strided_slice %5 {offsets = [2, 1, 0], sizes = [16, 16, 128], strides = [1, 1, 1]} : vector<18x18x128xbf16> to vector<16x16x128xbf16>
    %14 = vector.extract_strided_slice %5 {offsets = [2, 2, 0], sizes = [16, 16, 128], strides = [1, 1, 1]} : vector<18x18x128xbf16> to vector<16x16x128xbf16>
    %15 = tpu.concatenate %6, %7, %8, %9, %10, %11, %12, %13, %14 in 2 : vector<16x16x128xbf16>, vector<16x16x128xbf16>, vector<16x16x128xbf16>, vector<16x16x128xbf16>, vector<16x16x128xbf16>, vector<16x16x128xbf16>, vector<16x16x128xbf16>, vector<16x16x128xbf16>, vector<16x16x128xbf16> -> vector<16x16x1152xbf16>
    %16 = vector.shape_cast %15 : vector<16x16x1152xbf16> to vector<256x1152xbf16>
    %c0_11 = arith.constant 0 : index
    %c0_12 = arith.constant 0 : index
    %17 = vector.load %arg2[%c0_11, %c0_12] : memref<1152x128xbf16, #tpu.memory_space<vmem>>, vector<1152x128xbf16>
    %cst_13 = arith.constant dense<0.000000e+00> : vector<256x128xf32>
    %18 = tpu.matmul %16, %17, %cst_13 {dimension_numbers = #tpu.dot_dimension_numbers<[1], [0], [0], [1], [0, 0, 1, 1], [], []>} : vector<256x1152xbf16>, vector<1152x128xbf16>, vector<256x128xf32> -> vector<256x128xf32>
    %c0_14 = arith.constant 0 : index
    %c0_15 = arith.constant 0 : index
    %19 = vector.load %arg3[%c0_14, %c0_15] : memref<1x128xf32, #tpu.memory_space<vmem>>, vector<1x128xf32>
    %20 = vector.broadcast %19 : vector<1x128xf32> to vector<256x128xf32>
    %21 = arith.addf %18, %20 : vector<256x128xf32>
    %cst_16 = arith.constant 0.000000e+00 : f32
    %22 = vector.broadcast %cst_16 : f32 to vector<256x128xf32>
    %23 = arith.maximumf %21, %22 : vector<256x128xf32>
    %cst_17 = arith.constant 0.000000e+00 : bf16
    %24 = vector.broadcast %cst_17 : bf16 to vector<18x18x128xbf16>
    %c0_18 = arith.constant 0 : index
    %c0_19 = arith.constant 0 : index
    %c0_20 = arith.constant 0 : index
    %25 = vector.load %arg8[%c0_18, %c0_19, %c0_20] : memref<18x18x128xbf16, #tpu.memory_space<vmem>>, vector<18x18x128xbf16>
    tpu.vector_store %arg8[%c0_18, %c0_19, %c0_20], %24 {strides = array<i32>} : memref<18x18x128xbf16, #tpu.memory_space<vmem>>, vector<18x18x128xbf16>,
    %26 = vector.shape_cast %23 : vector<256x128xf32> to vector<16x16x128xf32>
    %27 = arith.truncf %26 : vector<16x16x128xf32> to vector<16x16x128xbf16>
    %c1_21 = arith.constant 1 : index
    %c1_22 = arith.constant 1 : index
    %c0_23 = arith.constant 0 : index
    %28 = vector.load %arg8[%c1_21, %c1_22, %c0_23] : memref<18x18x128xbf16, #tpu.memory_space<vmem>>, vector<16x16x128xbf16>
    tpu.vector_store %arg8[%c1_21, %c1_22, %c0_23], %27 {strides = array<i32>} : memref<18x18x128xbf16, #tpu.memory_space<vmem>>, vector<16x16x128xbf16>,
    %c0_24 = arith.constant 0 : index
    %c0_25 = arith.constant 0 : index
    %c0_26 = arith.constant 0 : index
    %29 = vector.load %arg8[%c0_24, %c0_25, %c0_26] : memref<18x18x128xbf16, #tpu.memory_space<vmem>>, vector<18x18x128xbf16>
    %30 = vector.extract_strided_slice %29 {offsets = [0, 0, 0], sizes = [16, 16, 128], strides = [1, 1, 1]} : vector<18x18x128xbf16> to vector<16x16x128xbf16>
    %31 = vector.extract_strided_slice %29 {offsets = [0, 1, 0], sizes = [16, 16, 128], strides = [1, 1, 1]} : vector<18x18x128xbf16> to vector<16x16x128xbf16>
    %32 = vector.extract_strided_slice %29 {offsets = [0, 2, 0], sizes = [16, 16, 128], strides = [1, 1, 1]} : vector<18x18x128xbf16> to vector<16x16x128xbf16>
    %33 = vector.extract_strided_slice %29 {offsets = [1, 0, 0], sizes = [16, 16, 128], strides = [1, 1, 1]} : vector<18x18x128xbf16> to vector<16x16x128xbf16>
    %34 = vector.extract_strided_slice %29 {offsets = [1, 1, 0], sizes = [16, 16, 128], strides = [1, 1, 1]} : vector<18x18x128xbf16> to vector<16x16x128xbf16>
    %35 = vector.extract_strided_slice %29 {offsets = [1, 2, 0], sizes = [16, 16, 128], strides = [1, 1, 1]} : vector<18x18x128xbf16> to vector<16x16x128xbf16>
    %36 = vector.extract_strided_slice %29 {offsets = [2, 0, 0], sizes = [16, 16, 128], strides = [1, 1, 1]} : vector<18x18x128xbf16> to vector<16x16x128xbf16>
    %37 = vector.extract_strided_slice %29 {offsets = [2, 1, 0], sizes = [16, 16, 128], strides = [1, 1, 1]} : vector<18x18x128xbf16> to vector<16x16x128xbf16>
    %38 = vector.extract_strided_slice %29 {offsets = [2, 2, 0], sizes = [16, 16, 128], strides = [1, 1, 1]} : vector<18x18x128xbf16> to vector<16x16x128xbf16>
    %39 = tpu.concatenate %30, %31, %32, %33, %34, %35, %36, %37, %38 in 2 : vector<16x16x128xbf16>, vector<16x16x128xbf16>, vector<16x16x128xbf16>, vector<16x16x128xbf16>, vector<16x16x128xbf16>, vector<16x16x128xbf16>, vector<16x16x128xbf16>, vector<16x16x128xbf16>, vector<16x16x128xbf16> -> vector<16x16x1152xbf16>
    %40 = vector.shape_cast %39 : vector<16x16x1152xbf16> to vector<256x1152xbf16>
    %c0_27 = arith.constant 0 : index
    %c0_28 = arith.constant 0 : index
    %41 = vector.load %arg4[%c0_27, %c0_28] : memref<1152x128xbf16, #tpu.memory_space<vmem>>, vector<1152x128xbf16>
    %cst_29 = arith.constant dense<0.000000e+00> : vector<256x128xf32>
    %42 = tpu.matmul %40, %41, %cst_29 {dimension_numbers = #tpu.dot_dimension_numbers<[1], [0], [0], [1], [0, 0, 1, 1], [], []>} : vector<256x1152xbf16>, vector<1152x128xbf16>, vector<256x128xf32> -> vector<256x128xf32>
    %c0_30 = arith.constant 0 : index
    %c0_31 = arith.constant 0 : index
    %43 = vector.load %arg5[%c0_30, %c0_31] : memref<1x128xf32, #tpu.memory_space<vmem>>, vector<1x128xf32>
    %44 = vector.broadcast %43 : vector<1x128xf32> to vector<256x128xf32>
    %45 = arith.addf %42, %44 : vector<256x128xf32>
    %cst_32 = arith.constant 0.000000e+00 : f32
    %46 = vector.broadcast %cst_32 : f32 to vector<256x128xf32>
    %47 = arith.maximumf %45, %46 : vector<256x128xf32>
    %48 = vector.shape_cast %47 : vector<256x128xf32> to vector<16x16x128xf32>
    %c0_33 = arith.constant 0 : index
    %c0_34 = arith.constant 0 : index
    %c0_35 = arith.constant 0 : index
    %c0_36 = arith.constant 0 : index
    %49 = vector.load %arg6[%c0_33, %c0_34, %c0_35, %c0_36] : memref<1x16x16x128xf32, #tpu.memory_space<vmem>>, vector<1x16x16x128xf32>
    %50 = vector.shape_cast %49 : vector<1x16x16x128xf32> to vector<16x16x128xf32>
    %51 = vector.shape_cast %48 : vector<16x16x128xf32> to vector<1x16x16x128xf32>
    tpu.vector_store %arg6[%c0_33, %c0_34, %c0_35, %c0_36], %51 {strides = array<i32>} : memref<1x16x16x128xf32, #tpu.memory_space<vmem>>, vector<1x16x16x128xf32>,
    return
  }
  func.func @transform_0(%arg0: i32) -> (i32, i32, i32, i32) {
    %c0_i32 = arith.constant 0 : i32
    %c0_i32_0 = arith.constant 0 : i32
    %c0_i32_1 = arith.constant 0 : i32
    %c0_i32_2 = arith.constant 0 : i32
    return %arg0, %c0_i32, %c0_i32_0, %c0_i32_1 : i32, i32, i32, i32
  }
  func.func @transform_1(%arg0: i32) -> (i32, i32) {
    %c0_i32 = arith.constant 0 : i32
    %c0_i32_0 = arith.constant 0 : i32
    %c0_i32_1 = arith.constant 0 : i32
    return %c0_i32, %c0_i32_0 : i32, i32
  }
  func.func @transform_2(%arg0: i32) -> (i32, i32) {
    %c0_i32 = arith.constant 0 : i32
    %c0_i32_0 = arith.constant 0 : i32
    %c0_i32_1 = arith.constant 0 : i32
    return %c0_i32, %c0_i32_0 : i32, i32
  }
  func.func @transform_3(%arg0: i32) -> (i32, i32) {
    %c0_i32 = arith.constant 0 : i32
    %c0_i32_0 = arith.constant 0 : i32
    %c0_i32_1 = arith.constant 0 : i32
    return %c0_i32, %c0_i32_0 : i32, i32
  }
  func.func @transform_4(%arg0: i32) -> (i32, i32) {
    %c0_i32 = arith.constant 0 : i32
    %c0_i32_0 = arith.constant 0 : i32
    %c0_i32_1 = arith.constant 0 : i32
    return %c0_i32, %c0_i32_0 : i32, i32
  }
  func.func @transform_5(%arg0: i32) -> (i32, i32, i32, i32) {
    %c0_i32 = arith.constant 0 : i32
    %c0_i32_0 = arith.constant 0 : i32
    %c0_i32_1 = arith.constant 0 : i32
    %c0_i32_2 = arith.constant 0 : i32
    return %arg0, %c0_i32, %c0_i32_0, %c0_i32_1 : i32, i32, i32, i32
  }
}

</mosaic_0001>

<llo_original>
// kernel: basic_block_forward.1
$region0: #{basic_block_forward.1}
  #allocation0 [shape = 'u32[]', space=smem, size = 0x4, offset = 0x4, fixed_abs, tag = 'smem constant byte address 0x4 - core index']
  #allocation1 [shape = 'u32[144,128]{1,0:T(1,128)}', space=vmem, size = 0x12000, scoped, tag = 'internal scratch']
  #allocation2 [shape = 'bf16[18,18,128]{2,1,0:T(8,128)(2,1)}', space=vmem, size = 0x1b000, scoped, tag = 'scratch operand']
  #allocation3 [shape = 'bf16[18,18,128]{2,1,0:T(8,128)(2,1)}', space=vmem, size = 0x1b000, scoped, tag = 'scratch operand']
  %s0 = inlined_call_operand.vmem [shape: bf16[2,16,16,128], index: 0, kind: input, shape index: {}]
  %s1 = inlined_call_operand.vmem [shape: bf16[1152,128], index: 1, kind: input, shape index: {}]
  %s2 = inlined_call_operand.vmem [shape: f32[1,128], index: 2, kind: input, shape index: {}]
  %s3 = inlined_call_operand.hbm [shape: bf16[1152,128], index: 3, kind: input, shape index: {}]
  %s4 = inlined_call_operand.vmem [shape: f32[1,128], index: 4, kind: input, shape index: {}]
  %s5 = inlined_call_operand.vmem [shape: f32[2,16,16,128], index: 5, kind: output, shape index: {}]
  %s6 = sld [smem:[#allocation0]]
  $region57: #{basic_block_forward.1} parent=0
    _
  %s8 = ssub.s32 1, %s6
  %s9 = scalar_select 0, %s8, %s6
  $region1: #{basic_block_forward.1} parent=0
    #allocation4 [shape = 'u8[294912]{0}', space=vmem, size = 0x48000, scoped, tag = 'input window, operand 3, single buffered']
    #allocation5 [shape = 's32[2]{0}', space=sflag, size = 0x8, scoped, tag = 'scoped memory for basic_block_forward.1']
    %10 = vsyncpa [#allocation5], 0
    loop: start=0, step=1, limit=4
    $region2: #{basic_block_forward.1} parent=1 // loop_pre_header
      _
    $region3: #{basic_block_forward.1} parent=1 // loop_header
      %s12 = sphi 0, %s16
      %p13 = scmp.ge.s32.totalorder %s12, 4
      %s22 = sphi 0, %s24
      %s25 = sphi 0, %s22
      %s26 = sphi 0, %s25
      %s42 = sphi 0, %s26
      %s46 = sphi 0, %s46
      %s48 = sphi 0, %s46
      %s49 = sphi 0, %s48
      %s63 = sphi 0, %s49
      %s67 = sphi 0, %s67
      %s69 = sphi 0, %s67
      %s70 = sphi 0, %s69
      %s84 = sphi 0, %s70
      %s88 = sphi 0, %s88
      %s90 = sphi 0, %s88
      %s91 = sphi 0, %s90
      %s105 = sphi 0, %s91
      %s109 = sphi 0, %s109
      %s111 = sphi 0, %s109
      %s112 = sphi 0, %s111
      %s126 = sphi 0, %s112
      %s132 = sphi 0, %s134
      %s135 = sphi 0, %s132
      %s136 = sphi 0, %s135
      %s152 = sphi 0, %s136
    $region4: #{basic_block_forward.1} parent=1 // loop_header_branch
      %15 = sbr.rel (%p13) target = $region8
    $region5: #{basic_block_forward.1} parent=1 // loop_body
      %s17 = ssub.s32 %s12, 1
      %s18 = ssub.s32 %s12, 2
      %s19 = sadd.s32 %s12, 1
      %s20 = ssub.s32 %s12, %s19
      %p21 = scmp.eq.s32.totalorder %s20, 0
      %s23 = sadd.s32 %s22, 1
      %s24 = scalar_select %p21, %s22, %s23
      %p27 = pneg %p21
      %p28 = scmp.eq.s32.totalorder %s12, 1
      %p29 = por %p27, %p28
      %p30 = scmp.ne.s32.totalorder %s22, %s25
      %p31 = scmp.eq.s32.totalorder %s12, 0
      %p32 = por %p30, %p31
      %p33 = scmp.ne.s32.totalorder %s22, %s25
      %p34 = scmp.eq.s32.totalorder %s17, 1
      %p35 = por %p33, %p34
      %p36 = scmp.ne.s32.totalorder %s25, %s26
      %p37 = scmp.eq.s32.totalorder %s17, 0
      %p38 = por %p36, %p37
      %p39 = scmp.ne.s32.totalorder %s25, %s26
      %p40 = scmp.eq.s32.totalorder %s18, 1
      %p41 = por %p39, %p40
      %p43 = scmp.ne.s32.totalorder %s26, %s42
      %p44 = scmp.eq.s32.totalorder %s18, 0
      %p45 = por %p43, %p44
      %s47 = sadd.s32 %s46, 1
      %p50 = scmp.eq.s32.totalorder %s12, 1
      %p51 = scmp.ne.s32.totalorder %s46, %s48
      %p52 = scmp.eq.s32.totalorder %s12, 0
      %p53 = por %p51, %p52
      %p54 = scmp.ne.s32.totalorder %s46, %s48
      %p55 = scmp.eq.s32.totalorder %s17, 1
      %p56 = por %p54, %p55
      %p57 = scmp.ne.s32.totalorder %s48, %s49
      %p58 = scmp.eq.s32.totalorder %s17, 0
      %p59 = por %p57, %p58
      %p60 = scmp.ne.s32.totalorder %s48, %s49
      %p61 = scmp.eq.s32.totalorder %s18, 1
      %p62 = por %p60, %p61
      %p64 = scmp.ne.s32.totalorder %s49, %s63
      %p65 = scmp.eq.s32.totalorder %s18, 0
      %p66 = por %p64, %p65
      %s68 = sadd.s32 %s67, 1
      %p71 = scmp.eq.s32.totalorder %s12, 1
      %p72 = scmp.ne.s32.totalorder %s67, %s69
      %p73 = scmp.eq.s32.totalorder %s12, 0
      %p74 = por %p72, %p73
      %p75 = scmp.ne.s32.totalorder %s67, %s69
      %p76 = scmp.eq.s32.totalorder %s17, 1
      %p77 = por %p75, %p76
      %p78 = scmp.ne.s32.totalorder %s69, %s70
      %p79 = scmp.eq.s32.totalorder %s17, 0
      %p80 = por %p78, %p79
      %p81 = scmp.ne.s32.totalorder %s69, %s70
      %p82 = scmp.eq.s32.totalorder %s18, 1
      %p83 = por %p81, %p82
      %p85 = scmp.ne.s32.totalorder %s70, %s84
      %p86 = scmp.eq.s32.totalorder %s18, 0
      %p87 = por %p85, %p86
      %s89 = sadd.s32 %s88, 1
      %p92 = scmp.eq.s32.totalorder %s12, 1
      %p93 = scmp.ne.s32.totalorder %s88, %s90
      %p94 = scmp.eq.s32.totalorder %s12, 0
      %p95 = por %p93, %p94
      %p96 = scmp.ne.s32.totalorder %s88, %s90
      %p97 = scmp.eq.s32.totalorder %s17, 1
      %p98 = por %p96, %p97
      %p99 = scmp.ne.s32.totalorder %s90, %s91
      %p100 = scmp.eq.s32.totalorder %s17, 0
      %p101 = por %p99, %p100
      %p102 = scmp.ne.s32.totalorder %s90, %s91
      %p103 = scmp.eq.s32.totalorder %s18, 1
      %p104 = por %p102, %p103
      %p106 = scmp.ne.s32.totalorder %s91, %s105
      %p107 = scmp.eq.s32.totalorder %s18, 0
      %p108 = por %p106, %p107
      %s110 = sadd.s32 %s109, 1
      %p113 = scmp.eq.s32.totalorder %s12, 1
      %p114 = scmp.ne.s32.totalorder %s109, %s111
      %p115 = scmp.eq.s32.totalorder %s12, 0
      %p116 = por %p114, %p115
      %p117 = scmp.ne.s32.totalorder %s109, %s111
      %p118 = scmp.eq.s32.totalorder %s17, 1
      %p119 = por %p117, %p118
      %p120 = scmp.ne.s32.totalorder %s111, %s112
      %p121 = scmp.eq.s32.totalorder %s17, 0
      %p122 = por %p120, %p121
      %p123 = scmp.ne.s32.totalorder %s111, %s112
      %p124 = scmp.eq.s32.totalorder %s18, 1
      %p125 = por %p123, %p124
      %p127 = scmp.ne.s32.totalorder %s112, %s126
      %p128 = scmp.eq.s32.totalorder %s18, 0
      %p129 = por %p127, %p128
      %s130 = ssub.s32 %s12, %s19
      %p131 = scmp.eq.s32.totalorder %s130, 0
      %s133 = sadd.s32 %s132, 1
      %s134 = scalar_select %p131, %s132, %s133
      %p137 = pneg %p131
      %p138 = scmp.eq.s32.totalorder %s12, 1
      %p139 = por %p137, %p138
      %p140 = scmp.ne.s32.totalorder %s132, %s135
      %p141 = scmp.eq.s32.totalorder %s12, 0
      %p142 = por %p140, %p141
      %p143 = scmp.ne.s32.totalorder %s132, %s135
      %p144 = scmp.eq.s32.totalorder %s17, 1
      %p145 = por %p143, %p144
      %p146 = scmp.ne.s32.totalorder %s135, %s136
      %p147 = scmp.eq.s32.totalorder %s17, 0
      %p148 = por %p146, %p147
      %p149 = scmp.ne.s32.totalorder %s135, %s136
      %p150 = scmp.eq.s32.totalorder %s18, 1
      %p151 = por %p149, %p150
      %p153 = scmp.ne.s32.totalorder %s136, %s152
      %p154 = scmp.eq.s32.totalorder %s18, 0
      %p155 = por %p153, %p154
      %p156 = scmp.le.s32.totalorder 1, %s12
      %p157 = scmp.lt.s32.totalorder %s12, 3
      %p158 = pnand %p156, %p157
      %p159 = pneg %p158
      // Predicated region
      $region9: #{basic_block_forward.1} parent=5 // pred_check
        _
      $region10: #{basic_block_forward.1} parent=5 // pred_check_branch
        %161 = sbr.rel (%p158) target = $region12
      $region11: #{basic_block_forward.1} parent=5 // pred_region
        %s162 = ssub.s32 %s12, 1
        // Predicated region
        $region13: #{basic_block_forward.1} parent=11 // pred_check
          %p163 = pneg %p59
        $region14: #{basic_block_forward.1} parent=11 // pred_check_branch
          %165 = sbr.rel (%p163) target = $region16
        $region15: #{basic_block_forward.1} parent=11 // pred_region
          _
        $region16: #{basic_block_forward.1} parent=11 // pred_fallthru
          _
        // Predicated region
        $region17: #{basic_block_forward.1} parent=11 // pred_check
          %p166 = pneg %p80
        $region18: #{basic_block_forward.1} parent=11 // pred_check_branch
          %168 = sbr.rel (%p166) target = $region20
        $region19: #{basic_block_forward.1} parent=11 // pred_region
          _
        $region20: #{basic_block_forward.1} parent=11 // pred_fallthru
          _
        // Predicated region
        $region21: #{basic_block_forward.1} parent=11 // pred_check
          %p169 = pneg %p101
        $region22: #{basic_block_forward.1} parent=11 // pred_check_branch
          %171 = sbr.rel (%p169) target = $region24
        $region23: #{basic_block_forward.1} parent=11 // pred_region
          %s173 = ssub.s32 9216, 9216
          %174 = vsyncadd [#allocation5], %s173
          %s175 = sshll.u32 [#allocation4], 4
          %s176 = int_to_ptr.vmem [resolvable:$true] %s175
          %181 = dma.hbm_to_vmem [thread:$0]  %s3, 9216, %s176, [#allocation5], 64, 64, 4
        $region24: #{basic_block_forward.1} parent=11 // pred_fallthru
          _
        // Predicated region
        $region25: #{basic_block_forward.1} parent=11 // pred_check
          %p182 = pneg %p122
        $region26: #{basic_block_forward.1} parent=11 // pred_check_branch
          %184 = sbr.rel (%p182) target = $region28
        $region27: #{basic_block_forward.1} parent=11 // pred_region
          _
        $region28: #{basic_block_forward.1} parent=11 // pred_fallthru
          _
      $region12: #{basic_block_forward.1} parent=5 // pred_fallthru
        _
      %p185 = scmp.lt.s32.totalorder %s12, 2
      // Predicated region
      $region29: #{basic_block_forward.1} parent=5 // pred_check
        %p186 = pneg %p185
      $region30: #{basic_block_forward.1} parent=5 // pred_check_branch
        %188 = sbr.rel (%p186) target = $region32
      $region31: #{basic_block_forward.1} parent=5 // pred_region
        // Predicated region
        $region33: #{basic_block_forward.1} parent=31 // pred_check
          %p189 = pneg %p32
        $region34: #{basic_block_forward.1} parent=31 // pred_check_branch
          %191 = sbr.rel (%p189) target = $region36
        $region35: #{basic_block_forward.1} parent=31 // pred_region
          %p192 = scmp.lt.s32.totalorder %s12, 1
          %s193 = scalar_select %p192, %s12, 1
          %s194 = smul.addr %s193, 32
          %s195 = smul.addr %s194, 4
          %s196 = scalar_lea.vmem %s0, %s195
        $region36: #{basic_block_forward.1} parent=31 // pred_fallthru
          _
      $region32: #{basic_block_forward.1} parent=5 // pred_fallthru
        _
      %p197 = scmp.le.s32.totalorder 1, %s12
      %p198 = scmp.lt.s32.totalorder %s12, 3
      %p199 = pnand %p197, %p198
      %p200 = pneg %p199
      // Predicated region
      $region37: #{basic_block_forward.1} parent=5 // pred_check
        _
      $region38: #{basic_block_forward.1} parent=5 // pred_check_branch
        %202 = sbr.rel (%p199) target = $region40
      $region39: #{basic_block_forward.1} parent=5 // pred_region
        %s203 = ssub.s32 %s12, 1
        // Predicated region
        $region41: #{basic_block_forward.1} parent=39 // pred_check
          %p204 = pneg %p101
        $region42: #{basic_block_forward.1} parent=39 // pred_check_branch
          %206 = sbr.rel (%p204) target = $region44
        $region43: #{basic_block_forward.1} parent=39 // pred_region
          %207 = dma.done [#allocation5], 9216
        $region44: #{basic_block_forward.1} parent=39 // pred_fallthru
          _
        %p208 = scmp.lt.s32.totalorder %s17, 1
        %s209 = scalar_select %p208, %s17, 1
        %s210 = smul.addr %s209, 32
        %s211 = smul.addr %s210, 4
        %s212 = scalar_lea.vmem %s0, %s211
        %p213 = pneg %p38
        %p214 = pneg %p35
        %p215 = pneg %p59
        %p216 = pneg %p56
        %p217 = pneg %p80
        %p218 = pneg %p77
        %p219 = pneg %p101
        %p220 = pneg %p98
        %p221 = pneg %p122
        %p222 = pneg %p119
        %p223 = pneg %p148
        %p224 = pneg %p145
        %p225 = scmp.lt.s32.totalorder %s17, 1
        %s226 = scalar_select %p225, %s17, 1
        %s227 = smul.addr %s226, 32
        %s228 = smul.addr %s227, 8
        %s229 = scalar_lea.vmem %s5, %s228
        %p230 = scmp.lt.s32.totalorder %s17, 1
        %s231 = scalar_select %p230, %s17, 1
        %s232 = smul.addr %s231, 32
        %s233 = smul.addr %s232, 4
        %s234 = scalar_lea.vmem %s0, %s233
        %p235 = scmp.lt.s32.totalorder %s17, 1
        %s236 = scalar_select %p235, %s17, 1
        %s237 = smul.addr %s236, 32
        %s238 = smul.addr %s237, 8
        %s239 = scalar_lea.vmem %s5, %s238
        %241 = vst [vmem:[#allocation2] sm:$0xf] 0
        %242 = vst [vmem:[#allocation2 + $0x4] sm:$0xf] 0
        %243 = vst [vmem:[#allocation2 + $0x8] sm:$0x1] 0
        %244 = vst [vmem:[#allocation2 + $0xc] sm:$0xf] 0
        %245 = vst [vmem:[#allocation2 + $0x10] sm:$0xf] 0
        %246 = vst [vmem:[#allocation2 + $0x14] sm:$0x1] 0
        %247 = vst [vmem:[#allocation2 + $0x18] sm:$0xf] 0
        %248 = vst [vmem:[#allocation2 + $0x1c] sm:$0xf] 0
        %249 = vst [vmem:[#allocation2 + $0x20] sm:$0x1] 0
        %250 = vst [vmem:[#allocation2 + $0x24] sm:$0xf] 0
        %251 = vst [vmem:[#allocation2 + $0x28] sm:$0xf] 0
        %252 = vst [vmem:[#allocation2 + $0x2c] sm:$0x1] 0
        %253 = vst [vmem:[#allocation2 + $0x30] sm:$0xf] 0
        %254 = vst [vmem:[#allocation2 + $0x34] sm:$0xf] 0
        %255 = vst [vmem:[#allocation2 + $0x38] sm:$0x1] 0
        %256 = vst [vmem:[#allocation2 + $0x3c] sm:$0xf] 0
        %257 = vst [vmem:[#allocation2 + $0x40] sm:$0xf] 0
        %258 = vst [vmem:[#allocation2 + $0x44] sm:$0x1] 0
        %259 = vst [vmem:[#allocation2 + $0x48] sm:$0xf] 0
        %260 = vst [vmem:[#allocation2 + $0x4c] sm:$0xf] 0
        %261 = vst [vmem:[#allocation2 + $0x50] sm:$0x1] 0
        %262 = vst [vmem:[#allocation2 + $0x54] sm:$0xf] 0
        %263 = vst [vmem:[#allocation2 + $0x58] sm:$0xf] 0
        %264 = vst [vmem:[#allocation2 + $0x5c] sm:$0x1] 0
        %265 = vst [vmem:[#allocation2 + $0x60] sm:$0xf] 0
        %266 = vst [vmem:[#allocation2 + $0x64] sm:$0xf] 0
        %267 = vst [vmem:[#allocation2 + $0x68] sm:$0x1] 0
        %268 = vst [vmem:[#allocation2 + $0x6c] sm:$0xf] 0
        %269 = vst [vmem:[#allocation2 + $0x70] sm:$0xf] 0
        %270 = vst [vmem:[#allocation2 + $0x74] sm:$0x1] 0
        %271 = vst [vmem:[#allocation2 + $0x78] sm:$0xf] 0
        %272 = vst [vmem:[#allocation2 + $0x7c] sm:$0xf] 0
        %273 = vst [vmem:[#allocation2 + $0x80] sm:$0x1] 0
        %274 = vst [vmem:[#allocation2 + $0x84] sm:$0xf] 0
        %275 = vst [vmem:[#allocation2 + $0x88] sm:$0xf] 0
        %276 = vst [vmem:[#allocation2 + $0x8c] sm:$0x1] 0
        %277 = vst [vmem:[#allocation2 + $0x90] sm:$0xf] 0
        %278 = vst [vmem:[#allocation2 + $0x94] sm:$0xf] 0
        %279 = vst [vmem:[#allocation2 + $0x98] sm:$0x1] 0
        %280 = vst [vmem:[#allocation2 + $0x9c] sm:$0xf] 0
        %281 = vst [vmem:[#allocation2 + $0xa0] sm:$0xf] 0
        %282 = vst [vmem:[#allocation2 + $0xa4] sm:$0x1] 0
        %283 = vst [vmem:[#allocation2 + $0xa8] sm:$0xf] 0
        %284 = vst [vmem:[#allocation2 + $0xac] sm:$0xf] 0
        %285 = vst [vmem:[#allocation2 + $0xb0] sm:$0x1] 0
        %286 = vst [vmem:[#allocation2 + $0xb4] sm:$0xf] 0
        %287 = vst [vmem:[#allocation2 + $0xb8] sm:$0xf] 0
        %288 = vst [vmem:[#allocation2 + $0xbc] sm:$0x1] 0
        %289 = vst [vmem:[#allocation2 + $0xc0] sm:$0xf] 0
        %290 = vst [vmem:[#allocation2 + $0xc4] sm:$0xf] 0
        %291 = vst [vmem:[#allocation2 + $0xc8] sm:$0x1] 0
        %292 = vst [vmem:[#allocation2 + $0xcc] sm:$0xf] 0
        %293 = vst [vmem:[#allocation2 + $0xd0] sm:$0xf] 0
        %294 = vst [vmem:[#allocation2 + $0xd4] sm:$0x1] 0
        %v295 = vld [vmem:[%s234] sm:$0xf]
        %v296 = vld [vmem:[%s234 + $0x4] sm:$0xf]
        %v297 = vld [vmem:[%s234 + $0x8] sm:$0xf]
        %v298 = vld [vmem:[%s234 + $0xc] sm:$0xf]
        %v299 = vld [vmem:[%s234 + $0x10] sm:$0xf]
        %v300 = vld [vmem:[%s234 + $0x14] sm:$0xf]
        %v301 = vld [vmem:[%s234 + $0x18] sm:$0xf]
        %v302 = vld [vmem:[%s234 + $0x1c] sm:$0xf]
        %v303 = vld [vmem:[%s234 + $0x20] sm:$0xf]
        %v304 = vld [vmem:[%s234 + $0x24] sm:$0xf]
        %v305 = vld [vmem:[%s234 + $0x28] sm:$0xf]
        %v306 = vld [vmem:[%s234 + $0x2c] sm:$0xf]
        %v307 = vld [vmem:[%s234 + $0x30] sm:$0xf]
        %v308 = vld [vmem:[%s234 + $0x34] sm:$0xf]
        %v309 = vld [vmem:[%s234 + $0x38] sm:$0xf]
        %v310 = vld [vmem:[%s234 + $0x3c] sm:$0xf]
        %v311 = vld [vmem:[%s234 + $0x40] sm:$0xf]
        %v312 = vld [vmem:[%s234 + $0x44] sm:$0xf]
        %v313 = vld [vmem:[%s234 + $0x48] sm:$0xf]
        %v314 = vld [vmem:[%s234 + $0x4c] sm:$0xf]
        %v315 = vld [vmem:[%s234 + $0x50] sm:$0xf]
        %v316 = vld [vmem:[%s234 + $0x54] sm:$0xf]
        %v317 = vld [vmem:[%s234 + $0x58] sm:$0xf]
        %v318 = vld [vmem:[%s234 + $0x5c] sm:$0xf]
        %v319 = vld [vmem:[%s234 + $0x60] sm:$0xf]
        %v320 = vld [vmem:[%s234 + $0x64] sm:$0xf]
        %v321 = vld [vmem:[%s234 + $0x68] sm:$0xf]
        %v322 = vld [vmem:[%s234 + $0x6c] sm:$0xf]
        %v323 = vld [vmem:[%s234 + $0x70] sm:$0xf]
        %v324 = vld [vmem:[%s234 + $0x74] sm:$0xf]
        %v325 = vld [vmem:[%s234 + $0x78] sm:$0xf]
        %v326 = vld [vmem:[%s234 + $0x7c] sm:$0xf]
        %vm327 = vsmask.f32 256
        %vm328 = vsmask.f32 4368
        %vm329 = vmor %vm327, %vm328
        %v331 = vshrl.u32 %v295, 16
        %v333 = vrot.slane %v331, 7
        %v334 = vshll.u32 %v295, 16
        %v336 = vor.u32 %v333, %v334
        %v337 = vrot.slane %v333, 4
        %v339 = vshrl.u32 %v296, 16
        %v341 = vrot.slane %v339, 7
        %v342 = vshll.u32 %v296, 16
        %v344 = vor.u32 %v341, %v342
        %v345 = vsel %vm329, %v337, %v344
        %v346 = vrot.slane %v341, 4
        %v348 = vshrl.u32 %v297, 16
        %v350 = vrot.slane %v348, 7
        %v351 = vshll.u32 %v297, 16
        %v353 = vor.u32 %v350, %v351
        %v354 = vrot.slane %v350, 4
        %v356 = vshrl.u32 %v298, 16
        %v358 = vrot.slane %v356, 7
        %v359 = vshll.u32 %v298, 16
        %v361 = vor.u32 %v358, %v359
        %v362 = vsel %vm329, %v354, %v361
        %v363 = vrot.slane %v358, 4
        %v365 = vshrl.u32 %v299, 16
        %v367 = vrot.slane %v365, 7
        %v368 = vshll.u32 %v299, 16
        %v370 = vor.u32 %v367, %v368
        %v371 = vrot.slane %v367, 4
        %v373 = vshrl.u32 %v300, 16
        %v375 = vrot.slane %v373, 7
        %v376 = vshll.u32 %v300, 16
        %v378 = vor.u32 %v375, %v376
        %v379 = vsel %vm329, %v371, %v378
        %v380 = vrot.slane %v375, 4
        %v382 = vshrl.u32 %v301, 16
        %v384 = vrot.slane %v382, 7
        %v385 = vshll.u32 %v301, 16
        %v387 = vor.u32 %v384, %v385
        %v388 = vrot.slane %v384, 4
        %v390 = vshrl.u32 %v302, 16
        %v392 = vrot.slane %v390, 7
        %v393 = vshll.u32 %v302, 16
        %v395 = vor.u32 %v392, %v393
        %v396 = vsel %vm329, %v388, %v395
        %v397 = vrot.slane %v392, 4
        %v399 = vshrl.u32 %v303, 16
        %v401 = vrot.slane %v399, 7
        %v402 = vshll.u32 %v303, 16
        %v404 = vor.u32 %v401, %v402
        %v405 = vrot.slane %v401, 4
        %v407 = vshrl.u32 %v304, 16
        %v409 = vrot.slane %v407, 7
        %v410 = vshll.u32 %v304, 16
        %v412 = vor.u32 %v409, %v410
        %v413 = vsel %vm329, %v405, %v412
        %v414 = vrot.slane %v409, 4
        %v416 = vshrl.u32 %v305, 16
        %v418 = vrot.slane %v416, 7
        %v419 = vshll.u32 %v305, 16
        %v421 = vor.u32 %v418, %v419
        %v422 = vrot.slane %v418, 4
        %v424 = vshrl.u32 %v306, 16
        %v426 = vrot.slane %v424, 7
        %v427 = vshll.u32 %v306, 16
        %v429 = vor.u32 %v426, %v427
        %v430 = vsel %vm329, %v422, %v429
        %v431 = vrot.slane %v426, 4
        %v433 = vshrl.u32 %v307, 16
        %v435 = vrot.slane %v433, 7
        %v436 = vshll.u32 %v307, 16
        %v438 = vor.u32 %v435, %v436
        %v439 = vrot.slane %v435, 4
        %v441 = vshrl.u32 %v308, 16
        %v443 = vrot.slane %v441, 7
        %v444 = vshll.u32 %v308, 16
        %v446 = vor.u32 %v443, %v444
        %v447 = vsel %vm329, %v439, %v446
        %v448 = vrot.slane %v443, 4
        %v450 = vshrl.u32 %v309, 16
        %v452 = vrot.slane %v450, 7
        %v453 = vshll.u32 %v309, 16
        %v455 = vor.u32 %v452, %v453
        %v456 = vrot.slane %v452, 4
        %v458 = vshrl.u32 %v310, 16
        %v460 = vrot.slane %v458, 7
        %v461 = vshll.u32 %v310, 16
        %v463 = vor.u32 %v460, %v461
        %v464 = vsel %vm329, %v456, %v463
        %v465 = vrot.slane %v460, 4
        %v467 = vshrl.u32 %v311, 16
        %v469 = vrot.slane %v467, 7
        %v470 = vshll.u32 %v311, 16
        %v472 = vor.u32 %v469, %v470
        %v473 = vrot.slane %v469, 4
        %v475 = vshrl.u32 %v312, 16
        %v477 = vrot.slane %v475, 7
        %v478 = vshll.u32 %v312, 16
        %v480 = vor.u32 %v477, %v478
        %v481 = vsel %vm329, %v473, %v480
        %v482 = vrot.slane %v477, 4
        %v484 = vshrl.u32 %v313, 16
        %v486 = vrot.slane %v484, 7
        %v487 = vshll.u32 %v313, 16
        %v489 = vor.u32 %v486, %v487
        %v490 = vrot.slane %v486, 4
        %v492 = vshrl.u32 %v314, 16
        %v494 = vrot.slane %v492, 7
        %v495 = vshll.u32 %v314, 16
        %v497 = vor.u32 %v494, %v495
        %v498 = vsel %vm329, %v490, %v497
        %v499 = vrot.slane %v494, 4
        %v501 = vshrl.u32 %v315, 16
        %v503 = vrot.slane %v501, 7
        %v504 = vshll.u32 %v315, 16
        %v506 = vor.u32 %v503, %v504
        %v507 = vrot.slane %v503, 4
        %v509 = vshrl.u32 %v316, 16
        %v511 = vrot.slane %v509, 7
        %v512 = vshll.u32 %v316, 16
        %v514 = vor.u32 %v511, %v512
        %v515 = vsel %vm329, %v507, %v514
        %v516 = vrot.slane %v511, 4
        %v518 = vshrl.u32 %v317, 16
        %v520 = vrot.slane %v518, 7
        %v521 = vshll.u32 %v317, 16
        %v523 = vor.u32 %v520, %v521
        %v524 = vrot.slane %v520, 4
        %v526 = vshrl.u32 %v318, 16
        %v528 = vrot.slane %v526, 7
        %v529 = vshll.u32 %v318, 16
        %v531 = vor.u32 %v528, %v529
        %v532 = vsel %vm329, %v524, %v531
        %v533 = vrot.slane %v528, 4
        %v535 = vshrl.u32 %v319, 16
        %v537 = vrot.slane %v535, 7
        %v538 = vshll.u32 %v319, 16
        %v540 = vor.u32 %v537, %v538
        %v541 = vrot.slane %v537, 4
        %v543 = vshrl.u32 %v320, 16
        %v545 = vrot.slane %v543, 7
        %v546 = vshll.u32 %v320, 16
        %v548 = vor.u32 %v545, %v546
        %v549 = vsel %vm329, %v541, %v548
        %v550 = vrot.slane %v545, 4
        %v552 = vshrl.u32 %v321, 16
        %v554 = vrot.slane %v552, 7
        %v555 = vshll.u32 %v321, 16
        %v557 = vor.u32 %v554, %v555
        %v558 = vrot.slane %v554, 4
        %v560 = vshrl.u32 %v322, 16
        %v562 = vrot.slane %v560, 7
        %v563 = vshll.u32 %v322, 16
        %v565 = vor.u32 %v562, %v563
        %v566 = vsel %vm329, %v558, %v565
        %v567 = vrot.slane %v562, 4
        %v569 = vshrl.u32 %v323, 16
        %v571 = vrot.slane %v569, 7
        %v572 = vshll.u32 %v323, 16
        %v574 = vor.u32 %v571, %v572
        %v575 = vrot.slane %v571, 4
        %v577 = vshrl.u32 %v324, 16
        %v579 = vrot.slane %v577, 7
        %v580 = vshll.u32 %v324, 16
        %v582 = vor.u32 %v579, %v580
        %v583 = vsel %vm329, %v575, %v582
        %v584 = vrot.slane %v579, 4
        %v586 = vshrl.u32 %v325, 16
        %v588 = vrot.slane %v586, 7
        %v589 = vshll.u32 %v325, 16
        %v591 = vor.u32 %v588, %v589
        %v592 = vrot.slane %v588, 4
        %v594 = vshrl.u32 %v326, 16
        %v596 = vrot.slane %v594, 7
        %v597 = vshll.u32 %v326, 16
        %v599 = vor.u32 %v596, %v597
        %v600 = vsel %vm329, %v592, %v599
        %v601 = vrot.slane %v596, 4
        %s650 = scalar_lea.vmem [#allocation2], 12
        %vm651 = vcmask 1043456
        %vm652 = vsmask.f32 7938
        %vm653 = vmand %vm651, %vm652
        %v654 = vld [vmem:[%s650] sm:$0xf]
        %v655 = vsel %vm653, %v336, %v654
        %656 = vst [vmem:[%s650] sm:$0xf] %v655
        %657 = vst [vmem:[%s650 + $0x4] sm:$0xf] %v345
        %vm658 = vcmask 1040384
        %vm659 = vmand %vm658, %vm327
        %v660 = vld [vmem:[%s650 + $0x8] sm:$0x1]
        %v661 = vsel %vm659, %v346, %v660
        %662 = vst [vmem:[%s650 + $0x8] sm:$0x1] %v661
        %v663 = vld [vmem:[%s650 + $0xc] sm:$0xf]
        %v664 = vsel %vm653, %v353, %v663
        %665 = vst [vmem:[%s650 + $0xc] sm:$0xf] %v664
        %666 = vst [vmem:[%s650 + $0x10] sm:$0xf] %v362
        %v667 = vld [vmem:[%s650 + $0x14] sm:$0x1]
        %v668 = vsel %vm659, %v363, %v667
        %669 = vst [vmem:[%s650 + $0x14] sm:$0x1] %v668
        %v670 = vld [vmem:[%s650 + $0x18] sm:$0xf]
        %v671 = vsel %vm653, %v370, %v670
        %672 = vst [vmem:[%s650 + $0x18] sm:$0xf] %v671
        %673 = vst [vmem:[%s650 + $0x1c] sm:$0xf] %v379
        %v674 = vld [vmem:[%s650 + $0x20] sm:$0x1]
        %v675 = vsel %vm659, %v380, %v674
        %676 = vst [vmem:[%s650 + $0x20] sm:$0x1] %v675
        %v677 = vld [vmem:[%s650 + $0x24] sm:$0xf]
        %v678 = vsel %vm653, %v387, %v677
        %679 = vst [vmem:[%s650 + $0x24] sm:$0xf] %v678
        %680 = vst [vmem:[%s650 + $0x28] sm:$0xf] %v396
        %v681 = vld [vmem:[%s650 + $0x2c] sm:$0x1]
        %v682 = vsel %vm659, %v397, %v681
        %683 = vst [vmem:[%s650 + $0x2c] sm:$0x1] %v682
        %v684 = vld [vmem:[%s650 + $0x30] sm:$0xf]
        %v685 = vsel %vm653, %v404, %v684
        %686 = vst [vmem:[%s650 + $0x30] sm:$0xf] %v685
        %687 = vst [vmem:[%s650 + $0x34] sm:$0xf] %v413
        %v688 = vld [vmem:[%s650 + $0x38] sm:$0x1]
        %v689 = vsel %vm659, %v414, %v688
        %690 = vst [vmem:[%s650 + $0x38] sm:$0x1] %v689
        %v691 = vld [vmem:[%s650 + $0x3c] sm:$0xf]
        %v692 = vsel %vm653, %v421, %v691
        %693 = vst [vmem:[%s650 + $0x3c] sm:$0xf] %v692
        %694 = vst [vmem:[%s650 + $0x40] sm:$0xf] %v430
        %v695 = vld [vmem:[%s650 + $0x44] sm:$0x1]
        %v696 = vsel %vm659, %v431, %v695
        %697 = vst [vmem:[%s650 + $0x44] sm:$0x1] %v696
        %v698 = vld [vmem:[%s650 + $0x48] sm:$0xf]
        %v699 = vsel %vm653, %v438, %v698
        %700 = vst [vmem:[%s650 + $0x48] sm:$0xf] %v699
        %701 = vst [vmem:[%s650 + $0x4c] sm:$0xf] %v447
        %v702 = vld [vmem:[%s650 + $0x50] sm:$0x1]
        %v703 = vsel %vm659, %v448, %v702
        %704 = vst [vmem:[%s650 + $0x50] sm:$0x1] %v703
        %v705 = vld [vmem:[%s650 + $0x54] sm:$0xf]
        %v706 = vsel %vm653, %v455, %v705
        %707 = vst [vmem:[%s650 + $0x54] sm:$0xf] %v706
        %708 = vst [vmem:[%s650 + $0x58] sm:$0xf] %v464
        %v709 = vld [vmem:[%s650 + $0x5c] sm:$0x1]
        %v710 = vsel %vm659, %v465, %v709
        %711 = vst [vmem:[%s650 + $0x5c] sm:$0x1] %v710
        %v712 = vld [vmem:[%s650 + $0x60] sm:$0xf]
        %v713 = vsel %vm653, %v472, %v712
        %714 = vst [vmem:[%s650 + $0x60] sm:$0xf] %v713
        %715 = vst [vmem:[%s650 + $0x64] sm:$0xf] %v481
        %v716 = vld [vmem:[%s650 + $0x68] sm:$0x1]
        %v717 = vsel %vm659, %v482, %v716
        %718 = vst [vmem:[%s650 + $0x68] sm:$0x1] %v717
        %v719 = vld [vmem:[%s650 + $0x6c] sm:$0xf]
        %v720 = vsel %vm653, %v489, %v719
        %721 = vst [vmem:[%s650 + $0x6c] sm:$0xf] %v720
        %722 = vst [vmem:[%s650 + $0x70] sm:$0xf] %v498
        %v723 = vld [vmem:[%s650 + $0x74] sm:$0x1]
        %v724 = vsel %vm659, %v499, %v723
        %725 = vst [vmem:[%s650 + $0x74] sm:$0x1] %v724
        %v726 = vld [vmem:[%s650 + $0x78] sm:$0xf]
        %v727 = vsel %vm653, %v506, %v726
        %728 = vst [vmem:[%s650 + $0x78] sm:$0xf] %v727
        %729 = vst [vmem:[%s650 + $0x7c] sm:$0xf] %v515
        %v730 = vld [vmem:[%s650 + $0x80] sm:$0x1]
        %v731 = vsel %vm659, %v516, %v730
        %732 = vst [vmem:[%s650 + $0x80] sm:$0x1] %v731
        %v733 = vld [vmem:[%s650 + $0x84] sm:$0xf]
        %v734 = vsel %vm653, %v523, %v733
        %735 = vst [vmem:[%s650 + $0x84] sm:$0xf] %v734
        %736 = vst [vmem:[%s650 + $0x88] sm:$0xf] %v532
        %v737 = vld [vmem:[%s650 + $0x8c] sm:$0x1]
        %v738 = vsel %vm659, %v533, %v737
        %739 = vst [vmem:[%s650 + $0x8c] sm:$0x1] %v738
        %v740 = vld [vmem:[%s650 + $0x90] sm:$0xf]
        %v741 = vsel %vm653, %v540, %v740
        %742 = vst [vmem:[%s650 + $0x90] sm:$0xf] %v741
        %743 = vst [vmem:[%s650 + $0x94] sm:$0xf] %v549
        %v744 = vld [vmem:[%s650 + $0x98] sm:$0x1]
        %v745 = vsel %vm659, %v550, %v744
        %746 = vst [vmem:[%s650 + $0x98] sm:$0x1] %v745
        %v747 = vld [vmem:[%s650 + $0x9c] sm:$0xf]
        %v748 = vsel %vm653, %v557, %v747
        %749 = vst [vmem:[%s650 + $0x9c] sm:$0xf] %v748
        %750 = vst [vmem:[%s650 + $0xa0] sm:$0xf] %v566
        %v751 = vld [vmem:[%s650 + $0xa4] sm:$0x1]
        %v752 = vsel %vm659, %v567, %v751
        %753 = vst [vmem:[%s650 + $0xa4] sm:$0x1] %v752
        %v754 = vld [vmem:[%s650 + $0xa8] sm:$0xf]
        %v755 = vsel %vm653, %v574, %v754
        %756 = vst [vmem:[%s650 + $0xa8] sm:$0xf] %v755
        %757 = vst [vmem:[%s650 + $0xac] sm:$0xf] %v583
        %v758 = vld [vmem:[%s650 + $0xb0] sm:$0x1]
        %v759 = vsel %vm659, %v584, %v758
        %760 = vst [vmem:[%s650 + $0xb0] sm:$0x1] %v759
        %v761 = vld [vmem:[%s650 + $0xb4] sm:$0xf]
        %v762 = vsel %vm653, %v591, %v761
        %763 = vst [vmem:[%s650 + $0xb4] sm:$0xf] %v762
        %764 = vst [vmem:[%s650 + $0xb8] sm:$0xf] %v600
        %v765 = vld [vmem:[%s650 + $0xbc] sm:$0x1]
        %v766 = vsel %vm659, %v601, %v765
        %767 = vst [vmem:[%s650 + $0xbc] sm:$0x1] %v766
        %v768 = vld [vmem:[#allocation2] sm:$0xf]
        %v769 = vld [vmem:[#allocation2 + $0x4] sm:$0xf]
        %v770 = vld [vmem:[#allocation2 + $0x8] sm:$0x1]
        %v771 = vld [vmem:[#allocation2 + $0xc] sm:$0xf]
        %v772 = vld [vmem:[#allocation2 + $0x10] sm:$0xf]
        %v773 = vld [vmem:[#allocation2 + $0x14] sm:$0x1]
        %v774 = vld [vmem:[#allocation2 + $0x18] sm:$0xf]
        %v775 = vld [vmem:[#allocation2 + $0x1c] sm:$0xf]
        %v776 = vld [vmem:[#allocation2 + $0x20] sm:$0x1]
        %v777 = vld [vmem:[#allocation2 + $0x24] sm:$0xf]
        %v778 = vld [vmem:[#allocation2 + $0x28] sm:$0xf]
        %v779 = vld [vmem:[#allocation2 + $0x2c] sm:$0x1]
        %v780 = vld [vmem:[#allocation2 + $0x30] sm:$0xf]
        %v781 = vld [vmem:[#allocation2 + $0x34] sm:$0xf]
        %v782 = vld [vmem:[#allocation2 + $0x38] sm:$0x1]
        %v783 = vld [vmem:[#allocation2 + $0x3c] sm:$0xf]
        %v784 = vld [vmem:[#allocation2 + $0x40] sm:$0xf]
        %v785 = vld [vmem:[#allocation2 + $0x44] sm:$0x1]
        %v786 = vld [vmem:[#allocation2 + $0x48] sm:$0xf]
        %v787 = vld [vmem:[#allocation2 + $0x4c] sm:$0xf]
        %v788 = vld [vmem:[#allocation2 + $0x50] sm:$0x1]
        %v789 = vld [vmem:[#allocation2 + $0x54] sm:$0xf]
        %v790 = vld [vmem:[#allocation2 + $0x58] sm:$0xf]
        %v791 = vld [vmem:[#allocation2 + $0x5c] sm:$0x1]
        %v792 = vld [vmem:[#allocation2 + $0x60] sm:$0xf]
        %v793 = vld [vmem:[#allocation2 + $0x64] sm:$0xf]
        %v794 = vld [vmem:[#allocation2 + $0x68] sm:$0x1]
        %v795 = vld [vmem:[#allocation2 + $0x6c] sm:$0xf]
        %v796 = vld [vmem:[#allocation2 + $0x70] sm:$0xf]
        %v797 = vld [vmem:[#allocation2 + $0x74] sm:$0x1]
        %v798 = vld [vmem:[#allocation2 + $0x78] sm:$0xf]
        %v799 = vld [vmem:[#allocation2 + $0x7c] sm:$0xf]
        %v800 = vld [vmem:[#allocation2 + $0x80] sm:$0x1]
        %v801 = vld [vmem:[#allocation2 + $0x84] sm:$0xf]
        %v802 = vld [vmem:[#allocation2 + $0x88] sm:$0xf]
        %v803 = vld [vmem:[#allocation2 + $0x8c] sm:$0x1]
        %v804 = vld [vmem:[#allocation2 + $0x90] sm:$0xf]
        %v805 = vld [vmem:[#allocation2 + $0x94] sm:$0xf]
        %v806 = vld [vmem:[#allocation2 + $0x98] sm:$0x1]
        %v807 = vld [vmem:[#allocation2 + $0x9c] sm:$0xf]
        %v808 = vld [vmem:[#allocation2 + $0xa0] sm:$0xf]
        %v809 = vld [vmem:[#allocation2 + $0xa4] sm:$0x1]
        %v810 = vld [vmem:[#allocation2 + $0xa8] sm:$0xf]
        %v811 = vld [vmem:[#allocation2 + $0xac] sm:$0xf]
        %v812 = vld [vmem:[#allocation2 + $0xb0] sm:$0x1]
        %v813 = vld [vmem:[#allocation2 + $0xb4] sm:$0xf]
        %v814 = vld [vmem:[#allocation2 + $0xb8] sm:$0xf]
        %v815 = vld [vmem:[#allocation2 + $0xbc] sm:$0x1]
        %v816 = vld [vmem:[#allocation2 + $0xc0] sm:$0xf]
        %v817 = vld [vmem:[#allocation2 + $0xc4] sm:$0xf]
        %v818 = vld [vmem:[#allocation2 + $0xc8] sm:$0x1]
        %v819 = vld [vmem:[#allocation2 + $0xcc] sm:$0xf]
        %v820 = vld [vmem:[#allocation2 + $0xd0] sm:$0xf]
        %v821 = vld [vmem:[#allocation2 + $0xd4] sm:$0x1]
        %v854 = vunpack.c.l.b16 %v768
        %v855 = vunpack.c.l.b16 %v769
        %v856 = vunpack.c.l.b16 %v771
        %v857 = vunpack.c.l.b16 %v772
        %v858 = vunpack.c.l.b16 %v774
        %v859 = vunpack.c.l.b16 %v775
        %v860 = vunpack.c.l.b16 %v777
        %v861 = vunpack.c.l.b16 %v778
        %v862 = vunpack.c.l.b16 %v780
        %v863 = vunpack.c.l.b16 %v781
        %v864 = vunpack.c.l.b16 %v783
        %v865 = vunpack.c.l.b16 %v784
        %v866 = vunpack.c.l.b16 %v786
        %v867 = vunpack.c.l.b16 %v787
        %v868 = vunpack.c.l.b16 %v789
        %v869 = vunpack.c.l.b16 %v790
        %v870 = vunpack.c.l.b16 %v792
        %v871 = vunpack.c.l.b16 %v793
        %v872 = vunpack.c.l.b16 %v795
        %v873 = vunpack.c.l.b16 %v796
        %v874 = vunpack.c.l.b16 %v798
        %v875 = vunpack.c.l.b16 %v799
        %v876 = vunpack.c.l.b16 %v801
        %v877 = vunpack.c.l.b16 %v802
        %v878 = vunpack.c.l.b16 %v804
        %v879 = vunpack.c.l.b16 %v805
        %v880 = vunpack.c.l.b16 %v807
        %v881 = vunpack.c.l.b16 %v808
        %v882 = vunpack.c.l.b16 %v810
        %v883 = vunpack.c.l.b16 %v811
        %v884 = vunpack.c.l.b16 %v813
        %v885 = vunpack.c.l.b16 %v814
        %v886 = vpack.c.b16 %v855, %v854
        %v887 = vpack.c.b16 %v857, %v856
        %v888 = vpack.c.b16 %v859, %v858
        %v889 = vpack.c.b16 %v861, %v860
        %v890 = vpack.c.b16 %v863, %v862
        %v891 = vpack.c.b16 %v865, %v864
        %v892 = vpack.c.b16 %v867, %v866
        %v893 = vpack.c.b16 %v869, %v868
        %v894 = vpack.c.b16 %v871, %v870
        %v895 = vpack.c.b16 %v873, %v872
        %v896 = vpack.c.b16 %v875, %v874
        %v897 = vpack.c.b16 %v877, %v876
        %v898 = vpack.c.b16 %v879, %v878
        %v899 = vpack.c.b16 %v881, %v880
        %v900 = vpack.c.b16 %v883, %v882
        %v901 = vpack.c.b16 %v885, %v884
        %v934 = vunpack.c.l.b16 %v770
        %v935 = vunpack.c.l.b16 %v773
        %v936 = vunpack.c.l.b16 %v776
        %v937 = vunpack.c.l.b16 %v779
        %v938 = vunpack.c.l.b16 %v782
        %v939 = vunpack.c.l.b16 %v785
        %v940 = vunpack.c.l.b16 %v788
        %v941 = vunpack.c.l.b16 %v791
        %v942 = vunpack.c.l.b16 %v794
        %v943 = vunpack.c.l.b16 %v797
        %v944 = vunpack.c.l.b16 %v800
        %v945 = vunpack.c.l.b16 %v803
        %v946 = vunpack.c.l.b16 %v806
        %v947 = vunpack.c.l.b16 %v809
        %v948 = vunpack.c.l.b16 %v812
        %v949 = vunpack.c.l.b16 %v815
        %v950 = vpack.c.b16 %v934, %v934
        %v951 = vpack.c.b16 %v935, %v935
        %v952 = vpack.c.b16 %v936, %v936
        %v953 = vpack.c.b16 %v937, %v937
        %v954 = vpack.c.b16 %v938, %v938
        %v955 = vpack.c.b16 %v939, %v939
        %v956 = vpack.c.b16 %v940, %v940
        %v957 = vpack.c.b16 %v941, %v941
        %v958 = vpack.c.b16 %v942, %v942
        %v959 = vpack.c.b16 %v943, %v943
        %v960 = vpack.c.b16 %v944, %v944
        %v961 = vpack.c.b16 %v945, %v945
        %v962 = vpack.c.b16 %v946, %v946
        %v963 = vpack.c.b16 %v947, %v947
        %v964 = vpack.c.b16 %v948, %v948
        %v965 = vpack.c.b16 %v949, %v949
        %vm966 = vsmask.f32 7424
        %v968 = vshrl.u32 %v886, 16
        %v970 = vshll.u32 %v886, 16
        %v972 = vrot.slane %v970, 1
        %v973 = vor.u32 %v968, %v972
        %v975 = vshll.u32 %v950, 16
        %v977 = vrot.slane %v975, 1
        %v978 = vsel %vm966, %v973, %v977
        %v980 = vshrl.u32 %v887, 16
        %v982 = vshll.u32 %v887, 16
        %v984 = vrot.slane %v982, 1
        %v985 = vor.u32 %v980, %v984
        %v987 = vshll.u32 %v951, 16
        %v989 = vrot.slane %v987, 1
        %v990 = vsel %vm966, %v985, %v989
        %v992 = vshrl.u32 %v888, 16
        %v994 = vshll.u32 %v888, 16
        %v996 = vrot.slane %v994, 1
        %v997 = vor.u32 %v992, %v996
        %v999 = vshll.u32 %v952, 16
        %v1001 = vrot.slane %v999, 1
        %v1002 = vsel %vm966, %v997, %v1001
        %v1004 = vshrl.u32 %v889, 16
        %v1006 = vshll.u32 %v889, 16
        %v1008 = vrot.slane %v1006, 1
        %v1009 = vor.u32 %v1004, %v1008
        %v1011 = vshll.u32 %v953, 16
        %v1013 = vrot.slane %v1011, 1
        %v1014 = vsel %vm966, %v1009, %v1013
        %v1016 = vshrl.u32 %v890, 16
        %v1018 = vshll.u32 %v890, 16
        %v1020 = vrot.slane %v1018, 1
        %v1021 = vor.u32 %v1016, %v1020
        %v1023 = vshll.u32 %v954, 16
        %v1025 = vrot.slane %v1023, 1
        %v1026 = vsel %vm966, %v1021, %v1025
        %v1028 = vshrl.u32 %v891, 16
        %v1030 = vshll.u32 %v891, 16
        %v1032 = vrot.slane %v1030, 1
        %v1033 = vor.u32 %v1028, %v1032
        %v1035 = vshll.u32 %v955, 16
        %v1037 = vrot.slane %v1035, 1
        %v1038 = vsel %vm966, %v1033, %v1037
        %v1040 = vshrl.u32 %v892, 16
        %v1042 = vshll.u32 %v892, 16
        %v1044 = vrot.slane %v1042, 1
        %v1045 = vor.u32 %v1040, %v1044
        %v1047 = vshll.u32 %v956, 16
        %v1049 = vrot.slane %v1047, 1
        %v1050 = vsel %vm966, %v1045, %v1049
        %v1052 = vshrl.u32 %v893, 16
        %v1054 = vshll.u32 %v893, 16
        %v1056 = vrot.slane %v1054, 1
        %v1057 = vor.u32 %v1052, %v1056
        %v1059 = vshll.u32 %v957, 16
        %v1061 = vrot.slane %v1059, 1
        %v1062 = vsel %vm966, %v1057, %v1061
        %v1064 = vshrl.u32 %v894, 16
        %v1066 = vshll.u32 %v894, 16
        %v1068 = vrot.slane %v1066, 1
        %v1069 = vor.u32 %v1064, %v1068
        %v1071 = vshll.u32 %v958, 16
        %v1073 = vrot.slane %v1071, 1
        %v1074 = vsel %vm966, %v1069, %v1073
        %v1076 = vshrl.u32 %v895, 16
        %v1078 = vshll.u32 %v895, 16
        %v1080 = vrot.slane %v1078, 1
        %v1081 = vor.u32 %v1076, %v1080
        %v1083 = vshll.u32 %v959, 16
        %v1085 = vrot.slane %v1083, 1
        %v1086 = vsel %vm966, %v1081, %v1085
        %v1088 = vshrl.u32 %v896, 16
        %v1090 = vshll.u32 %v896, 16
        %v1092 = vrot.slane %v1090, 1
        %v1093 = vor.u32 %v1088, %v1092
        %v1095 = vshll.u32 %v960, 16
        %v1097 = vrot.slane %v1095, 1
        %v1098 = vsel %vm966, %v1093, %v1097
        %v1100 = vshrl.u32 %v897, 16
        %v1102 = vshll.u32 %v897, 16
        %v1104 = vrot.slane %v1102, 1
        %v1105 = vor.u32 %v1100, %v1104
        %v1107 = vshll.u32 %v961, 16
        %v1109 = vrot.slane %v1107, 1
        %v1110 = vsel %vm966, %v1105, %v1109
        %v1112 = vshrl.u32 %v898, 16
        %v1114 = vshll.u32 %v898, 16
        %v1116 = vrot.slane %v1114, 1
        %v1117 = vor.u32 %v1112, %v1116
        %v1119 = vshll.u32 %v962, 16
        %v1121 = vrot.slane %v1119, 1
        %v1122 = vsel %vm966, %v1117, %v1121
        %v1124 = vshrl.u32 %v899, 16
        %v1126 = vshll.u32 %v899, 16
        %v1128 = vrot.slane %v1126, 1
        %v1129 = vor.u32 %v1124, %v1128
        %v1131 = vshll.u32 %v963, 16
        %v1133 = vrot.slane %v1131, 1
        %v1134 = vsel %vm966, %v1129, %v1133
        %v1136 = vshrl.u32 %v900, 16
        %v1138 = vshll.u32 %v900, 16
        %v1140 = vrot.slane %v1138, 1
        %v1141 = vor.u32 %v1136, %v1140
        %v1143 = vshll.u32 %v964, 16
        %v1145 = vrot.slane %v1143, 1
        %v1146 = vsel %vm966, %v1141, %v1145
        %v1148 = vshrl.u32 %v901, 16
        %v1150 = vshll.u32 %v901, 16
        %v1152 = vrot.slane %v1150, 1
        %v1153 = vor.u32 %v1148, %v1152
        %v1155 = vshll.u32 %v965, 16
        %v1157 = vrot.slane %v1155, 1
        %v1158 = vsel %vm966, %v1153, %v1157
        %vm1175 = vcmask 1046528
        %v1176 = vrot.slane %v886, 1
        %v1177 = vrot.slane %v950, 1
        %v1178 = vsel %vm1175, %v1176, %v1177
        %v1179 = vrot.slane %v887, 1
        %v1180 = vrot.slane %v951, 1
        %v1181 = vsel %vm1175, %v1179, %v1180
        %v1182 = vrot.slane %v888, 1
        %v1183 = vrot.slane %v952, 1
        %v1184 = vsel %vm1175, %v1182, %v1183
        %v1185 = vrot.slane %v889, 1
        %v1186 = vrot.slane %v953, 1
        %v1187 = vsel %vm1175, %v1185, %v1186
        %v1188 = vrot.slane %v890, 1
        %v1189 = vrot.slane %v954, 1
        %v1190 = vsel %vm1175, %v1188, %v1189
        %v1191 = vrot.slane %v891, 1
        %v1192 = vrot.slane %v955, 1
        %v1193 = vsel %vm1175, %v1191, %v1192
        %v1194 = vrot.slane %v892, 1
        %v1195 = vrot.slane %v956, 1
        %v1196 = vsel %vm1175, %v1194, %v1195
        %v1197 = vrot.slane %v893, 1
        %v1198 = vrot.slane %v957, 1
        %v1199 = vsel %vm1175, %v1197, %v1198
        %v1200 = vrot.slane %v894, 1
        %v1201 = vrot.slane %v958, 1
        %v1202 = vsel %vm1175, %v1200, %v1201
        %v1203 = vrot.slane %v895, 1
        %v1204 = vrot.slane %v959, 1
        %v1205 = vsel %vm1175, %v1203, %v1204
        %v1206 = vrot.slane %v896, 1
        %v1207 = vrot.slane %v960, 1
        %v1208 = vsel %vm1175, %v1206, %v1207
        %v1209 = vrot.slane %v897, 1
        %v1210 = vrot.slane %v961, 1
        %v1211 = vsel %vm1175, %v1209, %v1210
        %v1212 = vrot.slane %v898, 1
        %v1213 = vrot.slane %v962, 1
        %v1214 = vsel %vm1175, %v1212, %v1213
        %v1215 = vrot.slane %v899, 1
        %v1216 = vrot.slane %v963, 1
        %v1217 = vsel %vm1175, %v1215, %v1216
        %v1218 = vrot.slane %v900, 1
        %v1219 = vrot.slane %v964, 1
        %v1220 = vsel %vm1175, %v1218, %v1219
        %v1221 = vrot.slane %v901, 1
        %v1222 = vrot.slane %v965, 1
        %v1223 = vsel %vm1175, %v1221, %v1222
        %v1242 = vunpack.c.l.b16 %v816
        %v1243 = vunpack.c.l.b16 %v817
        %v1244 = vpack.c.b16 %v1243, %v1242
        %v1247 = vunpack.c.l.b16 %v818
        %v1248 = vpack.c.b16 %v1247, %v1247
        %v1250 = vshrl.u32 %v1244, 16
        %v1252 = vshll.u32 %v1244, 16
        %v1254 = vrot.slane %v1252, 1
        %v1255 = vor.u32 %v1250, %v1254
        %v1257 = vshll.u32 %v1248, 16
        %v1259 = vrot.slane %v1257, 1
        %v1260 = vsel %vm966, %v1255, %v1259
        %v1262 = vrot.slane %v1244, 1
        %v1263 = vrot.slane %v1248, 1
        %v1264 = vsel %vm1175, %v1262, %v1263
        %v1268 = vunpack.c.l.b16 %v819
        %v1269 = vunpack.c.l.b16 %v820
        %v1270 = vpack.c.b16 %v1269, %v1268
        %v1273 = vunpack.c.l.b16 %v821
        %v1274 = vpack.c.b16 %v1273, %v1273
        %v1276 = vshrl.u32 %v1270, 16
        %v1278 = vshll.u32 %v1270, 16
        %v1280 = vrot.slane %v1278, 1
        %v1281 = vor.u32 %v1276, %v1280
        %v1283 = vshll.u32 %v1274, 16
        %v1285 = vrot.slane %v1283, 1
        %v1286 = vsel %vm966, %v1281, %v1285
        %v1288 = vrot.slane %v1270, 1
        %v1289 = vrot.slane %v1274, 1
        %v1290 = vsel %vm1175, %v1288, %v1289
        %v1292 = vld [vmem:[%s1] sm:$0xf]
        %v1293 = vld [vmem:[%s1 + $0x4] sm:$0xf]
        %v1294 = vld [vmem:[%s1 + $0x8] sm:$0xf]
        %v1295 = vld [vmem:[%s1 + $0xc] sm:$0xf]
        %v1296 = vld [vmem:[%s1 + $0x10] sm:$0xf]
        %v1297 = vld [vmem:[%s1 + $0x14] sm:$0xf]
        %v1298 = vld [vmem:[%s1 + $0x18] sm:$0xf]
        %v1299 = vld [vmem:[%s1 + $0x1c] sm:$0xf]
        %v1300 = vld [vmem:[%s1 + $0x20] sm:$0xf]
        %v1301 = vld [vmem:[%s1 + $0x24] sm:$0xf]
        %v1302 = vld [vmem:[%s1 + $0x28] sm:$0xf]
        %v1303 = vld [vmem:[%s1 + $0x2c] sm:$0xf]
        %v1304 = vld [vmem:[%s1 + $0x30] sm:$0xf]
        %v1305 = vld [vmem:[%s1 + $0x34] sm:$0xf]
        %v1306 = vld [vmem:[%s1 + $0x38] sm:$0xf]
        %v1307 = vld [vmem:[%s1 + $0x3c] sm:$0xf]
        %v1308 = vld [vmem:[%s1 + $0x40] sm:$0xf]
        %v1309 = vld [vmem:[%s1 + $0x44] sm:$0xf]
        %v1310 = vld [vmem:[%s1 + $0x48] sm:$0xf]
        %v1311 = vld [vmem:[%s1 + $0x4c] sm:$0xf]
        %v1312 = vld [vmem:[%s1 + $0x50] sm:$0xf]
        %v1313 = vld [vmem:[%s1 + $0x54] sm:$0xf]
        %v1314 = vld [vmem:[%s1 + $0x58] sm:$0xf]
        %v1315 = vld [vmem:[%s1 + $0x5c] sm:$0xf]
        %v1316 = vld [vmem:[%s1 + $0x60] sm:$0xf]
        %v1317 = vld [vmem:[%s1 + $0x64] sm:$0xf]
        %v1318 = vld [vmem:[%s1 + $0x68] sm:$0xf]
        %v1319 = vld [vmem:[%s1 + $0x6c] sm:$0xf]
        %v1320 = vld [vmem:[%s1 + $0x70] sm:$0xf]
        %v1321 = vld [vmem:[%s1 + $0x74] sm:$0xf]
        %v1322 = vld [vmem:[%s1 + $0x78] sm:$0xf]
        %v1323 = vld [vmem:[%s1 + $0x7c] sm:$0xf]
        %v1324 = vld [vmem:[%s1 + $0x80] sm:$0xf]
        %v1325 = vld [vmem:[%s1 + $0x84] sm:$0xf]
        %v1326 = vld [vmem:[%s1 + $0x88] sm:$0xf]
        %v1327 = vld [vmem:[%s1 + $0x8c] sm:$0xf]
        %v1328 = vld [vmem:[%s1 + $0x90] sm:$0xf]
        %v1329 = vld [vmem:[%s1 + $0x94] sm:$0xf]
        %v1330 = vld [vmem:[%s1 + $0x98] sm:$0xf]
        %v1331 = vld [vmem:[%s1 + $0x9c] sm:$0xf]
        %v1332 = vld [vmem:[%s1 + $0xa0] sm:$0xf]
        %v1333 = vld [vmem:[%s1 + $0xa4] sm:$0xf]
        %v1334 = vld [vmem:[%s1 + $0xa8] sm:$0xf]
        %v1335 = vld [vmem:[%s1 + $0xac] sm:$0xf]
        %v1336 = vld [vmem:[%s1 + $0xb0] sm:$0xf]
        %v1337 = vld [vmem:[%s1 + $0xb4] sm:$0xf]
        %v1338 = vld [vmem:[%s1 + $0xb8] sm:$0xf]
        %v1339 = vld [vmem:[%s1 + $0xbc] sm:$0xf]
        %v1340 = vld [vmem:[%s1 + $0xc0] sm:$0xf]
        %v1341 = vld [vmem:[%s1 + $0xc4] sm:$0xf]
        %v1342 = vld [vmem:[%s1 + $0xc8] sm:$0xf]
        %v1343 = vld [vmem:[%s1 + $0xcc] sm:$0xf]
        %v1344 = vld [vmem:[%s1 + $0xd0] sm:$0xf]
        %v1345 = vld [vmem:[%s1 + $0xd4] sm:$0xf]
        %v1346 = vld [vmem:[%s1 + $0xd8] sm:$0xf]
        %v1347 = vld [vmem:[%s1 + $0xdc] sm:$0xf]
        %v1348 = vld [vmem:[%s1 + $0xe0] sm:$0xf]
        %v1349 = vld [vmem:[%s1 + $0xe4] sm:$0xf]
        %v1350 = vld [vmem:[%s1 + $0xe8] sm:$0xf]
        %v1351 = vld [vmem:[%s1 + $0xec] sm:$0xf]
        %v1352 = vld [vmem:[%s1 + $0xf0] sm:$0xf]
        %v1353 = vld [vmem:[%s1 + $0xf4] sm:$0xf]
        %v1354 = vld [vmem:[%s1 + $0xf8] sm:$0xf]
        %v1355 = vld [vmem:[%s1 + $0xfc] sm:$0xf]
        %v1356 = vld [vmem:[%s1 + $0x100] sm:$0xf]
        %v1357 = vld [vmem:[%s1 + $0x104] sm:$0xf]
        %v1358 = vld [vmem:[%s1 + $0x108] sm:$0xf]
        %v1359 = vld [vmem:[%s1 + $0x10c] sm:$0xf]
        %v1360 = vld [vmem:[%s1 + $0x110] sm:$0xf]
        %v1361 = vld [vmem:[%s1 + $0x114] sm:$0xf]
        %v1362 = vld [vmem:[%s1 + $0x118] sm:$0xf]
        %v1363 = vld [vmem:[%s1 + $0x11c] sm:$0xf]
        %v1364 = vld [vmem:[%s1 + $0x120] sm:$0xf]
        %v1365 = vld [vmem:[%s1 + $0x124] sm:$0xf]
        %v1366 = vld [vmem:[%s1 + $0x128] sm:$0xf]
        %v1367 = vld [vmem:[%s1 + $0x12c] sm:$0xf]
        %v1368 = vld [vmem:[%s1 + $0x130] sm:$0xf]
        %v1369 = vld [vmem:[%s1 + $0x134] sm:$0xf]
        %v1370 = vld [vmem:[%s1 + $0x138] sm:$0xf]
        %v1371 = vld [vmem:[%s1 + $0x13c] sm:$0xf]
        %v1372 = vld [vmem:[%s1 + $0x140] sm:$0xf]
        %v1373 = vld [vmem:[%s1 + $0x144] sm:$0xf]
        %v1374 = vld [vmem:[%s1 + $0x148] sm:$0xf]
        %v1375 = vld [vmem:[%s1 + $0x14c] sm:$0xf]
        %v1376 = vld [vmem:[%s1 + $0x150] sm:$0xf]
        %v1377 = vld [vmem:[%s1 + $0x154] sm:$0xf]
        %v1378 = vld [vmem:[%s1 + $0x158] sm:$0xf]
        %v1379 = vld [vmem:[%s1 + $0x15c] sm:$0xf]
        %v1380 = vld [vmem:[%s1 + $0x160] sm:$0xf]
        %v1381 = vld [vmem:[%s1 + $0x164] sm:$0xf]
        %v1382 = vld [vmem:[%s1 + $0x168] sm:$0xf]
        %v1383 = vld [vmem:[%s1 + $0x16c] sm:$0xf]
        %v1384 = vld [vmem:[%s1 + $0x170] sm:$0xf]
        %v1385 = vld [vmem:[%s1 + $0x174] sm:$0xf]
        %v1386 = vld [vmem:[%s1 + $0x178] sm:$0xf]
        %v1387 = vld [vmem:[%s1 + $0x17c] sm:$0xf]
        %v1388 = vld [vmem:[%s1 + $0x180] sm:$0xf]
        %v1389 = vld [vmem:[%s1 + $0x184] sm:$0xf]
        %v1390 = vld [vmem:[%s1 + $0x188] sm:$0xf]
        %v1391 = vld [vmem:[%s1 + $0x18c] sm:$0xf]
        %v1392 = vld [vmem:[%s1 + $0x190] sm:$0xf]
        %v1393 = vld [vmem:[%s1 + $0x194] sm:$0xf]
        %v1394 = vld [vmem:[%s1 + $0x198] sm:$0xf]
        %v1395 = vld [vmem:[%s1 + $0x19c] sm:$0xf]
        %v1396 = vld [vmem:[%s1 + $0x1a0] sm:$0xf]
        %v1397 = vld [vmem:[%s1 + $0x1a4] sm:$0xf]
        %v1398 = vld [vmem:[%s1 + $0x1a8] sm:$0xf]
        %v1399 = vld [vmem:[%s1 + $0x1ac] sm:$0xf]
        %v1400 = vld [vmem:[%s1 + $0x1b0] sm:$0xf]
        %v1401 = vld [vmem:[%s1 + $0x1b4] sm:$0xf]
        %v1402 = vld [vmem:[%s1 + $0x1b8] sm:$0xf]
        %v1403 = vld [vmem:[%s1 + $0x1bc] sm:$0xf]
        %v1404 = vld [vmem:[%s1 + $0x1c0] sm:$0xf]
        %v1405 = vld [vmem:[%s1 + $0x1c4] sm:$0xf]
        %v1406 = vld [vmem:[%s1 + $0x1c8] sm:$0xf]
        %v1407 = vld [vmem:[%s1 + $0x1cc] sm:$0xf]
        %v1408 = vld [vmem:[%s1 + $0x1d0] sm:$0xf]
        %v1409 = vld [vmem:[%s1 + $0x1d4] sm:$0xf]
        %v1410 = vld [vmem:[%s1 + $0x1d8] sm:$0xf]
        %v1411 = vld [vmem:[%s1 + $0x1dc] sm:$0xf]
        %v1412 = vld [vmem:[%s1 + $0x1e0] sm:$0xf]
        %v1413 = vld [vmem:[%s1 + $0x1e4] sm:$0xf]
        %v1414 = vld [vmem:[%s1 + $0x1e8] sm:$0xf]
        %v1415 = vld [vmem:[%s1 + $0x1ec] sm:$0xf]
        %v1416 = vld [vmem:[%s1 + $0x1f0] sm:$0xf]
        %v1417 = vld [vmem:[%s1 + $0x1f4] sm:$0xf]
        %v1418 = vld [vmem:[%s1 + $0x1f8] sm:$0xf]
        %v1419 = vld [vmem:[%s1 + $0x1fc] sm:$0xf]
        %v1420 = vld [vmem:[%s1 + $0x200] sm:$0xf]
        %v1421 = vld [vmem:[%s1 + $0x204] sm:$0xf]
        %v1422 = vld [vmem:[%s1 + $0x208] sm:$0xf]
        %v1423 = vld [vmem:[%s1 + $0x20c] sm:$0xf]
        %v1424 = vld [vmem:[%s1 + $0x210] sm:$0xf]
        %v1425 = vld [vmem:[%s1 + $0x214] sm:$0xf]
        %v1426 = vld [vmem:[%s1 + $0x218] sm:$0xf]
        %v1427 = vld [vmem:[%s1 + $0x21c] sm:$0xf]
        %v1428 = vld [vmem:[%s1 + $0x220] sm:$0xf]
        %v1429 = vld [vmem:[%s1 + $0x224] sm:$0xf]
        %v1430 = vld [vmem:[%s1 + $0x228] sm:$0xf]
        %v1431 = vld [vmem:[%s1 + $0x22c] sm:$0xf]
        %v1432 = vld [vmem:[%s1 + $0x230] sm:$0xf]
        %v1433 = vld [vmem:[%s1 + $0x234] sm:$0xf]
        %v1434 = vld [vmem:[%s1 + $0x238] sm:$0xf]
        %v1435 = vld [vmem:[%s1 + $0x23c] sm:$0xf]
        %v1436 = vld [vmem:[%s2] sm:$0x1]
        %v1438 = vlaneseq
        %v1439 = vshrl.u32 %v1438, 7
        %v1440 = vsub.s32 0, %v1439
        %v1441 = vrot.slane %v1436, %v1440
        %v1587 = vunpack.c.l.b16 %v1292
        %v1588 = vunpack.c.l.b16 %v1293
        %v1589 = vunpack.c.l.b16 %v1294
        %v1590 = vunpack.c.l.b16 %v1295
        %v1591 = vunpack.c.l.b16 %v1296
        %v1592 = vunpack.c.l.b16 %v1297
        %v1593 = vunpack.c.l.b16 %v1298
        %v1594 = vunpack.c.l.b16 %v1299
        %v1595 = vunpack.c.l.b16 %v1300
        %v1596 = vunpack.c.l.b16 %v1301
        %v1597 = vunpack.c.l.b16 %v1302
        %v1598 = vunpack.c.l.b16 %v1303
        %v1599 = vunpack.c.l.b16 %v1304
        %v1600 = vunpack.c.l.b16 %v1305
        %v1601 = vunpack.c.l.b16 %v1306
        %v1602 = vunpack.c.l.b16 %v1307
        %v1603 = vunpack.c.l.b16 %v1308
        %v1604 = vunpack.c.l.b16 %v1309
        %v1605 = vunpack.c.l.b16 %v1310
        %v1606 = vunpack.c.l.b16 %v1311
        %v1607 = vunpack.c.l.b16 %v1312
        %v1608 = vunpack.c.l.b16 %v1313
        %v1609 = vunpack.c.l.b16 %v1314
        %v1610 = vunpack.c.l.b16 %v1315
        %v1611 = vunpack.c.l.b16 %v1316
        %v1612 = vunpack.c.l.b16 %v1317
        %v1613 = vunpack.c.l.b16 %v1318
        %v1614 = vunpack.c.l.b16 %v1319
        %v1615 = vunpack.c.l.b16 %v1320
        %v1616 = vunpack.c.l.b16 %v1321
        %v1617 = vunpack.c.l.b16 %v1322
        %v1618 = vunpack.c.l.b16 %v1323
        %v1619 = vunpack.c.l.b16 %v1324
        %v1620 = vunpack.c.l.b16 %v1325
        %v1621 = vunpack.c.l.b16 %v1326
        %v1622 = vunpack.c.l.b16 %v1327
        %v1623 = vunpack.c.l.b16 %v1328
        %v1624 = vunpack.c.l.b16 %v1329
        %v1625 = vunpack.c.l.b16 %v1330
        %v1626 = vunpack.c.l.b16 %v1331
        %v1627 = vunpack.c.l.b16 %v1332
        %v1628 = vunpack.c.l.b16 %v1333
        %v1629 = vunpack.c.l.b16 %v1334
        %v1630 = vunpack.c.l.b16 %v1335
        %v1631 = vunpack.c.l.b16 %v1336
        %v1632 = vunpack.c.l.b16 %v1337
        %v1633 = vunpack.c.l.b16 %v1338
        %v1634 = vunpack.c.l.b16 %v1339
        %v1635 = vunpack.c.l.b16 %v1340
        %v1636 = vunpack.c.l.b16 %v1341
        %v1637 = vunpack.c.l.b16 %v1342
        %v1638 = vunpack.c.l.b16 %v1343
        %v1639 = vunpack.c.l.b16 %v1344
        %v1640 = vunpack.c.l.b16 %v1345
        %v1641 = vunpack.c.l.b16 %v1346
        %v1642 = vunpack.c.l.b16 %v1347
        %v1643 = vunpack.c.l.b16 %v1348
        %v1644 = vunpack.c.l.b16 %v1349
        %v1645 = vunpack.c.l.b16 %v1350
        %v1646 = vunpack.c.l.b16 %v1351
        %v1647 = vunpack.c.l.b16 %v1352
        %v1648 = vunpack.c.l.b16 %v1353
        %v1649 = vunpack.c.l.b16 %v1354
        %v1650 = vunpack.c.l.b16 %v1355
        %v1651 = vunpack.c.l.b16 %v1356
        %v1652 = vunpack.c.l.b16 %v1357
        %v1653 = vunpack.c.l.b16 %v1358
        %v1654 = vunpack.c.l.b16 %v1359
        %v1655 = vunpack.c.l.b16 %v1360
        %v1656 = vunpack.c.l.b16 %v1361
        %v1657 = vunpack.c.l.b16 %v1362
        %v1658 = vunpack.c.l.b16 %v1363
        %v1659 = vunpack.c.l.b16 %v1364
        %v1660 = vunpack.c.l.b16 %v1365
        %v1661 = vunpack.c.l.b16 %v1366
        %v1662 = vunpack.c.l.b16 %v1367
        %v1663 = vunpack.c.l.b16 %v1368
        %v1664 = vunpack.c.l.b16 %v1369
        %v1665 = vunpack.c.l.b16 %v1370
        %v1666 = vunpack.c.l.b16 %v1371
        %v1667 = vunpack.c.l.b16 %v1372
        %v1668 = vunpack.c.l.b16 %v1373
        %v1669 = vunpack.c.l.b16 %v1374
        %v1670 = vunpack.c.l.b16 %v1375
        %v1671 = vunpack.c.l.b16 %v1376
        %v1672 = vunpack.c.l.b16 %v1377
        %v1673 = vunpack.c.l.b16 %v1378
        %v1674 = vunpack.c.l.b16 %v1379
        %v1675 = vunpack.c.l.b16 %v1380
        %v1676 = vunpack.c.l.b16 %v1381
        %v1677 = vunpack.c.l.b16 %v1382
        %v1678 = vunpack.c.l.b16 %v1383
        %v1679 = vunpack.c.l.b16 %v1384
        %v1680 = vunpack.c.l.b16 %v1385
        %v1681 = vunpack.c.l.b16 %v1386
        %v1682 = vunpack.c.l.b16 %v1387
        %v1683 = vunpack.c.l.b16 %v1388
        %v1684 = vunpack.c.l.b16 %v1389
        %v1685 = vunpack.c.l.b16 %v1390
        %v1686 = vunpack.c.l.b16 %v1391
        %v1687 = vunpack.c.l.b16 %v1392
        %v1688 = vunpack.c.l.b16 %v1393
        %v1689 = vunpack.c.l.b16 %v1394
        %v1690 = vunpack.c.l.b16 %v1395
        %v1691 = vunpack.c.l.b16 %v1396
        %v1692 = vunpack.c.l.b16 %v1397
        %v1693 = vunpack.c.l.b16 %v1398
        %v1694 = vunpack.c.l.b16 %v1399
        %v1695 = vunpack.c.l.b16 %v1400
        %v1696 = vunpack.c.l.b16 %v1401
        %v1697 = vunpack.c.l.b16 %v1402
        %v1698 = vunpack.c.l.b16 %v1403
        %v1699 = vunpack.c.l.b16 %v1404
        %v1700 = vunpack.c.l.b16 %v1405
        %v1701 = vunpack.c.l.b16 %v1406
        %v1702 = vunpack.c.l.b16 %v1407
        %v1703 = vunpack.c.l.b16 %v1408
        %v1704 = vunpack.c.l.b16 %v1409
        %v1705 = vunpack.c.l.b16 %v1410
        %v1706 = vunpack.c.l.b16 %v1411
        %v1707 = vunpack.c.l.b16 %v1412
        %v1708 = vunpack.c.l.b16 %v1413
        %v1709 = vunpack.c.l.b16 %v1414
        %v1710 = vunpack.c.l.b16 %v1415
        %v1711 = vunpack.c.l.b16 %v1416
        %v1712 = vunpack.c.l.b16 %v1417
        %v1713 = vunpack.c.l.b16 %v1418
        %v1714 = vunpack.c.l.b16 %v1419
        %v1715 = vunpack.c.l.b16 %v1420
        %v1716 = vunpack.c.l.b16 %v1421
        %v1717 = vunpack.c.l.b16 %v1422
        %v1718 = vunpack.c.l.b16 %v1423
        %v1719 = vunpack.c.l.b16 %v1424
        %v1720 = vunpack.c.l.b16 %v1425
        %v1721 = vunpack.c.l.b16 %v1426
        %v1722 = vunpack.c.l.b16 %v1427
        %v1723 = vunpack.c.l.b16 %v1428
        %v1724 = vunpack.c.l.b16 %v1429
        %v1725 = vunpack.c.l.b16 %v1430
        %v1726 = vunpack.c.l.b16 %v1431
        %v1727 = vunpack.c.l.b16 %v1432
        %v1728 = vunpack.c.l.b16 %v1433
        %v1729 = vunpack.c.l.b16 %v1434
        %v1730 = vunpack.c.l.b16 %v1435
        %v1731 = vpack.c.b16 %v1588, %v1587
        %v1732 = vpack.c.b16 %v1590, %v1589
        %v1733 = vpack.c.b16 %v1592, %v1591
        %v1734 = vpack.c.b16 %v1594, %v1593
        %v1735 = vpack.c.b16 %v1596, %v1595
        %v1736 = vpack.c.b16 %v1598, %v1597
        %v1737 = vpack.c.b16 %v1600, %v1599
        %v1738 = vpack.c.b16 %v1602, %v1601
        %v1739 = vpack.c.b16 %v1604, %v1603
        %v1740 = vpack.c.b16 %v1606, %v1605
        %v1741 = vpack.c.b16 %v1608, %v1607
        %v1742 = vpack.c.b16 %v1610, %v1609
        %v1743 = vpack.c.b16 %v1612, %v1611
        %v1744 = vpack.c.b16 %v1614, %v1613
        %v1745 = vpack.c.b16 %v1616, %v1615
        %v1746 = vpack.c.b16 %v1618, %v1617
        %v1747 = vpack.c.b16 %v1620, %v1619
        %v1748 = vpack.c.b16 %v1622, %v1621
        %v1749 = vpack.c.b16 %v1624, %v1623
        %v1750 = vpack.c.b16 %v1626, %v1625
        %v1751 = vpack.c.b16 %v1628, %v1627
        %v1752 = vpack.c.b16 %v1630, %v1629
        %v1753 = vpack.c.b16 %v1632, %v1631
        %v1754 = vpack.c.b16 %v1634, %v1633
        %v1755 = vpack.c.b16 %v1636, %v1635
        %v1756 = vpack.c.b16 %v1638, %v1637
        %v1757 = vpack.c.b16 %v1640, %v1639
        %v1758 = vpack.c.b16 %v1642, %v1641
        %v1759 = vpack.c.b16 %v1644, %v1643
        %v1760 = vpack.c.b16 %v1646, %v1645
        %v1761 = vpack.c.b16 %v1648, %v1647
        %v1762 = vpack.c.b16 %v1650, %v1649
        %v1763 = vpack.c.b16 %v1652, %v1651
        %v1764 = vpack.c.b16 %v1654, %v1653
        %v1765 = vpack.c.b16 %v1656, %v1655
        %v1766 = vpack.c.b16 %v1658, %v1657
        %v1767 = vpack.c.b16 %v1660, %v1659
        %v1768 = vpack.c.b16 %v1662, %v1661
        %v1769 = vpack.c.b16 %v1664, %v1663
        %v1770 = vpack.c.b16 %v1666, %v1665
        %v1771 = vpack.c.b16 %v1668, %v1667
        %v1772 = vpack.c.b16 %v1670, %v1669
        %v1773 = vpack.c.b16 %v1672, %v1671
        %v1774 = vpack.c.b16 %v1674, %v1673
        %v1775 = vpack.c.b16 %v1676, %v1675
        %v1776 = vpack.c.b16 %v1678, %v1677
        %v1777 = vpack.c.b16 %v1680, %v1679
        %v1778 = vpack.c.b16 %v1682, %v1681
        %v1779 = vpack.c.b16 %v1684, %v1683
        %v1780 = vpack.c.b16 %v1686, %v1685
        %v1781 = vpack.c.b16 %v1688, %v1687
        %v1782 = vpack.c.b16 %v1690, %v1689
        %v1783 = vpack.c.b16 %v1692, %v1691
        %v1784 = vpack.c.b16 %v1694, %v1693
        %v1785 = vpack.c.b16 %v1696, %v1695
        %v1786 = vpack.c.b16 %v1698, %v1697
        %v1787 = vpack.c.b16 %v1700, %v1699
        %v1788 = vpack.c.b16 %v1702, %v1701
        %v1789 = vpack.c.b16 %v1704, %v1703
        %v1790 = vpack.c.b16 %v1706, %v1705
        %v1791 = vpack.c.b16 %v1708, %v1707
        %v1792 = vpack.c.b16 %v1710, %v1709
        %v1793 = vpack.c.b16 %v1712, %v1711
        %v1794 = vpack.c.b16 %v1714, %v1713
        %v1795 = vpack.c.b16 %v1716, %v1715
        %v1796 = vpack.c.b16 %v1718, %v1717
        %v1797 = vpack.c.b16 %v1720, %v1719
        %v1798 = vpack.c.b16 %v1722, %v1721
        %v1799 = vpack.c.b16 %v1724, %v1723
        %v1800 = vpack.c.b16 %v1726, %v1725
        %v1801 = vpack.c.b16 %v1728, %v1727
        %v1802 = vpack.c.b16 %v1730, %v1729
        %1875 = vmatprep.subr.bf16.mxu0 0
        %1876 = vmatpush1.bf16.msra.mxu0 %v1731
        %1877 = vmatprep.subr.bf16.mxu0 0
        %1878 = vmatpush1.bf16.msra.mxu0 %v1732
        %1879 = vmatprep.subr.bf16.mxu0 0
        %1880 = vmatpush1.bf16.msra.mxu0 %v1733
        %1881 = vmatprep.subr.bf16.mxu0 0
        %1882 = vmatpush1.bf16.msra.mxu0 %v1734
        %1883 = vmatprep.subr.bf16.mxu0 0
        %1884 = vmatpush1.bf16.msra.mxu0 %v1735
        %1885 = vmatprep.subr.bf16.mxu0 0
        %1886 = vmatpush1.bf16.msra.mxu0 %v1736
        %1887 = vmatprep.subr.bf16.mxu0 0
        %1888 = vmatpush1.bf16.msra.mxu0 %v1737
        %1889 = vmatprep.subr.bf16.mxu0 0
        %1890 = vmatpush1.bf16.msra.mxu0 %v1738
        %1891 = vmatprep.subr.bf16.mxu0 0
        %1892 = vmatpush1.bf16.msra.mxu0 %v1739
        %1893 = vmatprep.subr.bf16.mxu0 0
        %1894 = vmatpush1.bf16.msra.mxu0 %v1740
        %1895 = vmatprep.subr.bf16.mxu0 0
        %1896 = vmatpush1.bf16.msra.mxu0 %v1741
        %1897 = vmatprep.subr.bf16.mxu0 0
        %1898 = vmatpush1.bf16.msra.mxu0 %v1742
        %1899 = vmatprep.subr.bf16.mxu0 0
        %1900 = vmatpush1.bf16.msra.mxu0 %v1743
        %1901 = vmatprep.subr.bf16.mxu0 0
        %1902 = vmatpush1.bf16.msra.mxu0 %v1744
        %1903 = vmatprep.subr.bf16.mxu0 0
        %1904 = vmatpush1.bf16.msra.mxu0 %v1745
        %1905 = vmatprep.subr.bf16.mxu0 0
        %1906 = vmatpush1.bf16.msra.mxu0 %v1746
        %1907 = vmatprep.mubr.bf16.mxu0 %v978
        %1908 = vmatmul.mubr.bf16.gmra.mrb[0].mxu0 %v886
        %v1909 = vpop.f32.mrb[0].mxu0
        %v1910 = vadd.f32 %v1441, %v1909
        %v1911 = vpop.f32.mrb[0].mxu0
        %v1912 = vpop.f32.mrb[0].mxu0
        %v1913 = vadd.f32 %v1441, %v1912
        %v1914 = vpop.f32.mrb[0].mxu0
        %1915 = vmatprep.mubr.bf16.mxu0 %v990
        %1916 = vmatmul.mubr.bf16.gmra.mrb[0].mxu0 %v887
        %v1917 = vpop.f32.mrb[0].mxu0
        %v1918 = vadd.f32 %v1441, %v1917
        %v1919 = vpop.f32.mrb[0].mxu0
        %v1920 = vpop.f32.mrb[0].mxu0
        %v1921 = vadd.f32 %v1441, %v1920
        %v1922 = vpop.f32.mrb[0].mxu0
        %1923 = vmatprep.mubr.bf16.mxu0 %v1002
        %1924 = vmatmul.mubr.bf16.gmra.mrb[0].mxu0 %v888
        %v1925 = vpop.f32.mrb[0].mxu0
        %v1926 = vadd.f32 %v1441, %v1925
        %v1927 = vpop.f32.mrb[0].mxu0
        %v1928 = vpop.f32.mrb[0].mxu0
        %v1929 = vadd.f32 %v1441, %v1928
        %v1930 = vpop.f32.mrb[0].mxu0
        %1931 = vmatprep.mubr.bf16.mxu0 %v1014
        %1932 = vmatmul.mubr.bf16.gmra.mrb[0].mxu0 %v889
        %v1933 = vpop.f32.mrb[0].mxu0
        %v1934 = vadd.f32 %v1441, %v1933
        %v1935 = vpop.f32.mrb[0].mxu0
        %v1936 = vpop.f32.mrb[0].mxu0
        %v1937 = vadd.f32 %v1441, %v1936
        %v1938 = vpop.f32.mrb[0].mxu0
        %1939 = vmatprep.mubr.bf16.mxu0 %v1026
        %1940 = vmatmul.mubr.bf16.gmra.mrb[0].mxu0 %v890
        %v1941 = vpop.f32.mrb[0].mxu0
        %v1942 = vadd.f32 %v1441, %v1941
        %v1943 = vpop.f32.mrb[0].mxu0
        %v1944 = vpop.f32.mrb[0].mxu0
        %v1945 = vadd.f32 %v1441, %v1944
        %v1946 = vpop.f32.mrb[0].mxu0
        %1947 = vmatprep.mubr.bf16.mxu0 %v1038
        %1948 = vmatmul.mubr.bf16.gmra.mrb[0].mxu0 %v891
        %v1949 = vpop.f32.mrb[0].mxu0
        %v1950 = vadd.f32 %v1441, %v1949
        %v1951 = vpop.f32.mrb[0].mxu0
        %v1952 = vpop.f32.mrb[0].mxu0
        %v1953 = vadd.f32 %v1441, %v1952
        %v1954 = vpop.f32.mrb[0].mxu0
        %1955 = vmatprep.mubr.bf16.mxu0 %v1050
        %1956 = vmatmul.mubr.bf16.gmra.mrb[0].mxu0 %v892
        %v1957 = vpop.f32.mrb[0].mxu0
        %v1958 = vadd.f32 %v1441, %v1957
        %v1959 = vpop.f32.mrb[0].mxu0
        %v1960 = vpop.f32.mrb[0].mxu0
        %v1961 = vadd.f32 %v1441, %v1960
        %v1962 = vpop.f32.mrb[0].mxu0
        %1963 = vmatprep.mubr.bf16.mxu0 %v1062
        %1964 = vmatmul.mubr.bf16.gmra.mrb[0].mxu0 %v893
        %v1965 = vpop.f32.mrb[0].mxu0
        %v1966 = vadd.f32 %v1441, %v1965
        %v1967 = vpop.f32.mrb[0].mxu0
        %v1968 = vpop.f32.mrb[0].mxu0
        %v1969 = vadd.f32 %v1441, %v1968
        %v1970 = vpop.f32.mrb[0].mxu0
        %1971 = vmatprep.mubr.bf16.mxu0 %v1074
        %1972 = vmatmul.mubr.bf16.gmra.mrb[0].mxu0 %v894
        %v1973 = vpop.f32.mrb[0].mxu0
        %v1974 = vadd.f32 %v1441, %v1973
        %v1975 = vpop.f32.mrb[0].mxu0
        %v1976 = vpop.f32.mrb[0].mxu0
        %v1977 = vadd.f32 %v1441, %v1976
        %v1978 = vpop.f32.mrb[0].mxu0
        %1979 = vmatprep.mubr.bf16.mxu0 %v1086
        %1980 = vmatmul.mubr.bf16.gmra.mrb[0].mxu0 %v895
        %v1981 = vpop.f32.mrb[0].mxu0
        %v1982 = vadd.f32 %v1441, %v1981
        %v1983 = vpop.f32.mrb[0].mxu0
        %v1984 = vpop.f32.mrb[0].mxu0
        %v1985 = vadd.f32 %v1441, %v1984
        %v1986 = vpop.f32.mrb[0].mxu0
        %1987 = vmatprep.mubr.bf16.mxu0 %v1098
        %1988 = vmatmul.mubr.bf16.gmra.mrb[0].mxu0 %v896
        %v1989 = vpop.f32.mrb[0].mxu0
        %v1990 = vadd.f32 %v1441, %v1989
        %v1991 = vpop.f32.mrb[0].mxu0
        %v1992 = vpop.f32.mrb[0].mxu0
        %v1993 = vadd.f32 %v1441, %v1992
        %v1994 = vpop.f32.mrb[0].mxu0
        %1995 = vmatprep.mubr.bf16.mxu0 %v1110
        %1996 = vmatmul.mubr.bf16.gmra.mrb[0].mxu0 %v897
        %v1997 = vpop.f32.mrb[0].mxu0
        %v1998 = vadd.f32 %v1441, %v1997
        %v1999 = vpop.f32.mrb[0].mxu0
        %v2000 = vpop.f32.mrb[0].mxu0
        %v2001 = vadd.f32 %v1441, %v2000
        %v2002 = vpop.f32.mrb[0].mxu0
        %2003 = vmatprep.mubr.bf16.mxu0 %v1122
        %2004 = vmatmul.mubr.bf16.gmra.mrb[0].mxu0 %v898
        %v2005 = vpop.f32.mrb[0].mxu0
        %v2006 = vadd.f32 %v1441, %v2005
        %v2007 = vpop.f32.mrb[0].mxu0
        %v2008 = vpop.f32.mrb[0].mxu0
        %v2009 = vadd.f32 %v1441, %v2008
        %v2010 = vpop.f32.mrb[0].mxu0
        %2011 = vmatprep.mubr.bf16.mxu0 %v1134
        %2012 = vmatmul.mubr.bf16.gmra.mrb[0].mxu0 %v899
        %v2013 = vpop.f32.mrb[0].mxu0
        %v2014 = vadd.f32 %v1441, %v2013
        %v2015 = vpop.f32.mrb[0].mxu0
        %v2016 = vpop.f32.mrb[0].mxu0
        %v2017 = vadd.f32 %v1441, %v2016
        %v2018 = vpop.f32.mrb[0].mxu0
        %2019 = vmatprep.mubr.bf16.mxu0 %v1146
        %2020 = vmatmul.mubr.bf16.gmra.mrb[0].mxu0 %v900
        %v2021 = vpop.f32.mrb[0].mxu0
        %v2022 = vadd.f32 %v1441, %v2021
        %v2023 = vpop.f32.mrb[0].mxu0
        %v2024 = vpop.f32.mrb[0].mxu0
        %v2025 = vadd.f32 %v1441, %v2024
        %v2026 = vpop.f32.mrb[0].mxu0
        %2027 = vmatprep.mubr.bf16.mxu0 %v1158
        %2028 = vmatmul.mubr.bf16.gmra.mrb[0].mxu0 %v901
        %v2029 = vpop.f32.mrb[0].mxu0
        %v2030 = vadd.f32 %v1441, %v2029
        %v2031 = vpop.f32.mrb[0].mxu0
        %v2032 = vpop.f32.mrb[0].mxu0
        %v2033 = vadd.f32 %v1441, %v2032
        %v2034 = vpop.f32.mrb[0].mxu0
        %2035 = vdwg.mxu0
        %2036 = vmatprep.subr.bf16.mxu0 0
        %2037 = vmatpush1.bf16.msra.mxu0 %v1747
        %2038 = vmatprep.subr.bf16.mxu0 0
        %2039 = vmatpush1.bf16.msra.mxu0 %v1748
        %2040 = vmatprep.subr.bf16.mxu0 0
        %2041 = vmatpush1.bf16.msra.mxu0 %v1749
        %2042 = vmatprep.subr.bf16.mxu0 0
        %2043 = vmatpush1.bf16.msra.mxu0 %v1750
        %2044 = vmatprep.subr.bf16.mxu0 0
        %2045 = vmatpush1.bf16.msra.mxu0 %v1751
        %2046 = vmatprep.subr.bf16.mxu0 0
        %2047 = vmatpush1.bf16.msra.mxu0 %v1752
        %2048 = vmatprep.subr.bf16.mxu0 0
        %2049 = vmatpush1.bf16.msra.mxu0 %v1753
        %2050 = vmatprep.subr.bf16.mxu0 0
        %2051 = vmatpush1.bf16.msra.mxu0 %v1754
        %2052 = vmatprep.subr.bf16.mxu0 0
        %2053 = vmatpush1.bf16.msra.mxu0 %v1755
        %2054 = vmatprep.subr.bf16.mxu0 0
        %2055 = vmatpush1.bf16.msra.mxu0 %v1756
        %2056 = vmatprep.subr.bf16.mxu0 0
        %2057 = vmatpush1.bf16.msra.mxu0 %v1757
        %2058 = vmatprep.subr.bf16.mxu0 0
        %2059 = vmatpush1.bf16.msra.mxu0 %v1758
        %2060 = vmatprep.subr.bf16.mxu0 0
        %2061 = vmatpush1.bf16.msra.mxu0 %v1759
        %2062 = vmatprep.subr.bf16.mxu0 0
        %2063 = vmatpush1.bf16.msra.mxu0 %v1760
        %2064 = vmatprep.subr.bf16.mxu0 0
        %2065 = vmatpush1.bf16.msra.mxu0 %v1761
        %2066 = vmatprep.subr.bf16.mxu0 0
        %2067 = vmatpush1.bf16.msra.mxu0 %v1762
        %2068 = vmatprep.mubr.bf16.mxu0 %v887
        %2069 = vmatmul.mubr.bf16.gmra.mrb[0].mxu0 %v1178
        %v2070 = vpop.f32.mrb[0].mxu0
        %v2071 = vadd.f32 %v1910, %v2070
        %v2072 = vpop.f32.mrb[0].mxu0
        %v2073 = vpop.f32.mrb[0].mxu0
        %v2074 = vadd.f32 %v1913, %v2073
        %v2075 = vpop.f32.mrb[0].mxu0
        %2076 = vmatprep.mubr.bf16.mxu0 %v888
        %2077 = vmatmul.mubr.bf16.gmra.mrb[0].mxu0 %v1181
        %v2078 = vpop.f32.mrb[0].mxu0
        %v2079 = vadd.f32 %v1918, %v2078
        %v2080 = vpop.f32.mrb[0].mxu0
        %v2081 = vpop.f32.mrb[0].mxu0
        %v2082 = vadd.f32 %v1921, %v2081
        %v2083 = vpop.f32.mrb[0].mxu0
        %2084 = vmatprep.mubr.bf16.mxu0 %v889
        %2085 = vmatmul.mubr.bf16.gmra.mrb[0].mxu0 %v1184
        %v2086 = vpop.f32.mrb[0].mxu0
        %v2087 = vadd.f32 %v1926, %v2086
        %v2088 = vpop.f32.mrb[0].mxu0
        %v2089 = vpop.f32.mrb[0].mxu0
        %v2090 = vadd.f32 %v1929, %v2089
        %v2091 = vpop.f32.mrb[0].mxu0
        %2092 = vmatprep.mubr.bf16.mxu0 %v890
        %2093 = vmatmul.mubr.bf16.gmra.mrb[0].mxu0 %v1187
        %v2094 = vpop.f32.mrb[0].mxu0
        %v2095 = vadd.f32 %v1934, %v2094
        %v2096 = vpop.f32.mrb[0].mxu0
        %v2097 = vpop.f32.mrb[0].mxu0
        %v2098 = vadd.f32 %v1937, %v2097
        %v2099 = vpop.f32.mrb[0].mxu0
        %2100 = vmatprep.mubr.bf16.mxu0 %v891
        %2101 = vmatmul.mubr.bf16.gmra.mrb[0].mxu0 %v1190
        %v2102 = vpop.f32.mrb[0].mxu0
        %v2103 = vadd.f32 %v1942, %v2102
        %v2104 = vpop.f32.mrb[0].mxu0
        %v2105 = vpop.f32.mrb[0].mxu0
        %v2106 = vadd.f32 %v1945, %v2105
        %v2107 = vpop.f32.mrb[0].mxu0
        %2108 = vmatprep.mubr.bf16.mxu0 %v892
        %2109 = vmatmul.mubr.bf16.gmra.mrb[0].mxu0 %v1193
        %v2110 = vpop.f32.mrb[0].mxu0
        %v2111 = vadd.f32 %v1950, %v2110
        %v2112 = vpop.f32.mrb[0].mxu0
        %v2113 = vpop.f32.mrb[0].mxu0
        %v2114 = vadd.f32 %v1953, %v2113
        %v2115 = vpop.f32.mrb[0].mxu0
        %2116 = vmatprep.mubr.bf16.mxu0 %v893
        %2117 = vmatmul.mubr.bf16.gmra.mrb[0].mxu0 %v1196
        %v2118 = vpop.f32.mrb[0].mxu0
        %v2119 = vadd.f32 %v1958, %v2118
        %v2120 = vpop.f32.mrb[0].mxu0
        %v2121 = vpop.f32.mrb[0].mxu0
        %v2122 = vadd.f32 %v1961, %v2121
        %v2123 = vpop.f32.mrb[0].mxu0
        %2124 = vmatprep.mubr.bf16.mxu0 %v894
        %2125 = vmatmul.mubr.bf16.gmra.mrb[0].mxu0 %v1199
        %v2126 = vpop.f32.mrb[0].mxu0
        %v2127 = vadd.f32 %v1966, %v2126
        %v2128 = vpop.f32.mrb[0].mxu0
        %v2129 = vpop.f32.mrb[0].mxu0
        %v2130 = vadd.f32 %v1969, %v2129
        %v2131 = vpop.f32.mrb[0].mxu0
        %2132 = vmatprep.mubr.bf16.mxu0 %v895
        %2133 = vmatmul.mubr.bf16.gmra.mrb[0].mxu0 %v1202
        %v2134 = vpop.f32.mrb[0].mxu0
        %v2135 = vadd.f32 %v1974, %v2134
        %v2136 = vpop.f32.mrb[0].mxu0
        %v2137 = vpop.f32.mrb[0].mxu0
        %v2138 = vadd.f32 %v1977, %v2137
        %v2139 = vpop.f32.mrb[0].mxu0
        %2140 = vmatprep.mubr.bf16.mxu0 %v896
        %2141 = vmatmul.mubr.bf16.gmra.mrb[0].mxu0 %v1205
        %v2142 = vpop.f32.mrb[0].mxu0
        %v2143 = vadd.f32 %v1982, %v2142
        %v2144 = vpop.f32.mrb[0].mxu0
        %v2145 = vpop.f32.mrb[0].mxu0
        %v2146 = vadd.f32 %v1985, %v2145
        %v2147 = vpop.f32.mrb[0].mxu0
        %2148 = vmatprep.mubr.bf16.mxu0 %v897
        %2149 = vmatmul.mubr.bf16.gmra.mrb[0].mxu0 %v1208
        %v2150 = vpop.f32.mrb[0].mxu0
        %v2151 = vadd.f32 %v1990, %v2150
        %v2152 = vpop.f32.mrb[0].mxu0
        %v2153 = vpop.f32.mrb[0].mxu0
        %v2154 = vadd.f32 %v1993, %v2153
        %v2155 = vpop.f32.mrb[0].mxu0
        %2156 = vmatprep.mubr.bf16.mxu0 %v898
        %2157 = vmatmul.mubr.bf16.gmra.mrb[0].mxu0 %v1211
        %v2158 = vpop.f32.mrb[0].mxu0
        %v2159 = vadd.f32 %v1998, %v2158
        %v2160 = vpop.f32.mrb[0].mxu0
        %v2161 = vpop.f32.mrb[0].mxu0
        %v2162 = vadd.f32 %v2001, %v2161
        %v2163 = vpop.f32.mrb[0].mxu0
        %2164 = vmatprep.mubr.bf16.mxu0 %v899
        %2165 = vmatmul.mubr.bf16.gmra.mrb[0].mxu0 %v1214
        %v2166 = vpop.f32.mrb[0].mxu0
        %v2167 = vadd.f32 %v2006, %v2166
        %v2168 = vpop.f32.mrb[0].mxu0
        %v2169 = vpop.f32.mrb[0].mxu0
        %v2170 = vadd.f32 %v2009, %v2169
        %v2171 = vpop.f32.mrb[0].mxu0
        %2172 = vmatprep.mubr.bf16.mxu0 %v900
        %2173 = vmatmul.mubr.bf16.gmra.mrb[0].mxu0 %v1217
        %v2174 = vpop.f32.mrb[0].mxu0
        %v2175 = vadd.f32 %v2014, %v2174
        %v2176 = vpop.f32.mrb[0].mxu0
        %v2177 = vpop.f32.mrb[0].mxu0
        %v2178 = vadd.f32 %v2017, %v2177
        %v2179 = vpop.f32.mrb[0].mxu0
        %2180 = vmatprep.mubr.bf16.mxu0 %v901
        %2181 = vmatmul.mubr.bf16.gmra.mrb[0].mxu0 %v1220
        %v2182 = vpop.f32.mrb[0].mxu0
        %v2183 = vadd.f32 %v2022, %v2182
        %v2184 = vpop.f32.mrb[0].mxu0
        %v2185 = vpop.f32.mrb[0].mxu0
        %v2186 = vadd.f32 %v2025, %v2185
        %v2187 = vpop.f32.mrb[0].mxu0
        %2188 = vmatprep.mubr.bf16.mxu0 %v1244
        %2189 = vmatmul.mubr.bf16.gmra.mrb[0].mxu0 %v1223
        %v2190 = vpop.f32.mrb[0].mxu0
        %v2191 = vadd.f32 %v2030, %v2190
        %v2192 = vpop.f32.mrb[0].mxu0
        %v2193 = vpop.f32.mrb[0].mxu0
        %v2194 = vadd.f32 %v2033, %v2193
        %v2195 = vpop.f32.mrb[0].mxu0
        %2196 = vdwg.mxu0
        %2197 = vmatprep.subr.bf16.mxu0 0
        %2198 = vmatpush1.bf16.msra.mxu0 %v1763
        %2199 = vmatprep.subr.bf16.mxu0 0
        %2200 = vmatpush1.bf16.msra.mxu0 %v1764
        %2201 = vmatprep.subr.bf16.mxu0 0
        %2202 = vmatpush1.bf16.msra.mxu0 %v1765
        %2203 = vmatprep.subr.bf16.mxu0 0
        %2204 = vmatpush1.bf16.msra.mxu0 %v1766
        %2205 = vmatprep.subr.bf16.mxu0 0
        %2206 = vmatpush1.bf16.msra.mxu0 %v1767
        %2207 = vmatprep.subr.bf16.mxu0 0
        %2208 = vmatpush1.bf16.msra.mxu0 %v1768
        %2209 = vmatprep.subr.bf16.mxu0 0
        %2210 = vmatpush1.bf16.msra.mxu0 %v1769
        %2211 = vmatprep.subr.bf16.mxu0 0
        %2212 = vmatpush1.bf16.msra.mxu0 %v1770
        %2213 = vmatprep.subr.bf16.mxu0 0
        %2214 = vmatpush1.bf16.msra.mxu0 %v1771
        %2215 = vmatprep.subr.bf16.mxu0 0
        %2216 = vmatpush1.bf16.msra.mxu0 %v1772
        %2217 = vmatprep.subr.bf16.mxu0 0
        %2218 = vmatpush1.bf16.msra.mxu0 %v1773
        %2219 = vmatprep.subr.bf16.mxu0 0
        %2220 = vmatpush1.bf16.msra.mxu0 %v1774
        %2221 = vmatprep.subr.bf16.mxu0 0
        %2222 = vmatpush1.bf16.msra.mxu0 %v1775
        %2223 = vmatprep.subr.bf16.mxu0 0
        %2224 = vmatpush1.bf16.msra.mxu0 %v1776
        %2225 = vmatprep.subr.bf16.mxu0 0
        %2226 = vmatpush1.bf16.msra.mxu0 %v1777
        %2227 = vmatprep.subr.bf16.mxu0 0
        %2228 = vmatpush1.bf16.msra.mxu0 %v1778
        %2229 = vmatprep.mubr.bf16.mxu0 %v1181
        %2230 = vmatmul.mubr.bf16.gmra.mrb[0].mxu0 %v990
        %v2231 = vpop.f32.mrb[0].mxu0
        %v2232 = vadd.f32 %v2071, %v2231
        %v2233 = vpop.f32.mrb[0].mxu0
        %v2234 = vpop.f32.mrb[0].mxu0
        %v2235 = vadd.f32 %v2074, %v2234
        %v2236 = vpop.f32.mrb[0].mxu0
        %2237 = vmatprep.mubr.bf16.mxu0 %v1184
        %2238 = vmatmul.mubr.bf16.gmra.mrb[0].mxu0 %v1002
        %v2239 = vpop.f32.mrb[0].mxu0
        %v2240 = vadd.f32 %v2079, %v2239
        %v2241 = vpop.f32.mrb[0].mxu0
        %v2242 = vpop.f32.mrb[0].mxu0
        %v2243 = vadd.f32 %v2082, %v2242
        %v2244 = vpop.f32.mrb[0].mxu0
        %2245 = vmatprep.mubr.bf16.mxu0 %v1187
        %2246 = vmatmul.mubr.bf16.gmra.mrb[0].mxu0 %v1014
        %v2247 = vpop.f32.mrb[0].mxu0
        %v2248 = vadd.f32 %v2087, %v2247
        %v2249 = vpop.f32.mrb[0].mxu0
        %v2250 = vpop.f32.mrb[0].mxu0
        %v2251 = vadd.f32 %v2090, %v2250
        %v2252 = vpop.f32.mrb[0].mxu0
        %2253 = vmatprep.mubr.bf16.mxu0 %v1190
        %2254 = vmatmul.mubr.bf16.gmra.mrb[0].mxu0 %v1026
        %v2255 = vpop.f32.mrb[0].mxu0
        %v2256 = vadd.f32 %v2095, %v2255
        %v2257 = vpop.f32.mrb[0].mxu0
        %v2258 = vpop.f32.mrb[0].mxu0
        %v2259 = vadd.f32 %v2098, %v2258
        %v2260 = vpop.f32.mrb[0].mxu0
        %2261 = vmatprep.mubr.bf16.mxu0 %v1193
        %2262 = vmatmul.mubr.bf16.gmra.mrb[0].mxu0 %v1038
        %v2263 = vpop.f32.mrb[0].mxu0
        %v2264 = vadd.f32 %v2103, %v2263
        %v2265 = vpop.f32.mrb[0].mxu0
        %v2266 = vpop.f32.mrb[0].mxu0
        %v2267 = vadd.f32 %v2106, %v2266
        %v2268 = vpop.f32.mrb[0].mxu0
        %2269 = vmatprep.mubr.bf16.mxu0 %v1196
        %2270 = vmatmul.mubr.bf16.gmra.mrb[0].mxu0 %v1050
        %v2271 = vpop.f32.mrb[0].mxu0
        %v2272 = vadd.f32 %v2111, %v2271
        %v2273 = vpop.f32.mrb[0].mxu0
        %v2274 = vpop.f32.mrb[0].mxu0
        %v2275 = vadd.f32 %v2114, %v2274
        %v2276 = vpop.f32.mrb[0].mxu0
        %2277 = vmatprep.mubr.bf16.mxu0 %v1199
        %2278 = vmatmul.mubr.bf16.gmra.mrb[0].mxu0 %v1062
        %v2279 = vpop.f32.mrb[0].mxu0
        %v2280 = vadd.f32 %v2119, %v2279
        %v2281 = vpop.f32.mrb[0].mxu0
        %v2282 = vpop.f32.mrb[0].mxu0
        %v2283 = vadd.f32 %v2122, %v2282
        %v2284 = vpop.f32.mrb[0].mxu0
        %2285 = vmatprep.mubr.bf16.mxu0 %v1202
        %2286 = vmatmul.mubr.bf16.gmra.mrb[0].mxu0 %v1074
        %v2287 = vpop.f32.mrb[0].mxu0
        %v2288 = vadd.f32 %v2127, %v2287
        %v2289 = vpop.f32.mrb[0].mxu0
        %v2290 = vpop.f32.mrb[0].mxu0
        %v2291 = vadd.f32 %v2130, %v2290
        %v2292 = vpop.f32.mrb[0].mxu0
        %2293 = vmatprep.mubr.bf16.mxu0 %v1205
        %2294 = vmatmul.mubr.bf16.gmra.mrb[0].mxu0 %v1086
        %v2295 = vpop.f32.mrb[0].mxu0
        %v2296 = vadd.f32 %v2135, %v2295
        %v2297 = vpop.f32.mrb[0].mxu0
        %v2298 = vpop.f32.mrb[0].mxu0
        %v2299 = vadd.f32 %v2138, %v2298
        %v2300 = vpop.f32.mrb[0].mxu0
        %2301 = vmatprep.mubr.bf16.mxu0 %v1208
        %2302 = vmatmul.mubr.bf16.gmra.mrb[0].mxu0 %v1098
        %v2303 = vpop.f32.mrb[0].mxu0
        %v2304 = vadd.f32 %v2143, %v2303
        %v2305 = vpop.f32.mrb[0].mxu0
        %v2306 = vpop.f32.mrb[0].mxu0
        %v2307 = vadd.f32 %v2146, %v2306
        %v2308 = vpop.f32.mrb[0].mxu0
        %2309 = vmatprep.mubr.bf16.mxu0 %v1211
        %2310 = vmatmul.mubr.bf16.gmra.mrb[0].mxu0 %v1110
        %v2311 = vpop.f32.mrb[0].mxu0
        %v2312 = vadd.f32 %v2151, %v2311
        %v2313 = vpop.f32.mrb[0].mxu0
        %v2314 = vpop.f32.mrb[0].mxu0
        %v2315 = vadd.f32 %v2154, %v2314
        %v2316 = vpop.f32.mrb[0].mxu0
        %2317 = vmatprep.mubr.bf16.mxu0 %v1214
        %2318 = vmatmul.mubr.bf16.gmra.mrb[0].mxu0 %v1122
        %v2319 = vpop.f32.mrb[0].mxu0
        %v2320 = vadd.f32 %v2159, %v2319
        %v2321 = vpop.f32.mrb[0].mxu0
        %v2322 = vpop.f32.mrb[0].mxu0
        %v2323 = vadd.f32 %v2162, %v2322
        %v2324 = vpop.f32.mrb[0].mxu0
        %2325 = vmatprep.mubr.bf16.mxu0 %v1217
        %2326 = vmatmul.mubr.bf16.gmra.mrb[0].mxu0 %v1134
        %v2327 = vpop.f32.mrb[0].mxu0
        %v2328 = vadd.f32 %v2167, %v2327
        %v2329 = vpop.f32.mrb[0].mxu0
        %v2330 = vpop.f32.mrb[0].mxu0
        %v2331 = vadd.f32 %v2170, %v2330
        %v2332 = vpop.f32.mrb[0].mxu0
        %2333 = vmatprep.mubr.bf16.mxu0 %v1220
        %2334 = vmatmul.mubr.bf16.gmra.mrb[0].mxu0 %v1146
        %v2335 = vpop.f32.mrb[0].mxu0
        %v2336 = vadd.f32 %v2175, %v2335
        %v2337 = vpop.f32.mrb[0].mxu0
        %v2338 = vpop.f32.mrb[0].mxu0
        %v2339 = vadd.f32 %v2178, %v2338
        %v2340 = vpop.f32.mrb[0].mxu0
        %2341 = vmatprep.mubr.bf16.mxu0 %v1223
        %2342 = vmatmul.mubr.bf16.gmra.mrb[0].mxu0 %v1158
        %v2343 = vpop.f32.mrb[0].mxu0
        %v2344 = vadd.f32 %v2183, %v2343
        %v2345 = vpop.f32.mrb[0].mxu0
        %v2346 = vpop.f32.mrb[0].mxu0
        %v2347 = vadd.f32 %v2186, %v2346
        %v2348 = vpop.f32.mrb[0].mxu0
        %2349 = vmatprep.mubr.bf16.mxu0 %v1264
        %2350 = vmatmul.mubr.bf16.gmra.mrb[0].mxu0 %v1260
        %v2351 = vpop.f32.mrb[0].mxu0
        %v2352 = vadd.f32 %v2191, %v2351
        %v2353 = vpop.f32.mrb[0].mxu0
        %v2354 = vpop.f32.mrb[0].mxu0
        %v2355 = vadd.f32 %v2194, %v2354
        %v2356 = vpop.f32.mrb[0].mxu0
        %2357 = vdwg.mxu0
        %2358 = vmatprep.subr.bf16.mxu0 0
        %2359 = vmatpush1.bf16.msra.mxu0 %v1779
        %2360 = vmatprep.subr.bf16.mxu0 0
        %2361 = vmatpush1.bf16.msra.mxu0 %v1780
        %2362 = vmatprep.subr.bf16.mxu0 0
        %2363 = vmatpush1.bf16.msra.mxu0 %v1781
        %2364 = vmatprep.subr.bf16.mxu0 0
        %2365 = vmatpush1.bf16.msra.mxu0 %v1782
        %2366 = vmatprep.subr.bf16.mxu0 0
        %2367 = vmatpush1.bf16.msra.mxu0 %v1783
        %2368 = vmatprep.subr.bf16.mxu0 0
        %2369 = vmatpush1.bf16.msra.mxu0 %v1784
        %2370 = vmatprep.subr.bf16.mxu0 0
        %2371 = vmatpush1.bf16.msra.mxu0 %v1785
        %2372 = vmatprep.subr.bf16.mxu0 0
        %2373 = vmatpush1.bf16.msra.mxu0 %v1786
        %2374 = vmatprep.subr.bf16.mxu0 0
        %2375 = vmatpush1.bf16.msra.mxu0 %v1787
        %2376 = vmatprep.subr.bf16.mxu0 0
        %2377 = vmatpush1.bf16.msra.mxu0 %v1788
        %2378 = vmatprep.subr.bf16.mxu0 0
        %2379 = vmatpush1.bf16.msra.mxu0 %v1789
        %2380 = vmatprep.subr.bf16.mxu0 0
        %2381 = vmatpush1.bf16.msra.mxu0 %v1790
        %2382 = vmatprep.subr.bf16.mxu0 0
        %2383 = vmatpush1.bf16.msra.mxu0 %v1791
        %2384 = vmatprep.subr.bf16.mxu0 0
        %2385 = vmatpush1.bf16.msra.mxu0 %v1792
        %2386 = vmatprep.subr.bf16.mxu0 0
        %2387 = vmatpush1.bf16.msra.mxu0 %v1793
        %2388 = vmatprep.subr.bf16.mxu0 0
        %2389 = vmatpush1.bf16.msra.mxu0 %v1794
        %2390 = vmatprep.mubr.bf16.mxu0 %v1002
        %2391 = vmatmul.mubr.bf16.gmra.mrb[0].mxu0 %v888
        %v2392 = vpop.f32.mrb[0].mxu0
        %v2393 = vadd.f32 %v2232, %v2392
        %v2394 = vpop.f32.mrb[0].mxu0
        %v2395 = vpop.f32.mrb[0].mxu0
        %v2396 = vadd.f32 %v2235, %v2395
        %v2397 = vpop.f32.mrb[0].mxu0
        %2398 = vmatprep.mubr.bf16.mxu0 %v1014
        %2399 = vmatmul.mubr.bf16.gmra.mrb[0].mxu0 %v889
        %v2400 = vpop.f32.mrb[0].mxu0
        %v2401 = vadd.f32 %v2240, %v2400
        %v2402 = vpop.f32.mrb[0].mxu0
        %v2403 = vpop.f32.mrb[0].mxu0
        %v2404 = vadd.f32 %v2243, %v2403
        %v2405 = vpop.f32.mrb[0].mxu0
        %2406 = vmatprep.mubr.bf16.mxu0 %v1026
        %2407 = vmatmul.mubr.bf16.gmra.mrb[0].mxu0 %v890
        %v2408 = vpop.f32.mrb[0].mxu0
        %v2409 = vadd.f32 %v2248, %v2408
        %v2410 = vpop.f32.mrb[0].mxu0
        %v2411 = vpop.f32.mrb[0].mxu0
        %v2412 = vadd.f32 %v2251, %v2411
        %v2413 = vpop.f32.mrb[0].mxu0
        %2414 = vmatprep.mubr.bf16.mxu0 %v1038
        %2415 = vmatmul.mubr.bf16.gmra.mrb[0].mxu0 %v891
        %v2416 = vpop.f32.mrb[0].mxu0
        %v2417 = vadd.f32 %v2256, %v2416
        %v2418 = vpop.f32.mrb[0].mxu0
        %v2419 = vpop.f32.mrb[0].mxu0
        %v2420 = vadd.f32 %v2259, %v2419
        %v2421 = vpop.f32.mrb[0].mxu0
        %2422 = vmatprep.mubr.bf16.mxu0 %v1050
        %2423 = vmatmul.mubr.bf16.gmra.mrb[0].mxu0 %v892
        %v2424 = vpop.f32.mrb[0].mxu0
        %v2425 = vadd.f32 %v2264, %v2424
        %v2426 = vpop.f32.mrb[0].mxu0
        %v2427 = vpop.f32.mrb[0].mxu0
        %v2428 = vadd.f32 %v2267, %v2427
        %v2429 = vpop.f32.mrb[0].mxu0
        %2430 = vmatprep.mubr.bf16.mxu0 %v1062
        %2431 = vmatmul.mubr.bf16.gmra.mrb[0].mxu0 %v893
        %v2432 = vpop.f32.mrb[0].mxu0
        %v2433 = vadd.f32 %v2272, %v2432
        %v2434 = vpop.f32.mrb[0].mxu0
        %v2435 = vpop.f32.mrb[0].mxu0
        %v2436 = vadd.f32 %v2275, %v2435
        %v2437 = vpop.f32.mrb[0].mxu0
        %2438 = vmatprep.mubr.bf16.mxu0 %v1074
        %2439 = vmatmul.mubr.bf16.gmra.mrb[0].mxu0 %v894
        %v2440 = vpop.f32.mrb[0].mxu0
        %v2441 = vadd.f32 %v2280, %v2440
        %v2442 = vpop.f32.mrb[0].mxu0
        %v2443 = vpop.f32.mrb[0].mxu0
        %v2444 = vadd.f32 %v2283, %v2443
        %v2445 = vpop.f32.mrb[0].mxu0
        %2446 = vmatprep.mubr.bf16.mxu0 %v1086
        %2447 = vmatmul.mubr.bf16.gmra.mrb[0].mxu0 %v895
        %v2448 = vpop.f32.mrb[0].mxu0
        %v2449 = vadd.f32 %v2288, %v2448
        %v2450 = vpop.f32.mrb[0].mxu0
        %v2451 = vpop.f32.mrb[0].mxu0
        %v2452 = vadd.f32 %v2291, %v2451
        %v2453 = vpop.f32.mrb[0].mxu0
        %2454 = vmatprep.mubr.bf16.mxu0 %v1098
        %2455 = vmatmul.mubr.bf16.gmra.mrb[0].mxu0 %v896
        %v2456 = vpop.f32.mrb[0].mxu0
        %v2457 = vadd.f32 %v2296, %v2456
        %v2458 = vpop.f32.mrb[0].mxu0
        %v2459 = vpop.f32.mrb[0].mxu0
        %v2460 = vadd.f32 %v2299, %v2459
        %v2461 = vpop.f32.mrb[0].mxu0
        %2462 = vmatprep.mubr.bf16.mxu0 %v1110
        %2463 = vmatmul.mubr.bf16.gmra.mrb[0].mxu0 %v897
        %v2464 = vpop.f32.mrb[0].mxu0
        %v2465 = vadd.f32 %v2304, %v2464
        %v2466 = vpop.f32.mrb[0].mxu0
        %v2467 = vpop.f32.mrb[0].mxu0
        %v2468 = vadd.f32 %v2307, %v2467
        %v2469 = vpop.f32.mrb[0].mxu0
        %2470 = vmatprep.mubr.bf16.mxu0 %v1122
        %2471 = vmatmul.mubr.bf16.gmra.mrb[0].mxu0 %v898
        %v2472 = vpop.f32.mrb[0].mxu0
        %v2473 = vadd.f32 %v2312, %v2472
        %v2474 = vpop.f32.mrb[0].mxu0
        %v2475 = vpop.f32.mrb[0].mxu0
        %v2476 = vadd.f32 %v2315, %v2475
        %v2477 = vpop.f32.mrb[0].mxu0
        %2478 = vmatprep.mubr.bf16.mxu0 %v1134
        %2479 = vmatmul.mubr.bf16.gmra.mrb[0].mxu0 %v899
        %v2480 = vpop.f32.mrb[0].mxu0
        %v2481 = vadd.f32 %v2320, %v2480
        %v2482 = vpop.f32.mrb[0].mxu0
        %v2483 = vpop.f32.mrb[0].mxu0
        %v2484 = vadd.f32 %v2323, %v2483
        %v2485 = vpop.f32.mrb[0].mxu0
        %2486 = vmatprep.mubr.bf16.mxu0 %v1146
        %2487 = vmatmul.mubr.bf16.gmra.mrb[0].mxu0 %v900
        %v2488 = vpop.f32.mrb[0].mxu0
        %v2489 = vadd.f32 %v2328, %v2488
        %v2490 = vpop.f32.mrb[0].mxu0
        %v2491 = vpop.f32.mrb[0].mxu0
        %v2492 = vadd.f32 %v2331, %v2491
        %v2493 = vpop.f32.mrb[0].mxu0
        %2494 = vmatprep.mubr.bf16.mxu0 %v1158
        %2495 = vmatmul.mubr.bf16.gmra.mrb[0].mxu0 %v901
        %v2496 = vpop.f32.mrb[0].mxu0
        %v2497 = vadd.f32 %v2336, %v2496
        %v2498 = vpop.f32.mrb[0].mxu0
        %v2499 = vpop.f32.mrb[0].mxu0
        %v2500 = vadd.f32 %v2339, %v2499
        %v2501 = vpop.f32.mrb[0].mxu0
        %2502 = vmatprep.mubr.bf16.mxu0 %v1260
        %2503 = vmatmul.mubr.bf16.gmra.mrb[0].mxu0 %v1244
        %v2504 = vpop.f32.mrb[0].mxu0
        %v2505 = vadd.f32 %v2344, %v2504
        %v2506 = vpop.f32.mrb[0].mxu0
        %v2507 = vpop.f32.mrb[0].mxu0
        %v2508 = vadd.f32 %v2347, %v2507
        %v2509 = vpop.f32.mrb[0].mxu0
        %2510 = vmatprep.mubr.bf16.mxu0 %v1286
        %2511 = vmatmul.mubr.bf16.gmra.mrb[0].mxu0 %v1270
        %v2512 = vpop.f32.mrb[0].mxu0
        %v2513 = vadd.f32 %v2352, %v2512
        %v2514 = vpop.f32.mrb[0].mxu0
        %v2515 = vpop.f32.mrb[0].mxu0
        %v2516 = vadd.f32 %v2355, %v2515
        %v2517 = vpop.f32.mrb[0].mxu0
        %2518 = vdwg.mxu0
        %2519 = vmatprep.subr.bf16.mxu0 0
        %2520 = vmatpush1.bf16.msra.mxu0 %v1795
        %2521 = vmatprep.subr.bf16.mxu0 0
        %2522 = vmatpush1.bf16.msra.mxu0 %v1796
        %2523 = vmatprep.subr.bf16.mxu0 0
        %2524 = vmatpush1.bf16.msra.mxu0 %v1797
        %2525 = vmatprep.subr.bf16.mxu0 0
        %2526 = vmatpush1.bf16.msra.mxu0 %v1798
        %2527 = vmatprep.subr.bf16.mxu0 0
        %2528 = vmatpush1.bf16.msra.mxu0 %v1799
        %2529 = vmatprep.subr.bf16.mxu0 0
        %2530 = vmatpush1.bf16.msra.mxu0 %v1800
        %2531 = vmatprep.subr.bf16.mxu0 0
        %2532 = vmatpush1.bf16.msra.mxu0 %v1801
        %2533 = vmatprep.subr.bf16.mxu0 0
        %2534 = vmatpush1.bf16.msra.mxu0 %v1802
        %2535 = vmatprep.subr.bf16.mxu0 0
        %2536 = vmatpush1.bf16.msra.mxu0 0
        %2537 = vmatprep.subr.bf16.mxu0 0
        %2538 = vmatpush1.bf16.msra.mxu0 0
        %2539 = vmatprep.subr.bf16.mxu0 0
        %2540 = vmatpush1.bf16.msra.mxu0 0
        %2541 = vmatprep.subr.bf16.mxu0 0
        %2542 = vmatpush1.bf16.msra.mxu0 0
        %2543 = vmatprep.subr.bf16.mxu0 0
        %2544 = vmatpush1.bf16.msra.mxu0 0
        %2545 = vmatprep.subr.bf16.mxu0 0
        %2546 = vmatpush1.bf16.msra.mxu0 0
        %2547 = vmatprep.subr.bf16.mxu0 0
        %2548 = vmatpush1.bf16.msra.mxu0 0
        %2549 = vmatprep.subr.bf16.mxu0 0
        %2550 = vmatpush1.bf16.msra.mxu0 0
        %2551 = vmatprep.mubr.bf16.mxu0 0
        %2552 = vmatmul.mubr.bf16.gmra.mrb[0].mxu0 %v1184
        %v2553 = vpop.f32.mrb[0].mxu0
        %v2554 = vadd.f32 %v2393, %v2553
        %v2555 = vpop.f32.mrb[0].mxu0
        %v2556 = vpop.f32.mrb[0].mxu0
        %v2557 = vadd.f32 %v2396, %v2556
        %v2558 = vpop.f32.mrb[0].mxu0
        %2559 = vmatprep.mubr.bf16.mxu0 0
        %2560 = vmatmul.mubr.bf16.gmra.mrb[0].mxu0 %v1187
        %v2561 = vpop.f32.mrb[0].mxu0
        %v2562 = vadd.f32 %v2401, %v2561
        %v2563 = vpop.f32.mrb[0].mxu0
        %v2564 = vpop.f32.mrb[0].mxu0
        %v2565 = vadd.f32 %v2404, %v2564
        %v2566 = vpop.f32.mrb[0].mxu0
        %2567 = vmatprep.mubr.bf16.mxu0 0
        %2568 = vmatmul.mubr.bf16.gmra.mrb[0].mxu0 %v1190
        %v2569 = vpop.f32.mrb[0].mxu0
        %v2570 = vadd.f32 %v2409, %v2569
        %v2571 = vpop.f32.mrb[0].mxu0
        %v2572 = vpop.f32.mrb[0].mxu0
        %v2573 = vadd.f32 %v2412, %v2572
        %v2574 = vpop.f32.mrb[0].mxu0
        %2575 = vmatprep.mubr.bf16.mxu0 0
        %2576 = vmatmul.mubr.bf16.gmra.mrb[0].mxu0 %v1193
        %v2577 = vpop.f32.mrb[0].mxu0
        %v2578 = vadd.f32 %v2417, %v2577
        %v2579 = vpop.f32.mrb[0].mxu0
        %v2580 = vpop.f32.mrb[0].mxu0
        %v2581 = vadd.f32 %v2420, %v2580
        %v2582 = vpop.f32.mrb[0].mxu0
        %2583 = vmatprep.mubr.bf16.mxu0 0
        %2584 = vmatmul.mubr.bf16.gmra.mrb[0].mxu0 %v1196
        %v2585 = vpop.f32.mrb[0].mxu0
        %v2586 = vadd.f32 %v2425, %v2585
        %v2587 = vpop.f32.mrb[0].mxu0
        %v2588 = vpop.f32.mrb[0].mxu0
        %v2589 = vadd.f32 %v2428, %v2588
        %v2590 = vpop.f32.mrb[0].mxu0
        %2591 = vmatprep.mubr.bf16.mxu0 0
        %2592 = vmatmul.mubr.bf16.gmra.mrb[0].mxu0 %v1199
        %v2593 = vpop.f32.mrb[0].mxu0
        %v2594 = vadd.f32 %v2433, %v2593
        %v2595 = vpop.f32.mrb[0].mxu0
        %v2596 = vpop.f32.mrb[0].mxu0
        %v2597 = vadd.f32 %v2436, %v2596
        %v2598 = vpop.f32.mrb[0].mxu0
        %2599 = vmatprep.mubr.bf16.mxu0 0
        %2600 = vmatmul.mubr.bf16.gmra.mrb[0].mxu0 %v1202
        %v2601 = vpop.f32.mrb[0].mxu0
        %v2602 = vadd.f32 %v2441, %v2601
        %v2603 = vpop.f32.mrb[0].mxu0
        %v2604 = vpop.f32.mrb[0].mxu0
        %v2605 = vadd.f32 %v2444, %v2604
        %v2606 = vpop.f32.mrb[0].mxu0
        %2607 = vmatprep.mubr.bf16.mxu0 0
        %2608 = vmatmul.mubr.bf16.gmra.mrb[0].mxu0 %v1205
        %v2609 = vpop.f32.mrb[0].mxu0
        %v2610 = vadd.f32 %v2449, %v2609
        %v2611 = vpop.f32.mrb[0].mxu0
        %v2612 = vpop.f32.mrb[0].mxu0
        %v2613 = vadd.f32 %v2452, %v2612
        %v2614 = vpop.f32.mrb[0].mxu0
        %2615 = vmatprep.mubr.bf16.mxu0 0
        %2616 = vmatmul.mubr.bf16.gmra.mrb[0].mxu0 %v1208
        %v2617 = vpop.f32.mrb[0].mxu0
        %v2618 = vadd.f32 %v2457, %v2617
        %v2619 = vpop.f32.mrb[0].mxu0
        %v2620 = vpop.f32.mrb[0].mxu0
        %v2621 = vadd.f32 %v2460, %v2620
        %v2622 = vpop.f32.mrb[0].mxu0
        %2623 = vmatprep.mubr.bf16.mxu0 0
        %2624 = vmatmul.mubr.bf16.gmra.mrb[0].mxu0 %v1211
        %v2625 = vpop.f32.mrb[0].mxu0
        %v2626 = vadd.f32 %v2465, %v2625
        %v2627 = vpop.f32.mrb[0].mxu0
        %v2628 = vpop.f32.mrb[0].mxu0
        %v2629 = vadd.f32 %v2468, %v2628
        %v2630 = vpop.f32.mrb[0].mxu0
        %2631 = vmatprep.mubr.bf16.mxu0 0
        %2632 = vmatmul.mubr.bf16.gmra.mrb[0].mxu0 %v1214
        %v2633 = vpop.f32.mrb[0].mxu0
        %v2634 = vadd.f32 %v2473, %v2633
        %v2635 = vpop.f32.mrb[0].mxu0
        %v2636 = vpop.f32.mrb[0].mxu0
        %v2637 = vadd.f32 %v2476, %v2636
        %v2638 = vpop.f32.mrb[0].mxu0
        %2639 = vmatprep.mubr.bf16.mxu0 0
        %2640 = vmatmul.mubr.bf16.gmra.mrb[0].mxu0 %v1217
        %v2641 = vpop.f32.mrb[0].mxu0
        %v2642 = vadd.f32 %v2481, %v2641
        %v2643 = vpop.f32.mrb[0].mxu0
        %v2644 = vpop.f32.mrb[0].mxu0
        %v2645 = vadd.f32 %v2484, %v2644
        %v2646 = vpop.f32.mrb[0].mxu0
        %2647 = vmatprep.mubr.bf16.mxu0 0
        %2648 = vmatmul.mubr.bf16.gmra.mrb[0].mxu0 %v1220
        %v2649 = vpop.f32.mrb[0].mxu0
        %v2650 = vadd.f32 %v2489, %v2649
        %v2651 = vpop.f32.mrb[0].mxu0
        %v2652 = vpop.f32.mrb[0].mxu0
        %v2653 = vadd.f32 %v2492, %v2652
        %v2654 = vpop.f32.mrb[0].mxu0
        %2655 = vmatprep.mubr.bf16.mxu0 0
        %2656 = vmatmul.mubr.bf16.gmra.mrb[0].mxu0 %v1223
        %v2657 = vpop.f32.mrb[0].mxu0
        %v2658 = vadd.f32 %v2497, %v2657
        %v2659 = vpop.f32.mrb[0].mxu0
        %v2660 = vpop.f32.mrb[0].mxu0
        %v2661 = vadd.f32 %v2500, %v2660
        %v2662 = vpop.f32.mrb[0].mxu0
        %2663 = vmatprep.mubr.bf16.mxu0 0
        %2664 = vmatmul.mubr.bf16.gmra.mrb[0].mxu0 %v1264
        %v2665 = vpop.f32.mrb[0].mxu0
        %v2666 = vadd.f32 %v2505, %v2665
        %v2667 = vpop.f32.mrb[0].mxu0
        %v2668 = vpop.f32.mrb[0].mxu0
        %v2669 = vadd.f32 %v2508, %v2668
        %v2670 = vpop.f32.mrb[0].mxu0
        %2671 = vmatprep.mubr.bf16.mxu0 0
        %2672 = vmatmul.mubr.bf16.gmra.mrb[0].mxu0 %v1290
        %v2673 = vpop.f32.mrb[0].mxu0
        %v2674 = vadd.f32 %v2513, %v2673
        %v2675 = vpop.f32.mrb[0].mxu0
        %v2676 = vpop.f32.mrb[0].mxu0
        %v2677 = vadd.f32 %v2516, %v2676
        %v2678 = vpop.f32.mrb[0].mxu0
        %2679 = vdwg.mxu0
        %v2680 = vmax.f32 %v2554, 0.0
        %v2681 = vmax.f32 %v2557, 0.0
        %v2682 = vmax.f32 %v2562, 0.0
        %v2683 = vmax.f32 %v2565, 0.0
        %v2684 = vmax.f32 %v2570, 0.0
        %v2685 = vmax.f32 %v2573, 0.0
        %v2686 = vmax.f32 %v2578, 0.0
        %v2687 = vmax.f32 %v2581, 0.0
        %v2688 = vmax.f32 %v2586, 0.0
        %v2689 = vmax.f32 %v2589, 0.0
        %v2690 = vmax.f32 %v2594, 0.0
        %v2691 = vmax.f32 %v2597, 0.0
        %v2692 = vmax.f32 %v2602, 0.0
        %v2693 = vmax.f32 %v2605, 0.0
        %v2694 = vmax.f32 %v2610, 0.0
        %v2695 = vmax.f32 %v2613, 0.0
        %v2696 = vmax.f32 %v2618, 0.0
        %v2697 = vmax.f32 %v2621, 0.0
        %v2698 = vmax.f32 %v2626, 0.0
        %v2699 = vmax.f32 %v2629, 0.0
        %v2700 = vmax.f32 %v2634, 0.0
        %v2701 = vmax.f32 %v2637, 0.0
        %v2702 = vmax.f32 %v2642, 0.0
        %v2703 = vmax.f32 %v2645, 0.0
        %v2704 = vmax.f32 %v2650, 0.0
        %v2705 = vmax.f32 %v2653, 0.0
        %v2706 = vmax.f32 %v2658, 0.0
        %v2707 = vmax.f32 %v2661, 0.0
        %v2708 = vmax.f32 %v2666, 0.0
        %v2709 = vmax.f32 %v2669, 0.0
        %v2710 = vmax.f32 %v2674, 0.0
        %v2711 = vmax.f32 %v2677, 0.0
        %2712 = vst [vmem:[#allocation3] sm:$0xf] 0
        %2713 = vst [vmem:[#allocation3 + $0x4] sm:$0xf] 0
        %2714 = vst [vmem:[#allocation3 + $0x8] sm:$0x1] 0
        %2715 = vst [vmem:[#allocation3 + $0xc] sm:$0xf] 0
        %2716 = vst [vmem:[#allocation3 + $0x10] sm:$0xf] 0
        %2717 = vst [vmem:[#allocation3 + $0x14] sm:$0x1] 0
        %2718 = vst [vmem:[#allocation3 + $0x18] sm:$0xf] 0
        %2719 = vst [vmem:[#allocation3 + $0x1c] sm:$0xf] 0
        %2720 = vst [vmem:[#allocation3 + $0x20] sm:$0x1] 0
        %2721 = vst [vmem:[#allocation3 + $0x24] sm:$0xf] 0
        %2722 = vst [vmem:[#allocation3 + $0x28] sm:$0xf] 0
        %2723 = vst [vmem:[#allocation3 + $0x2c] sm:$0x1] 0
        %2724 = vst [vmem:[#allocation3 + $0x30] sm:$0xf] 0
        %2725 = vst [vmem:[#allocation3 + $0x34] sm:$0xf] 0
        %2726 = vst [vmem:[#allocation3 + $0x38] sm:$0x1] 0
        %2727 = vst [vmem:[#allocation3 + $0x3c] sm:$0xf] 0
        %2728 = vst [vmem:[#allocation3 + $0x40] sm:$0xf] 0
        %2729 = vst [vmem:[#allocation3 + $0x44] sm:$0x1] 0
        %2730 = vst [vmem:[#allocation3 + $0x48] sm:$0xf] 0
        %2731 = vst [vmem:[#allocation3 + $0x4c] sm:$0xf] 0
        %2732 = vst [vmem:[#allocation3 + $0x50] sm:$0x1] 0
        %2733 = vst [vmem:[#allocation3 + $0x54] sm:$0xf] 0
        %2734 = vst [vmem:[#allocation3 + $0x58] sm:$0xf] 0
        %2735 = vst [vmem:[#allocation3 + $0x5c] sm:$0x1] 0
        %2736 = vst [vmem:[#allocation3 + $0x60] sm:$0xf] 0
        %2737 = vst [vmem:[#allocation3 + $0x64] sm:$0xf] 0
        %2738 = vst [vmem:[#allocation3 + $0x68] sm:$0x1] 0
        %2739 = vst [vmem:[#allocation3 + $0x6c] sm:$0xf] 0
        %2740 = vst [vmem:[#allocation3 + $0x70] sm:$0xf] 0
        %2741 = vst [vmem:[#allocation3 + $0x74] sm:$0x1] 0
        %2742 = vst [vmem:[#allocation3 + $0x78] sm:$0xf] 0
        %2743 = vst [vmem:[#allocation3 + $0x7c] sm:$0xf] 0
        %2744 = vst [vmem:[#allocation3 + $0x80] sm:$0x1] 0
        %2745 = vst [vmem:[#allocation3 + $0x84] sm:$0xf] 0
        %2746 = vst [vmem:[#allocation3 + $0x88] sm:$0xf] 0
        %2747 = vst [vmem:[#allocation3 + $0x8c] sm:$0x1] 0
        %2748 = vst [vmem:[#allocation3 + $0x90] sm:$0xf] 0
        %2749 = vst [vmem:[#allocation3 + $0x94] sm:$0xf] 0
        %2750 = vst [vmem:[#allocation3 + $0x98] sm:$0x1] 0
        %2751 = vst [vmem:[#allocation3 + $0x9c] sm:$0xf] 0
        %2752 = vst [vmem:[#allocation3 + $0xa0] sm:$0xf] 0
        %2753 = vst [vmem:[#allocation3 + $0xa4] sm:$0x1] 0
        %2754 = vst [vmem:[#allocation3 + $0xa8] sm:$0xf] 0
        %2755 = vst [vmem:[#allocation3 + $0xac] sm:$0xf] 0
        %2756 = vst [vmem:[#allocation3 + $0xb0] sm:$0x1] 0
        %2757 = vst [vmem:[#allocation3 + $0xb4] sm:$0xf] 0
        %2758 = vst [vmem:[#allocation3 + $0xb8] sm:$0xf] 0
        %2759 = vst [vmem:[#allocation3 + $0xbc] sm:$0x1] 0
        %2760 = vst [vmem:[#allocation3 + $0xc0] sm:$0xf] 0
        %2761 = vst [vmem:[#allocation3 + $0xc4] sm:$0xf] 0
        %2762 = vst [vmem:[#allocation3 + $0xc8] sm:$0x1] 0
        %2763 = vst [vmem:[#allocation3 + $0xcc] sm:$0xf] 0
        %2764 = vst [vmem:[#allocation3 + $0xd0] sm:$0xf] 0
        %2765 = vst [vmem:[#allocation3 + $0xd4] sm:$0x1] 0
        %v2766 = vpack.c.bf16 %v2681, %v2680
        %v2767 = vpack.c.bf16 %v2683, %v2682
        %v2768 = vpack.c.bf16 %v2685, %v2684
        %v2769 = vpack.c.bf16 %v2687, %v2686
        %v2770 = vpack.c.bf16 %v2689, %v2688
        %v2771 = vpack.c.bf16 %v2691, %v2690
        %v2772 = vpack.c.bf16 %v2693, %v2692
        %v2773 = vpack.c.bf16 %v2695, %v2694
        %v2774 = vpack.c.bf16 %v2697, %v2696
        %v2775 = vpack.c.bf16 %v2699, %v2698
        %v2776 = vpack.c.bf16 %v2701, %v2700
        %v2777 = vpack.c.bf16 %v2703, %v2702
        %v2778 = vpack.c.bf16 %v2705, %v2704
        %v2779 = vpack.c.bf16 %v2707, %v2706
        %v2780 = vpack.c.bf16 %v2709, %v2708
        %v2781 = vpack.c.bf16 %v2711, %v2710
        %v2798 = vunpack.c.l.b16 %v2766
        %v2799 = vunpack.c.h.b16 %v2766
        %v2800 = vunpack.c.l.b16 %v2767
        %v2801 = vunpack.c.h.b16 %v2767
        %v2802 = vunpack.c.l.b16 %v2768
        %v2803 = vunpack.c.h.b16 %v2768
        %v2804 = vunpack.c.l.b16 %v2769
        %v2805 = vunpack.c.h.b16 %v2769
        %v2806 = vunpack.c.l.b16 %v2770
        %v2807 = vunpack.c.h.b16 %v2770
        %v2808 = vunpack.c.l.b16 %v2771
        %v2809 = vunpack.c.h.b16 %v2771
        %v2810 = vunpack.c.l.b16 %v2772
        %v2811 = vunpack.c.h.b16 %v2772
        %v2812 = vunpack.c.l.b16 %v2773
        %v2813 = vunpack.c.h.b16 %v2773
        %v2814 = vunpack.c.l.b16 %v2774
        %v2815 = vunpack.c.h.b16 %v2774
        %v2816 = vunpack.c.l.b16 %v2775
        %v2817 = vunpack.c.h.b16 %v2775
        %v2818 = vunpack.c.l.b16 %v2776
        %v2819 = vunpack.c.h.b16 %v2776
        %v2820 = vunpack.c.l.b16 %v2777
        %v2821 = vunpack.c.h.b16 %v2777
        %v2822 = vunpack.c.l.b16 %v2778
        %v2823 = vunpack.c.h.b16 %v2778
        %v2824 = vunpack.c.l.b16 %v2779
        %v2825 = vunpack.c.h.b16 %v2779
        %v2826 = vunpack.c.l.b16 %v2780
        %v2827 = vunpack.c.h.b16 %v2780
        %v2828 = vunpack.c.l.b16 %v2781
        %v2829 = vunpack.c.h.b16 %v2781
        %v2830 = vpack.c.b16 %v2798, %v2798
        %v2831 = vpack.c.b16 %v2799, %v2799
        %v2832 = vpack.c.b16 %v2800, %v2800
        %v2833 = vpack.c.b16 %v2801, %v2801
        %v2834 = vpack.c.b16 %v2802, %v2802
        %v2835 = vpack.c.b16 %v2803, %v2803
        %v2836 = vpack.c.b16 %v2804, %v2804
        %v2837 = vpack.c.b16 %v2805, %v2805
        %v2838 = vpack.c.b16 %v2806, %v2806
        %v2839 = vpack.c.b16 %v2807, %v2807
        %v2840 = vpack.c.b16 %v2808, %v2808
        %v2841 = vpack.c.b16 %v2809, %v2809
        %v2842 = vpack.c.b16 %v2810, %v2810
        %v2843 = vpack.c.b16 %v2811, %v2811
        %v2844 = vpack.c.b16 %v2812, %v2812
        %v2845 = vpack.c.b16 %v2813, %v2813
        %v2846 = vpack.c.b16 %v2814, %v2814
        %v2847 = vpack.c.b16 %v2815, %v2815
        %v2848 = vpack.c.b16 %v2816, %v2816
        %v2849 = vpack.c.b16 %v2817, %v2817
        %v2850 = vpack.c.b16 %v2818, %v2818
        %v2851 = vpack.c.b16 %v2819, %v2819
        %v2852 = vpack.c.b16 %v2820, %v2820
        %v2853 = vpack.c.b16 %v2821, %v2821
        %v2854 = vpack.c.b16 %v2822, %v2822
        %v2855 = vpack.c.b16 %v2823, %v2823
        %v2856 = vpack.c.b16 %v2824, %v2824
        %v2857 = vpack.c.b16 %v2825, %v2825
        %v2858 = vpack.c.b16 %v2826, %v2826
        %v2859 = vpack.c.b16 %v2827, %v2827
        %v2860 = vpack.c.b16 %v2828, %v2828
        %v2861 = vpack.c.b16 %v2829, %v2829
        %v2863 = vshrl.u32 %v2830, 16
        %v2865 = vrot.slane %v2863, 7
        %v2866 = vshll.u32 %v2830, 16
        %v2868 = vor.u32 %v2865, %v2866
        %v2869 = vrot.slane %v2865, 4
        %v2871 = vshrl.u32 %v2831, 16
        %v2873 = vrot.slane %v2871, 7
        %v2874 = vshll.u32 %v2831, 16
        %v2876 = vor.u32 %v2873, %v2874
        %v2877 = vsel %vm329, %v2869, %v2876
        %v2878 = vrot.slane %v2873, 4
        %v2880 = vshrl.u32 %v2832, 16
        %v2882 = vrot.slane %v2880, 7
        %v2883 = vshll.u32 %v2832, 16
        %v2885 = vor.u32 %v2882, %v2883
        %v2886 = vrot.slane %v2882, 4
        %v2888 = vshrl.u32 %v2833, 16
        %v2890 = vrot.slane %v2888, 7
        %v2891 = vshll.u32 %v2833, 16
        %v2893 = vor.u32 %v2890, %v2891
        %v2894 = vsel %vm329, %v2886, %v2893
        %v2895 = vrot.slane %v2890, 4
        %v2897 = vshrl.u32 %v2834, 16
        %v2899 = vrot.slane %v2897, 7
        %v2900 = vshll.u32 %v2834, 16
        %v2902 = vor.u32 %v2899, %v2900
        %v2903 = vrot.slane %v2899, 4
        %v2905 = vshrl.u32 %v2835, 16
        %v2907 = vrot.slane %v2905, 7
        %v2908 = vshll.u32 %v2835, 16
        %v2910 = vor.u32 %v2907, %v2908
        %v2911 = vsel %vm329, %v2903, %v2910
        %v2912 = vrot.slane %v2907, 4
        %v2914 = vshrl.u32 %v2836, 16
        %v2916 = vrot.slane %v2914, 7
        %v2917 = vshll.u32 %v2836, 16
        %v2919 = vor.u32 %v2916, %v2917
        %v2920 = vrot.slane %v2916, 4
        %v2922 = vshrl.u32 %v2837, 16
        %v2924 = vrot.slane %v2922, 7
        %v2925 = vshll.u32 %v2837, 16
        %v2927 = vor.u32 %v2924, %v2925
        %v2928 = vsel %vm329, %v2920, %v2927
        %v2929 = vrot.slane %v2924, 4
        %v2931 = vshrl.u32 %v2838, 16
        %v2933 = vrot.slane %v2931, 7
        %v2934 = vshll.u32 %v2838, 16
        %v2936 = vor.u32 %v2933, %v2934
        %v2937 = vrot.slane %v2933, 4
        %v2939 = vshrl.u32 %v2839, 16
        %v2941 = vrot.slane %v2939, 7
        %v2942 = vshll.u32 %v2839, 16
        %v2944 = vor.u32 %v2941, %v2942
        %v2945 = vsel %vm329, %v2937, %v2944
        %v2946 = vrot.slane %v2941, 4
        %v2948 = vshrl.u32 %v2840, 16
        %v2950 = vrot.slane %v2948, 7
        %v2951 = vshll.u32 %v2840, 16
        %v2953 = vor.u32 %v2950, %v2951
        %v2954 = vrot.slane %v2950, 4
        %v2956 = vshrl.u32 %v2841, 16
        %v2958 = vrot.slane %v2956, 7
        %v2959 = vshll.u32 %v2841, 16
        %v2961 = vor.u32 %v2958, %v2959
        %v2962 = vsel %vm329, %v2954, %v2961
        %v2963 = vrot.slane %v2958, 4
        %v2965 = vshrl.u32 %v2842, 16
        %v2967 = vrot.slane %v2965, 7
        %v2968 = vshll.u32 %v2842, 16
        %v2970 = vor.u32 %v2967, %v2968
        %v2971 = vrot.slane %v2967, 4
        %v2973 = vshrl.u32 %v2843, 16
        %v2975 = vrot.slane %v2973, 7
        %v2976 = vshll.u32 %v2843, 16
        %v2978 = vor.u32 %v2975, %v2976
        %v2979 = vsel %vm329, %v2971, %v2978
        %v2980 = vrot.slane %v2975, 4
        %v2982 = vshrl.u32 %v2844, 16
        %v2984 = vrot.slane %v2982, 7
        %v2985 = vshll.u32 %v2844, 16
        %v2987 = vor.u32 %v2984, %v2985
        %v2988 = vrot.slane %v2984, 4
        %v2990 = vshrl.u32 %v2845, 16
        %v2992 = vrot.slane %v2990, 7
        %v2993 = vshll.u32 %v2845, 16
        %v2995 = vor.u32 %v2992, %v2993
        %v2996 = vsel %vm329, %v2988, %v2995
        %v2997 = vrot.slane %v2992, 4
        %v2999 = vshrl.u32 %v2846, 16
        %v3001 = vrot.slane %v2999, 7
        %v3002 = vshll.u32 %v2846, 16
        %v3004 = vor.u32 %v3001, %v3002
        %v3005 = vrot.slane %v3001, 4
        %v3007 = vshrl.u32 %v2847, 16
        %v3009 = vrot.slane %v3007, 7
        %v3010 = vshll.u32 %v2847, 16
        %v3012 = vor.u32 %v3009, %v3010
        %v3013 = vsel %vm329, %v3005, %v3012
        %v3014 = vrot.slane %v3009, 4
        %v3016 = vshrl.u32 %v2848, 16
        %v3018 = vrot.slane %v3016, 7
        %v3019 = vshll.u32 %v2848, 16
        %v3021 = vor.u32 %v3018, %v3019
        %v3022 = vrot.slane %v3018, 4
        %v3024 = vshrl.u32 %v2849, 16
        %v3026 = vrot.slane %v3024, 7
        %v3027 = vshll.u32 %v2849, 16
        %v3029 = vor.u32 %v3026, %v3027
        %v3030 = vsel %vm329, %v3022, %v3029
        %v3031 = vrot.slane %v3026, 4
        %v3033 = vshrl.u32 %v2850, 16
        %v3035 = vrot.slane %v3033, 7
        %v3036 = vshll.u32 %v2850, 16
        %v3038 = vor.u32 %v3035, %v3036
        %v3039 = vrot.slane %v3035, 4
        %v3041 = vshrl.u32 %v2851, 16
        %v3043 = vrot.slane %v3041, 7
        %v3044 = vshll.u32 %v2851, 16
        %v3046 = vor.u32 %v3043, %v3044
        %v3047 = vsel %vm329, %v3039, %v3046
        %v3048 = vrot.slane %v3043, 4
        %v3050 = vshrl.u32 %v2852, 16
        %v3052 = vrot.slane %v3050, 7
        %v3053 = vshll.u32 %v2852, 16
        %v3055 = vor.u32 %v3052, %v3053
        %v3056 = vrot.slane %v3052, 4
        %v3058 = vshrl.u32 %v2853, 16
        %v3060 = vrot.slane %v3058, 7
        %v3061 = vshll.u32 %v2853, 16
        %v3063 = vor.u32 %v3060, %v3061
        %v3064 = vsel %vm329, %v3056, %v3063
        %v3065 = vrot.slane %v3060, 4
        %v3067 = vshrl.u32 %v2854, 16
        %v3069 = vrot.slane %v3067, 7
        %v3070 = vshll.u32 %v2854, 16
        %v3072 = vor.u32 %v3069, %v3070
        %v3073 = vrot.slane %v3069, 4
        %v3075 = vshrl.u32 %v2855, 16
        %v3077 = vrot.slane %v3075, 7
        %v3078 = vshll.u32 %v2855, 16
        %v3080 = vor.u32 %v3077, %v3078
        %v3081 = vsel %vm329, %v3073, %v3080
        %v3082 = vrot.slane %v3077, 4
        %v3084 = vshrl.u32 %v2856, 16
        %v3086 = vrot.slane %v3084, 7
        %v3087 = vshll.u32 %v2856, 16
        %v3089 = vor.u32 %v3086, %v3087
        %v3090 = vrot.slane %v3086, 4
        %v3092 = vshrl.u32 %v2857, 16
        %v3094 = vrot.slane %v3092, 7
        %v3095 = vshll.u32 %v2857, 16
        %v3097 = vor.u32 %v3094, %v3095
        %v3098 = vsel %vm329, %v3090, %v3097
        %v3099 = vrot.slane %v3094, 4
        %v3101 = vshrl.u32 %v2858, 16
        %v3103 = vrot.slane %v3101, 7
        %v3104 = vshll.u32 %v2858, 16
        %v3106 = vor.u32 %v3103, %v3104
        %v3107 = vrot.slane %v3103, 4
        %v3109 = vshrl.u32 %v2859, 16
        %v3111 = vrot.slane %v3109, 7
        %v3112 = vshll.u32 %v2859, 16
        %v3114 = vor.u32 %v3111, %v3112
        %v3115 = vsel %vm329, %v3107, %v3114
        %v3116 = vrot.slane %v3111, 4
        %v3118 = vshrl.u32 %v2860, 16
        %v3120 = vrot.slane %v3118, 7
        %v3121 = vshll.u32 %v2860, 16
        %v3123 = vor.u32 %v3120, %v3121
        %v3124 = vrot.slane %v3120, 4
        %v3126 = vshrl.u32 %v2861, 16
        %v3128 = vrot.slane %v3126, 7
        %v3129 = vshll.u32 %v2861, 16
        %v3131 = vor.u32 %v3128, %v3129
        %v3132 = vsel %vm329, %v3124, %v3131
        %v3133 = vrot.slane %v3128, 4
        %s3182 = scalar_lea.vmem [#allocation3], 12
        %v3183 = vld [vmem:[%s3182] sm:$0xf]
        %v3184 = vsel %vm653, %v2868, %v3183
        %3185 = vst [vmem:[%s3182] sm:$0xf] %v3184
        %3186 = vst [vmem:[%s3182 + $0x4] sm:$0xf] %v2877
        %v3187 = vld [vmem:[%s3182 + $0x8] sm:$0x1]
        %v3188 = vsel %vm659, %v2878, %v3187
        %3189 = vst [vmem:[%s3182 + $0x8] sm:$0x1] %v3188
        %v3190 = vld [vmem:[%s3182 + $0xc] sm:$0xf]
        %v3191 = vsel %vm653, %v2885, %v3190
        %3192 = vst [vmem:[%s3182 + $0xc] sm:$0xf] %v3191
        %3193 = vst [vmem:[%s3182 + $0x10] sm:$0xf] %v2894
        %v3194 = vld [vmem:[%s3182 + $0x14] sm:$0x1]
        %v3195 = vsel %vm659, %v2895, %v3194
        %3196 = vst [vmem:[%s3182 + $0x14] sm:$0x1] %v3195
        %v3197 = vld [vmem:[%s3182 + $0x18] sm:$0xf]
        %v3198 = vsel %vm653, %v2902, %v3197
        %3199 = vst [vmem:[%s3182 + $0x18] sm:$0xf] %v3198
        %3200 = vst [vmem:[%s3182 + $0x1c] sm:$0xf] %v2911
        %v3201 = vld [vmem:[%s3182 + $0x20] sm:$0x1]
        %v3202 = vsel %vm659, %v2912, %v3201
        %3203 = vst [vmem:[%s3182 + $0x20] sm:$0x1] %v3202
        %v3204 = vld [vmem:[%s3182 + $0x24] sm:$0xf]
        %v3205 = vsel %vm653, %v2919, %v3204
        %3206 = vst [vmem:[%s3182 + $0x24] sm:$0xf] %v3205
        %3207 = vst [vmem:[%s3182 + $0x28] sm:$0xf] %v2928
        %v3208 = vld [vmem:[%s3182 + $0x2c] sm:$0x1]
        %v3209 = vsel %vm659, %v2929, %v3208
        %3210 = vst [vmem:[%s3182 + $0x2c] sm:$0x1] %v3209
        %v3211 = vld [vmem:[%s3182 + $0x30] sm:$0xf]
        %v3212 = vsel %vm653, %v2936, %v3211
        %3213 = vst [vmem:[%s3182 + $0x30] sm:$0xf] %v3212
        %3214 = vst [vmem:[%s3182 + $0x34] sm:$0xf] %v2945
        %v3215 = vld [vmem:[%s3182 + $0x38] sm:$0x1]
        %v3216 = vsel %vm659, %v2946, %v3215
        %3217 = vst [vmem:[%s3182 + $0x38] sm:$0x1] %v3216
        %v3218 = vld [vmem:[%s3182 + $0x3c] sm:$0xf]
        %v3219 = vsel %vm653, %v2953, %v3218
        %3220 = vst [vmem:[%s3182 + $0x3c] sm:$0xf] %v3219
        %3221 = vst [vmem:[%s3182 + $0x40] sm:$0xf] %v2962
        %v3222 = vld [vmem:[%s3182 + $0x44] sm:$0x1]
        %v3223 = vsel %vm659, %v2963, %v3222
        %3224 = vst [vmem:[%s3182 + $0x44] sm:$0x1] %v3223
        %v3225 = vld [vmem:[%s3182 + $0x48] sm:$0xf]
        %v3226 = vsel %vm653, %v2970, %v3225
        %3227 = vst [vmem:[%s3182 + $0x48] sm:$0xf] %v3226
        %3228 = vst [vmem:[%s3182 + $0x4c] sm:$0xf] %v2979
        %v3229 = vld [vmem:[%s3182 + $0x50] sm:$0x1]
        %v3230 = vsel %vm659, %v2980, %v3229
        %3231 = vst [vmem:[%s3182 + $0x50] sm:$0x1] %v3230
        %v3232 = vld [vmem:[%s3182 + $0x54] sm:$0xf]
        %v3233 = vsel %vm653, %v2987, %v3232
        %3234 = vst [vmem:[%s3182 + $0x54] sm:$0xf] %v3233
        %3235 = vst [vmem:[%s3182 + $0x58] sm:$0xf] %v2996
        %v3236 = vld [vmem:[%s3182 + $0x5c] sm:$0x1]
        %v3237 = vsel %vm659, %v2997, %v3236
        %3238 = vst [vmem:[%s3182 + $0x5c] sm:$0x1] %v3237
        %v3239 = vld [vmem:[%s3182 + $0x60] sm:$0xf]
        %v3240 = vsel %vm653, %v3004, %v3239
        %3241 = vst [vmem:[%s3182 + $0x60] sm:$0xf] %v3240
        %3242 = vst [vmem:[%s3182 + $0x64] sm:$0xf] %v3013
        %v3243 = vld [vmem:[%s3182 + $0x68] sm:$0x1]
        %v3244 = vsel %vm659, %v3014, %v3243
        %3245 = vst [vmem:[%s3182 + $0x68] sm:$0x1] %v3244
        %v3246 = vld [vmem:[%s3182 + $0x6c] sm:$0xf]
        %v3247 = vsel %vm653, %v3021, %v3246
        %3248 = vst [vmem:[%s3182 + $0x6c] sm:$0xf] %v3247
        %3249 = vst [vmem:[%s3182 + $0x70] sm:$0xf] %v3030
        %v3250 = vld [vmem:[%s3182 + $0x74] sm:$0x1]
        %v3251 = vsel %vm659, %v3031, %v3250
        %3252 = vst [vmem:[%s3182 + $0x74] sm:$0x1] %v3251
        %v3253 = vld [vmem:[%s3182 + $0x78] sm:$0xf]
        %v3254 = vsel %vm653, %v3038, %v3253
        %3255 = vst [vmem:[%s3182 + $0x78] sm:$0xf] %v3254
        %3256 = vst [vmem:[%s3182 + $0x7c] sm:$0xf] %v3047
        %v3257 = vld [vmem:[%s3182 + $0x80] sm:$0x1]
        %v3258 = vsel %vm659, %v3048, %v3257
        %3259 = vst [vmem:[%s3182 + $0x80] sm:$0x1] %v3258
        %v3260 = vld [vmem:[%s3182 + $0x84] sm:$0xf]
        %v3261 = vsel %vm653, %v3055, %v3260
        %3262 = vst [vmem:[%s3182 + $0x84] sm:$0xf] %v3261
        %3263 = vst [vmem:[%s3182 + $0x88] sm:$0xf] %v3064
        %v3264 = vld [vmem:[%s3182 + $0x8c] sm:$0x1]
        %v3265 = vsel %vm659, %v3065, %v3264
        %3266 = vst [vmem:[%s3182 + $0x8c] sm:$0x1] %v3265
        %v3267 = vld [vmem:[%s3182 + $0x90] sm:$0xf]
        %v3268 = vsel %vm653, %v3072, %v3267
        %3269 = vst [vmem:[%s3182 + $0x90] sm:$0xf] %v3268
        %3270 = vst [vmem:[%s3182 + $0x94] sm:$0xf] %v3081
        %v3271 = vld [vmem:[%s3182 + $0x98] sm:$0x1]
        %v3272 = vsel %vm659, %v3082, %v3271
        %3273 = vst [vmem:[%s3182 + $0x98] sm:$0x1] %v3272
        %v3274 = vld [vmem:[%s3182 + $0x9c] sm:$0xf]
        %v3275 = vsel %vm653, %v3089, %v3274
        %3276 = vst [vmem:[%s3182 + $0x9c] sm:$0xf] %v3275
        %3277 = vst [vmem:[%s3182 + $0xa0] sm:$0xf] %v3098
        %v3278 = vld [vmem:[%s3182 + $0xa4] sm:$0x1]
        %v3279 = vsel %vm659, %v3099, %v3278
        %3280 = vst [vmem:[%s3182 + $0xa4] sm:$0x1] %v3279
        %v3281 = vld [vmem:[%s3182 + $0xa8] sm:$0xf]
        %v3282 = vsel %vm653, %v3106, %v3281
        %3283 = vst [vmem:[%s3182 + $0xa8] sm:$0xf] %v3282
        %3284 = vst [vmem:[%s3182 + $0xac] sm:$0xf] %v3115
        %v3285 = vld [vmem:[%s3182 + $0xb0] sm:$0x1]
        %v3286 = vsel %vm659, %v3116, %v3285
        %3287 = vst [vmem:[%s3182 + $0xb0] sm:$0x1] %v3286
        %v3288 = vld [vmem:[%s3182 + $0xb4] sm:$0xf]
        %v3289 = vsel %vm653, %v3123, %v3288
        %3290 = vst [vmem:[%s3182 + $0xb4] sm:$0xf] %v3289
        %3291 = vst [vmem:[%s3182 + $0xb8] sm:$0xf] %v3132
        %v3292 = vld [vmem:[%s3182 + $0xbc] sm:$0x1]
        %v3293 = vsel %vm659, %v3133, %v3292
        %3294 = vst [vmem:[%s3182 + $0xbc] sm:$0x1] %v3293
        %v3295 = vld [vmem:[#allocation3] sm:$0xf]
        %v3296 = vld [vmem:[#allocation3 + $0x4] sm:$0xf]
        %v3297 = vld [vmem:[#allocation3 + $0x8] sm:$0x1]
        %v3298 = vld [vmem:[#allocation3 + $0xc] sm:$0xf]
        %v3299 = vld [vmem:[#allocation3 + $0x10] sm:$0xf]
        %v3300 = vld [vmem:[#allocation3 + $0x14] sm:$0x1]
        %v3301 = vld [vmem:[#allocation3 + $0x18] sm:$0xf]
        %v3302 = vld [vmem:[#allocation3 + $0x1c] sm:$0xf]
        %v3303 = vld [vmem:[#allocation3 + $0x20] sm:$0x1]
        %v3304 = vld [vmem:[#allocation3 + $0x24] sm:$0xf]
        %v3305 = vld [vmem:[#allocation3 + $0x28] sm:$0xf]
        %v3306 = vld [vmem:[#allocation3 + $0x2c] sm:$0x1]
        %v3307 = vld [vmem:[#allocation3 + $0x30] sm:$0xf]
        %v3308 = vld [vmem:[#allocation3 + $0x34] sm:$0xf]
        %v3309 = vld [vmem:[#allocation3 + $0x38] sm:$0x1]
        %v3310 = vld [vmem:[#allocation3 + $0x3c] sm:$0xf]
        %v3311 = vld [vmem:[#allocation3 + $0x40] sm:$0xf]
        %v3312 = vld [vmem:[#allocation3 + $0x44] sm:$0x1]
        %v3313 = vld [vmem:[#allocation3 + $0x48] sm:$0xf]
        %v3314 = vld [vmem:[#allocation3 + $0x4c] sm:$0xf]
        %v3315 = vld [vmem:[#allocation3 + $0x50] sm:$0x1]
        %v3316 = vld [vmem:[#allocation3 + $0x54] sm:$0xf]
        %v3317 = vld [vmem:[#allocation3 + $0x58] sm:$0xf]
        %v3318 = vld [vmem:[#allocation3 + $0x5c] sm:$0x1]
        %v3319 = vld [vmem:[#allocation3 + $0x60] sm:$0xf]
        %v3320 = vld [vmem:[#allocation3 + $0x64] sm:$0xf]
        %v3321 = vld [vmem:[#allocation3 + $0x68] sm:$0x1]
        %v3322 = vld [vmem:[#allocation3 + $0x6c] sm:$0xf]
        %v3323 = vld [vmem:[#allocation3 + $0x70] sm:$0xf]
        %v3324 = vld [vmem:[#allocation3 + $0x74] sm:$0x1]
        %v3325 = vld [vmem:[#allocation3 + $0x78] sm:$0xf]
        %v3326 = vld [vmem:[#allocation3 + $0x7c] sm:$0xf]
        %v3327 = vld [vmem:[#allocation3 + $0x80] sm:$0x1]
        %v3328 = vld [vmem:[#allocation3 + $0x84] sm:$0xf]
        %v3329 = vld [vmem:[#allocation3 + $0x88] sm:$0xf]
        %v3330 = vld [vmem:[#allocation3 + $0x8c] sm:$0x1]
        %v3331 = vld [vmem:[#allocation3 + $0x90] sm:$0xf]
        %v3332 = vld [vmem:[#allocation3 + $0x94] sm:$0xf]
        %v3333 = vld [vmem:[#allocation3 + $0x98] sm:$0x1]
        %v3334 = vld [vmem:[#allocation3 + $0x9c] sm:$0xf]
        %v3335 = vld [vmem:[#allocation3 + $0xa0] sm:$0xf]
        %v3336 = vld [vmem:[#allocation3 + $0xa4] sm:$0x1]
        %v3337 = vld [vmem:[#allocation3 + $0xa8] sm:$0xf]
        %v3338 = vld [vmem:[#allocation3 + $0xac] sm:$0xf]
        %v3339 = vld [vmem:[#allocation3 + $0xb0] sm:$0x1]
        %v3340 = vld [vmem:[#allocation3 + $0xb4] sm:$0xf]
        %v3341 = vld [vmem:[#allocation3 + $0xb8] sm:$0xf]
        %v3342 = vld [vmem:[#allocation3 + $0xbc] sm:$0x1]
        %v3343 = vld [vmem:[#allocation3 + $0xc0] sm:$0xf]
        %v3344 = vld [vmem:[#allocation3 + $0xc4] sm:$0xf]
        %v3345 = vld [vmem:[#allocation3 + $0xc8] sm:$0x1]
        %v3346 = vld [vmem:[#allocation3 + $0xcc] sm:$0xf]
        %v3347 = vld [vmem:[#allocation3 + $0xd0] sm:$0xf]
        %v3348 = vld [vmem:[#allocation3 + $0xd4] sm:$0x1]
        %v3381 = vunpack.c.l.b16 %v3295
        %v3382 = vunpack.c.l.b16 %v3296
        %v3383 = vunpack.c.l.b16 %v3298
        %v3384 = vunpack.c.l.b16 %v3299
        %v3385 = vunpack.c.l.b16 %v3301
        %v3386 = vunpack.c.l.b16 %v3302
        %v3387 = vunpack.c.l.b16 %v3304
        %v3388 = vunpack.c.l.b16 %v3305
        %v3389 = vunpack.c.l.b16 %v3307
        %v3390 = vunpack.c.l.b16 %v3308
        %v3391 = vunpack.c.l.b16 %v3310
        %v3392 = vunpack.c.l.b16 %v3311
        %v3393 = vunpack.c.l.b16 %v3313
        %v3394 = vunpack.c.l.b16 %v3314
        %v3395 = vunpack.c.l.b16 %v3316
        %v3396 = vunpack.c.l.b16 %v3317
        %v3397 = vunpack.c.l.b16 %v3319
        %v3398 = vunpack.c.l.b16 %v3320
        %v3399 = vunpack.c.l.b16 %v3322
        %v3400 = vunpack.c.l.b16 %v3323
        %v3401 = vunpack.c.l.b16 %v3325
        %v3402 = vunpack.c.l.b16 %v3326
        %v3403 = vunpack.c.l.b16 %v3328
        %v3404 = vunpack.c.l.b16 %v3329
        %v3405 = vunpack.c.l.b16 %v3331
        %v3406 = vunpack.c.l.b16 %v3332
        %v3407 = vunpack.c.l.b16 %v3334
        %v3408 = vunpack.c.l.b16 %v3335
        %v3409 = vunpack.c.l.b16 %v3337
        %v3410 = vunpack.c.l.b16 %v3338
        %v3411 = vunpack.c.l.b16 %v3340
        %v3412 = vunpack.c.l.b16 %v3341
        %v3413 = vpack.c.b16 %v3382, %v3381
        %v3414 = vpack.c.b16 %v3384, %v3383
        %v3415 = vpack.c.b16 %v3386, %v3385
        %v3416 = vpack.c.b16 %v3388, %v3387
        %v3417 = vpack.c.b16 %v3390, %v3389
        %v3418 = vpack.c.b16 %v3392, %v3391
        %v3419 = vpack.c.b16 %v3394, %v3393
        %v3420 = vpack.c.b16 %v3396, %v3395
        %v3421 = vpack.c.b16 %v3398, %v3397
        %v3422 = vpack.c.b16 %v3400, %v3399
        %v3423 = vpack.c.b16 %v3402, %v3401
        %v3424 = vpack.c.b16 %v3404, %v3403
        %v3425 = vpack.c.b16 %v3406, %v3405
        %v3426 = vpack.c.b16 %v3408, %v3407
        %v3427 = vpack.c.b16 %v3410, %v3409
        %v3428 = vpack.c.b16 %v3412, %v3411
        %v3461 = vunpack.c.l.b16 %v3297
        %v3462 = vunpack.c.l.b16 %v3300
        %v3463 = vunpack.c.l.b16 %v3303
        %v3464 = vunpack.c.l.b16 %v3306
        %v3465 = vunpack.c.l.b16 %v3309
        %v3466 = vunpack.c.l.b16 %v3312
        %v3467 = vunpack.c.l.b16 %v3315
        %v3468 = vunpack.c.l.b16 %v3318
        %v3469 = vunpack.c.l.b16 %v3321
        %v3470 = vunpack.c.l.b16 %v3324
        %v3471 = vunpack.c.l.b16 %v3327
        %v3472 = vunpack.c.l.b16 %v3330
        %v3473 = vunpack.c.l.b16 %v3333
        %v3474 = vunpack.c.l.b16 %v3336
        %v3475 = vunpack.c.l.b16 %v3339
        %v3476 = vunpack.c.l.b16 %v3342
        %v3477 = vpack.c.b16 %v3461, %v3461
        %v3478 = vpack.c.b16 %v3462, %v3462
        %v3479 = vpack.c.b16 %v3463, %v3463
        %v3480 = vpack.c.b16 %v3464, %v3464
        %v3481 = vpack.c.b16 %v3465, %v3465
        %v3482 = vpack.c.b16 %v3466, %v3466
        %v3483 = vpack.c.b16 %v3467, %v3467
        %v3484 = vpack.c.b16 %v3468, %v3468
        %v3485 = vpack.c.b16 %v3469, %v3469
        %v3486 = vpack.c.b16 %v3470, %v3470
        %v3487 = vpack.c.b16 %v3471, %v3471
        %v3488 = vpack.c.b16 %v3472, %v3472
        %v3489 = vpack.c.b16 %v3473, %v3473
        %v3490 = vpack.c.b16 %v3474, %v3474
        %v3491 = vpack.c.b16 %v3475, %v3475
        %v3492 = vpack.c.b16 %v3476, %v3476
        %v3494 = vshrl.u32 %v3413, 16
        %v3496 = vshll.u32 %v3413, 16
        %v3498 = vrot.slane %v3496, 1
        %v3499 = vor.u32 %v3494, %v3498
        %v3501 = vshll.u32 %v3477, 16
        %v3503 = vrot.slane %v3501, 1
        %v3504 = vsel %vm966, %v3499, %v3503
        %v3506 = vshrl.u32 %v3414, 16
        %v3508 = vshll.u32 %v3414, 16
        %v3510 = vrot.slane %v3508, 1
        %v3511 = vor.u32 %v3506, %v3510
        %v3513 = vshll.u32 %v3478, 16
        %v3515 = vrot.slane %v3513, 1
        %v3516 = vsel %vm966, %v3511, %v3515
        %v3518 = vshrl.u32 %v3415, 16
        %v3520 = vshll.u32 %v3415, 16
        %v3522 = vrot.slane %v3520, 1
        %v3523 = vor.u32 %v3518, %v3522
        %v3525 = vshll.u32 %v3479, 16
        %v3527 = vrot.slane %v3525, 1
        %v3528 = vsel %vm966, %v3523, %v3527
        %v3530 = vshrl.u32 %v3416, 16
        %v3532 = vshll.u32 %v3416, 16
        %v3534 = vrot.slane %v3532, 1
        %v3535 = vor.u32 %v3530, %v3534
        %v3537 = vshll.u32 %v3480, 16
        %v3539 = vrot.slane %v3537, 1
        %v3540 = vsel %vm966, %v3535, %v3539
        %v3542 = vshrl.u32 %v3417, 16
        %v3544 = vshll.u32 %v3417, 16
        %v3546 = vrot.slane %v3544, 1
        %v3547 = vor.u32 %v3542, %v3546
        %v3549 = vshll.u32 %v3481, 16
        %v3551 = vrot.slane %v3549, 1
        %v3552 = vsel %vm966, %v3547, %v3551
        %v3554 = vshrl.u32 %v3418, 16
        %v3556 = vshll.u32 %v3418, 16
        %v3558 = vrot.slane %v3556, 1
        %v3559 = vor.u32 %v3554, %v3558
        %v3561 = vshll.u32 %v3482, 16
        %v3563 = vrot.slane %v3561, 1
        %v3564 = vsel %vm966, %v3559, %v3563
        %v3566 = vshrl.u32 %v3419, 16
        %v3568 = vshll.u32 %v3419, 16
        %v3570 = vrot.slane %v3568, 1
        %v3571 = vor.u32 %v3566, %v3570
        %v3573 = vshll.u32 %v3483, 16
        %v3575 = vrot.slane %v3573, 1
        %v3576 = vsel %vm966, %v3571, %v3575
        %v3578 = vshrl.u32 %v3420, 16
        %v3580 = vshll.u32 %v3420, 16
        %v3582 = vrot.slane %v3580, 1
        %v3583 = vor.u32 %v3578, %v3582
        %v3585 = vshll.u32 %v3484, 16
        %v3587 = vrot.slane %v3585, 1
        %v3588 = vsel %vm966, %v3583, %v3587
        %v3590 = vshrl.u32 %v3421, 16
        %v3592 = vshll.u32 %v3421, 16
        %v3594 = vrot.slane %v3592, 1
        %v3595 = vor.u32 %v3590, %v3594
        %v3597 = vshll.u32 %v3485, 16
        %v3599 = vrot.slane %v3597, 1
        %v3600 = vsel %vm966, %v3595, %v3599
        %v3602 = vshrl.u32 %v3422, 16
        %v3604 = vshll.u32 %v3422, 16
        %v3606 = vrot.slane %v3604, 1
        %v3607 = vor.u32 %v3602, %v3606
        %v3609 = vshll.u32 %v3486, 16
        %v3611 = vrot.slane %v3609, 1
        %v3612 = vsel %vm966, %v3607, %v3611
        %v3614 = vshrl.u32 %v3423, 16
        %v3616 = vshll.u32 %v3423, 16
        %v3618 = vrot.slane %v3616, 1
        %v3619 = vor.u32 %v3614, %v3618
        %v3621 = vshll.u32 %v3487, 16
        %v3623 = vrot.slane %v3621, 1
        %v3624 = vsel %vm966, %v3619, %v3623
        %v3626 = vshrl.u32 %v3424, 16
        %v3628 = vshll.u32 %v3424, 16
        %v3630 = vrot.slane %v3628, 1
        %v3631 = vor.u32 %v3626, %v3630
        %v3633 = vshll.u32 %v3488, 16
        %v3635 = vrot.slane %v3633, 1
        %v3636 = vsel %vm966, %v3631, %v3635
        %v3638 = vshrl.u32 %v3425, 16
        %v3640 = vshll.u32 %v3425, 16
        %v3642 = vrot.slane %v3640, 1
        %v3643 = vor.u32 %v3638, %v3642
        %v3645 = vshll.u32 %v3489, 16
        %v3647 = vrot.slane %v3645, 1
        %v3648 = vsel %vm966, %v3643, %v3647
        %v3650 = vshrl.u32 %v3426, 16
        %v3652 = vshll.u32 %v3426, 16
        %v3654 = vrot.slane %v3652, 1
        %v3655 = vor.u32 %v3650, %v3654
        %v3657 = vshll.u32 %v3490, 16
        %v3659 = vrot.slane %v3657, 1
        %v3660 = vsel %vm966, %v3655, %v3659
        %v3662 = vshrl.u32 %v3427, 16
        %v3664 = vshll.u32 %v3427, 16
        %v3666 = vrot.slane %v3664, 1
        %v3667 = vor.u32 %v3662, %v3666
        %v3669 = vshll.u32 %v3491, 16
        %v3671 = vrot.slane %v3669, 1
        %v3672 = vsel %vm966, %v3667, %v3671
        %v3674 = vshrl.u32 %v3428, 16
        %v3676 = vshll.u32 %v3428, 16
        %v3678 = vrot.slane %v3676, 1
        %v3679 = vor.u32 %v3674, %v3678
        %v3681 = vshll.u32 %v3492, 16
        %v3683 = vrot.slane %v3681, 1
        %v3684 = vsel %vm966, %v3679, %v3683
        %v3701 = vrot.slane %v3413, 1
        %v3702 = vrot.slane %v3477, 1
        %v3703 = vsel %vm1175, %v3701, %v3702
        %v3704 = vrot.slane %v3414, 1
        %v3705 = vrot.slane %v3478, 1
        %v3706 = vsel %vm1175, %v3704, %v3705
        %v3707 = vrot.slane %v3415, 1
        %v3708 = vrot.slane %v3479, 1
        %v3709 = vsel %vm1175, %v3707, %v3708
        %v3710 = vrot.slane %v3416, 1
        %v3711 = vrot.slane %v3480, 1
        %v3712 = vsel %vm1175, %v3710, %v3711
        %v3713 = vrot.slane %v3417, 1
        %v3714 = vrot.slane %v3481, 1
        %v3715 = vsel %vm1175, %v3713, %v3714
        %v3716 = vrot.slane %v3418, 1
        %v3717 = vrot.slane %v3482, 1
        %v3718 = vsel %vm1175, %v3716, %v3717
        %v3719 = vrot.slane %v3419, 1
        %v3720 = vrot.slane %v3483, 1
        %v3721 = vsel %vm1175, %v3719, %v3720
        %v3722 = vrot.slane %v3420, 1
        %v3723 = vrot.slane %v3484, 1
        %v3724 = vsel %vm1175, %v3722, %v3723
        %v3725 = vrot.slane %v3421, 1
        %v3726 = vrot.slane %v3485, 1
        %v3727 = vsel %vm1175, %v3725, %v3726
        %v3728 = vrot.slane %v3422, 1
        %v3729 = vrot.slane %v3486, 1
        %v3730 = vsel %vm1175, %v3728, %v3729
        %v3731 = vrot.slane %v3423, 1
        %v3732 = vrot.slane %v3487, 1
        %v3733 = vsel %vm1175, %v3731, %v3732
        %v3734 = vrot.slane %v3424, 1
        %v3735 = vrot.slane %v3488, 1
        %v3736 = vsel %vm1175, %v3734, %v3735
        %v3737 = vrot.slane %v3425, 1
        %v3738 = vrot.slane %v3489, 1
        %v3739 = vsel %vm1175, %v3737, %v3738
        %v3740 = vrot.slane %v3426, 1
        %v3741 = vrot.slane %v3490, 1
        %v3742 = vsel %vm1175, %v3740, %v3741
        %v3743 = vrot.slane %v3427, 1
        %v3744 = vrot.slane %v3491, 1
        %v3745 = vsel %vm1175, %v3743, %v3744
        %v3746 = vrot.slane %v3428, 1
        %v3747 = vrot.slane %v3492, 1
        %v3748 = vsel %vm1175, %v3746, %v3747
        %v3767 = vunpack.c.l.b16 %v3343
        %v3768 = vunpack.c.l.b16 %v3344
        %v3769 = vpack.c.b16 %v3768, %v3767
        %v3772 = vunpack.c.l.b16 %v3345
        %v3773 = vpack.c.b16 %v3772, %v3772
        %v3775 = vshrl.u32 %v3769, 16
        %v3777 = vshll.u32 %v3769, 16
        %v3779 = vrot.slane %v3777, 1
        %v3780 = vor.u32 %v3775, %v3779
        %v3782 = vshll.u32 %v3773, 16
        %v3784 = vrot.slane %v3782, 1
        %v3785 = vsel %vm966, %v3780, %v3784
        %v3787 = vrot.slane %v3769, 1
        %v3788 = vrot.slane %v3773, 1
        %v3789 = vsel %vm1175, %v3787, %v3788
        %v3793 = vunpack.c.l.b16 %v3346
        %v3794 = vunpack.c.l.b16 %v3347
        %v3795 = vpack.c.b16 %v3794, %v3793
        %v3798 = vunpack.c.l.b16 %v3348
        %v3799 = vpack.c.b16 %v3798, %v3798
        %v3801 = vshrl.u32 %v3795, 16
        %v3803 = vshll.u32 %v3795, 16
        %v3805 = vrot.slane %v3803, 1
        %v3806 = vor.u32 %v3801, %v3805
        %v3808 = vshll.u32 %v3799, 16
        %v3810 = vrot.slane %v3808, 1
        %v3811 = vsel %vm966, %v3806, %v3810
        %v3813 = vrot.slane %v3795, 1
        %v3814 = vrot.slane %v3799, 1
        %v3815 = vsel %vm1175, %v3813, %v3814
        %v3817 = vld [vmem:[#allocation4] sm:$0xf]
        %v3818 = vld [vmem:[#allocation4 + $0x4] sm:$0xf]
        %v3819 = vld [vmem:[#allocation4 + $0x8] sm:$0xf]
        %v3820 = vld [vmem:[#allocation4 + $0xc] sm:$0xf]
        %v3821 = vld [vmem:[#allocation4 + $0x10] sm:$0xf]
        %v3822 = vld [vmem:[#allocation4 + $0x14] sm:$0xf]
        %v3823 = vld [vmem:[#allocation4 + $0x18] sm:$0xf]
        %v3824 = vld [vmem:[#allocation4 + $0x1c] sm:$0xf]
        %v3825 = vld [vmem:[#allocation4 + $0x20] sm:$0xf]
        %v3826 = vld [vmem:[#allocation4 + $0x24] sm:$0xf]
        %v3827 = vld [vmem:[#allocation4 + $0x28] sm:$0xf]
        %v3828 = vld [vmem:[#allocation4 + $0x2c] sm:$0xf]
        %v3829 = vld [vmem:[#allocation4 + $0x30] sm:$0xf]
        %v3830 = vld [vmem:[#allocation4 + $0x34] sm:$0xf]
        %v3831 = vld [vmem:[#allocation4 + $0x38] sm:$0xf]
        %v3832 = vld [vmem:[#allocation4 + $0x3c] sm:$0xf]
        %v3833 = vld [vmem:[#allocation4 + $0x40] sm:$0xf]
        %v3834 = vld [vmem:[#allocation4 + $0x44] sm:$0xf]
        %v3835 = vld [vmem:[#allocation4 + $0x48] sm:$0xf]
        %v3836 = vld [vmem:[#allocation4 + $0x4c] sm:$0xf]
        %v3837 = vld [vmem:[#allocation4 + $0x50] sm:$0xf]
        %v3838 = vld [vmem:[#allocation4 + $0x54] sm:$0xf]
        %v3839 = vld [vmem:[#allocation4 + $0x58] sm:$0xf]
        %v3840 = vld [vmem:[#allocation4 + $0x5c] sm:$0xf]
        %v3841 = vld [vmem:[#allocation4 + $0x60] sm:$0xf]
        %v3842 = vld [vmem:[#allocation4 + $0x64] sm:$0xf]
        %v3843 = vld [vmem:[#allocation4 + $0x68] sm:$0xf]
        %v3844 = vld [vmem:[#allocation4 + $0x6c] sm:$0xf]
        %v3845 = vld [vmem:[#allocation4 + $0x70] sm:$0xf]
        %v3846 = vld [vmem:[#allocation4 + $0x74] sm:$0xf]
        %v3847 = vld [vmem:[#allocation4 + $0x78] sm:$0xf]
        %v3848 = vld [vmem:[#allocation4 + $0x7c] sm:$0xf]
        %v3849 = vld [vmem:[#allocation4 + $0x80] sm:$0xf]
        %v3850 = vld [vmem:[#allocation4 + $0x84] sm:$0xf]
        %v3851 = vld [vmem:[#allocation4 + $0x88] sm:$0xf]
        %v3852 = vld [vmem:[#allocation4 + $0x8c] sm:$0xf]
        %v3853 = vld [vmem:[#allocation4 + $0x90] sm:$0xf]
        %v3854 = vld [vmem:[#allocation4 + $0x94] sm:$0xf]
        %v3855 = vld [vmem:[#allocation4 + $0x98] sm:$0xf]
        %v3856 = vld [vmem:[#allocation4 + $0x9c] sm:$0xf]
        %v3857 = vld [vmem:[#allocation4 + $0xa0] sm:$0xf]
        %v3858 = vld [vmem:[#allocation4 + $0xa4] sm:$0xf]
        %v3859 = vld [vmem:[#allocation4 + $0xa8] sm:$0xf]
        %v3860 = vld [vmem:[#allocation4 + $0xac] sm:$0xf]
        %v3861 = vld [vmem:[#allocation4 + $0xb0] sm:$0xf]
        %v3862 = vld [vmem:[#allocation4 + $0xb4] sm:$0xf]
        %v3863 = vld [vmem:[#allocation4 + $0xb8] sm:$0xf]
        %v3864 = vld [vmem:[#allocation4 + $0xbc] sm:$0xf]
        %v3865 = vld [vmem:[#allocation4 + $0xc0] sm:$0xf]
        %v3866 = vld [vmem:[#allocation4 + $0xc4] sm:$0xf]
        %v3867 = vld [vmem:[#allocation4 + $0xc8] sm:$0xf]
        %v3868 = vld [vmem:[#allocation4 + $0xcc] sm:$0xf]
        %v3869 = vld [vmem:[#allocation4 + $0xd0] sm:$0xf]
        %v3870 = vld [vmem:[#allocation4 + $0xd4] sm:$0xf]
        %v3871 = vld [vmem:[#allocation4 + $0xd8] sm:$0xf]
        %v3872 = vld [vmem:[#allocation4 + $0xdc] sm:$0xf]
        %v3873 = vld [vmem:[#allocation4 + $0xe0] sm:$0xf]
        %v3874 = vld [vmem:[#allocation4 + $0xe4] sm:$0xf]
        %v3875 = vld [vmem:[#allocation4 + $0xe8] sm:$0xf]
        %v3876 = vld [vmem:[#allocation4 + $0xec] sm:$0xf]
        %v3877 = vld [vmem:[#allocation4 + $0xf0] sm:$0xf]
        %v3878 = vld [vmem:[#allocation4 + $0xf4] sm:$0xf]
        %v3879 = vld [vmem:[#allocation4 + $0xf8] sm:$0xf]
        %v3880 = vld [vmem:[#allocation4 + $0xfc] sm:$0xf]
        %v3881 = vld [vmem:[#allocation4 + $0x100] sm:$0xf]
        %v3882 = vld [vmem:[#allocation4 + $0x104] sm:$0xf]
        %v3883 = vld [vmem:[#allocation4 + $0x108] sm:$0xf]
        %v3884 = vld [vmem:[#allocation4 + $0x10c] sm:$0xf]
        %v3885 = vld [vmem:[#allocation4 + $0x110] sm:$0xf]
        %v3886 = vld [vmem:[#allocation4 + $0x114] sm:$0xf]
        %v3887 = vld [vmem:[#allocation4 + $0x118] sm:$0xf]
        %v3888 = vld [vmem:[#allocation4 + $0x11c] sm:$0xf]
        %v3889 = vld [vmem:[#allocation4 + $0x120] sm:$0xf]
        %v3890 = vld [vmem:[#allocation4 + $0x124] sm:$0xf]
        %v3891 = vld [vmem:[#allocation4 + $0x128] sm:$0xf]
        %v3892 = vld [vmem:[#allocation4 + $0x12c] sm:$0xf]
        %v3893 = vld [vmem:[#allocation4 + $0x130] sm:$0xf]
        %v3894 = vld [vmem:[#allocation4 + $0x134] sm:$0xf]
        %v3895 = vld [vmem:[#allocation4 + $0x138] sm:$0xf]
        %v3896 = vld [vmem:[#allocation4 + $0x13c] sm:$0xf]
        %v3897 = vld [vmem:[#allocation4 + $0x140] sm:$0xf]
        %v3898 = vld [vmem:[#allocation4 + $0x144] sm:$0xf]
        %v3899 = vld [vmem:[#allocation4 + $0x148] sm:$0xf]
        %v3900 = vld [vmem:[#allocation4 + $0x14c] sm:$0xf]
        %v3901 = vld [vmem:[#allocation4 + $0x150] sm:$0xf]
        %v3902 = vld [vmem:[#allocation4 + $0x154] sm:$0xf]
        %v3903 = vld [vmem:[#allocation4 + $0x158] sm:$0xf]
        %v3904 = vld [vmem:[#allocation4 + $0x15c] sm:$0xf]
        %v3905 = vld [vmem:[#allocation4 + $0x160] sm:$0xf]
        %v3906 = vld [vmem:[#allocation4 + $0x164] sm:$0xf]
        %v3907 = vld [vmem:[#allocation4 + $0x168] sm:$0xf]
        %v3908 = vld [vmem:[#allocation4 + $0x16c] sm:$0xf]
        %v3909 = vld [vmem:[#allocation4 + $0x170] sm:$0xf]
        %v3910 = vld [vmem:[#allocation4 + $0x174] sm:$0xf]
        %v3911 = vld [vmem:[#allocation4 + $0x178] sm:$0xf]
        %v3912 = vld [vmem:[#allocation4 + $0x17c] sm:$0xf]
        %v3913 = vld [vmem:[#allocation4 + $0x180] sm:$0xf]
        %v3914 = vld [vmem:[#allocation4 + $0x184] sm:$0xf]
        %v3915 = vld [vmem:[#allocation4 + $0x188] sm:$0xf]
        %v3916 = vld [vmem:[#allocation4 + $0x18c] sm:$0xf]
        %v3917 = vld [vmem:[#allocation4 + $0x190] sm:$0xf]
        %v3918 = vld [vmem:[#allocation4 + $0x194] sm:$0xf]
        %v3919 = vld [vmem:[#allocation4 + $0x198] sm:$0xf]
        %v3920 = vld [vmem:[#allocation4 + $0x19c] sm:$0xf]
        %v3921 = vld [vmem:[#allocation4 + $0x1a0] sm:$0xf]
        %v3922 = vld [vmem:[#allocation4 + $0x1a4] sm:$0xf]
        %v3923 = vld [vmem:[#allocation4 + $0x1a8] sm:$0xf]
        %v3924 = vld [vmem:[#allocation4 + $0x1ac] sm:$0xf]
        %v3925 = vld [vmem:[#allocation4 + $0x1b0] sm:$0xf]
        %v3926 = vld [vmem:[#allocation4 + $0x1b4] sm:$0xf]
        %v3927 = vld [vmem:[#allocation4 + $0x1b8] sm:$0xf]
        %v3928 = vld [vmem:[#allocation4 + $0x1bc] sm:$0xf]
        %v3929 = vld [vmem:[#allocation4 + $0x1c0] sm:$0xf]
        %v3930 = vld [vmem:[#allocation4 + $0x1c4] sm:$0xf]
        %v3931 = vld [vmem:[#allocation4 + $0x1c8] sm:$0xf]
        %v3932 = vld [vmem:[#allocation4 + $0x1cc] sm:$0xf]
        %v3933 = vld [vmem:[#allocation4 + $0x1d0] sm:$0xf]
        %v3934 = vld [vmem:[#allocation4 + $0x1d4] sm:$0xf]
        %v3935 = vld [vmem:[#allocation4 + $0x1d8] sm:$0xf]
        %v3936 = vld [vmem:[#allocation4 + $0x1dc] sm:$0xf]
        %v3937 = vld [vmem:[#allocation4 + $0x1e0] sm:$0xf]
        %v3938 = vld [vmem:[#allocation4 + $0x1e4] sm:$0xf]
        %v3939 = vld [vmem:[#allocation4 + $0x1e8] sm:$0xf]
        %v3940 = vld [vmem:[#allocation4 + $0x1ec] sm:$0xf]
        %v3941 = vld [vmem:[#allocation4 + $0x1f0] sm:$0xf]
        %v3942 = vld [vmem:[#allocation4 + $0x1f4] sm:$0xf]
        %v3943 = vld [vmem:[#allocation4 + $0x1f8] sm:$0xf]
        %v3944 = vld [vmem:[#allocation4 + $0x1fc] sm:$0xf]
        %v3945 = vld [vmem:[#allocation4 + $0x200] sm:$0xf]
        %v3946 = vld [vmem:[#allocation4 + $0x204] sm:$0xf]
        %v3947 = vld [vmem:[#allocation4 + $0x208] sm:$0xf]
        %v3948 = vld [vmem:[#allocation4 + $0x20c] sm:$0xf]
        %v3949 = vld [vmem:[#allocation4 + $0x210] sm:$0xf]
        %v3950 = vld [vmem:[#allocation4 + $0x214] sm:$0xf]
        %v3951 = vld [vmem:[#allocation4 + $0x218] sm:$0xf]
        %v3952 = vld [vmem:[#allocation4 + $0x21c] sm:$0xf]
        %v3953 = vld [vmem:[#allocation4 + $0x220] sm:$0xf]
        %v3954 = vld [vmem:[#allocation4 + $0x224] sm:$0xf]
        %v3955 = vld [vmem:[#allocation4 + $0x228] sm:$0xf]
        %v3956 = vld [vmem:[#allocation4 + $0x22c] sm:$0xf]
        %v3957 = vld [vmem:[#allocation4 + $0x230] sm:$0xf]
        %v3958 = vld [vmem:[#allocation4 + $0x234] sm:$0xf]
        %v3959 = vld [vmem:[#allocation4 + $0x238] sm:$0xf]
        %v3960 = vld [vmem:[#allocation4 + $0x23c] sm:$0xf]
        %v3961 = vld [vmem:[%s4] sm:$0x1]
        %v3963 = vlaneseq
        %v3964 = vshrl.u32 %v3963, 7
        %v3965 = vsub.s32 0, %v3964
        %v3966 = vrot.slane %v3961, %v3965
        %v4112 = vunpack.c.l.b16 %v3817
        %v4113 = vunpack.c.l.b16 %v3818
        %v4114 = vunpack.c.l.b16 %v3819
        %v4115 = vunpack.c.l.b16 %v3820
        %v4116 = vunpack.c.l.b16 %v3821
        %v4117 = vunpack.c.l.b16 %v3822
        %v4118 = vunpack.c.l.b16 %v3823
        %v4119 = vunpack.c.l.b16 %v3824
        %v4120 = vunpack.c.l.b16 %v3825
        %v4121 = vunpack.c.l.b16 %v3826
        %v4122 = vunpack.c.l.b16 %v3827
        %v4123 = vunpack.c.l.b16 %v3828
        %v4124 = vunpack.c.l.b16 %v3829
        %v4125 = vunpack.c.l.b16 %v3830
        %v4126 = vunpack.c.l.b16 %v3831
        %v4127 = vunpack.c.l.b16 %v3832
        %v4128 = vunpack.c.l.b16 %v3833
        %v4129 = vunpack.c.l.b16 %v3834
        %v4130 = vunpack.c.l.b16 %v3835
        %v4131 = vunpack.c.l.b16 %v3836
        %v4132 = vunpack.c.l.b16 %v3837
        %v4133 = vunpack.c.l.b16 %v3838
        %v4134 = vunpack.c.l.b16 %v3839
        %v4135 = vunpack.c.l.b16 %v3840
        %v4136 = vunpack.c.l.b16 %v3841
        %v4137 = vunpack.c.l.b16 %v3842
        %v4138 = vunpack.c.l.b16 %v3843
        %v4139 = vunpack.c.l.b16 %v3844
        %v4140 = vunpack.c.l.b16 %v3845
        %v4141 = vunpack.c.l.b16 %v3846
        %v4142 = vunpack.c.l.b16 %v3847
        %v4143 = vunpack.c.l.b16 %v3848
        %v4144 = vunpack.c.l.b16 %v3849
        %v4145 = vunpack.c.l.b16 %v3850
        %v4146 = vunpack.c.l.b16 %v3851
        %v4147 = vunpack.c.l.b16 %v3852
        %v4148 = vunpack.c.l.b16 %v3853
        %v4149 = vunpack.c.l.b16 %v3854
        %v4150 = vunpack.c.l.b16 %v3855
        %v4151 = vunpack.c.l.b16 %v3856
        %v4152 = vunpack.c.l.b16 %v3857
        %v4153 = vunpack.c.l.b16 %v3858
        %v4154 = vunpack.c.l.b16 %v3859
        %v4155 = vunpack.c.l.b16 %v3860
        %v4156 = vunpack.c.l.b16 %v3861
        %v4157 = vunpack.c.l.b16 %v3862
        %v4158 = vunpack.c.l.b16 %v3863
        %v4159 = vunpack.c.l.b16 %v3864
        %v4160 = vunpack.c.l.b16 %v3865
        %v4161 = vunpack.c.l.b16 %v3866
        %v4162 = vunpack.c.l.b16 %v3867
        %v4163 = vunpack.c.l.b16 %v3868
        %v4164 = vunpack.c.l.b16 %v3869
        %v4165 = vunpack.c.l.b16 %v3870
        %v4166 = vunpack.c.l.b16 %v3871
        %v4167 = vunpack.c.l.b16 %v3872
        %v4168 = vunpack.c.l.b16 %v3873
        %v4169 = vunpack.c.l.b16 %v3874
        %v4170 = vunpack.c.l.b16 %v3875
        %v4171 = vunpack.c.l.b16 %v3876
        %v4172 = vunpack.c.l.b16 %v3877
        %v4173 = vunpack.c.l.b16 %v3878
        %v4174 = vunpack.c.l.b16 %v3879
        %v4175 = vunpack.c.l.b16 %v3880
        %v4176 = vunpack.c.l.b16 %v3881
        %v4177 = vunpack.c.l.b16 %v3882
        %v4178 = vunpack.c.l.b16 %v3883
        %v4179 = vunpack.c.l.b16 %v3884
        %v4180 = vunpack.c.l.b16 %v3885
        %v4181 = vunpack.c.l.b16 %v3886
        %v4182 = vunpack.c.l.b16 %v3887
        %v4183 = vunpack.c.l.b16 %v3888
        %v4184 = vunpack.c.l.b16 %v3889
        %v4185 = vunpack.c.l.b16 %v3890
        %v4186 = vunpack.c.l.b16 %v3891
        %v4187 = vunpack.c.l.b16 %v3892
        %v4188 = vunpack.c.l.b16 %v3893
        %v4189 = vunpack.c.l.b16 %v3894
        %v4190 = vunpack.c.l.b16 %v3895
        %v4191 = vunpack.c.l.b16 %v3896
        %v4192 = vunpack.c.l.b16 %v3897
        %v4193 = vunpack.c.l.b16 %v3898
        %v4194 = vunpack.c.l.b16 %v3899
        %v4195 = vunpack.c.l.b16 %v3900
        %v4196 = vunpack.c.l.b16 %v3901
        %v4197 = vunpack.c.l.b16 %v3902
        %v4198 = vunpack.c.l.b16 %v3903
        %v4199 = vunpack.c.l.b16 %v3904
        %v4200 = vunpack.c.l.b16 %v3905
        %v4201 = vunpack.c.l.b16 %v3906
        %v4202 = vunpack.c.l.b16 %v3907
        %v4203 = vunpack.c.l.b16 %v3908
        %v4204 = vunpack.c.l.b16 %v3909
        %v4205 = vunpack.c.l.b16 %v3910
        %v4206 = vunpack.c.l.b16 %v3911
        %v4207 = vunpack.c.l.b16 %v3912
        %v4208 = vunpack.c.l.b16 %v3913
        %v4209 = vunpack.c.l.b16 %v3914
        %v4210 = vunpack.c.l.b16 %v3915
        %v4211 = vunpack.c.l.b16 %v3916
        %v4212 = vunpack.c.l.b16 %v3917
        %v4213 = vunpack.c.l.b16 %v3918
        %v4214 = vunpack.c.l.b16 %v3919
        %v4215 = vunpack.c.l.b16 %v3920
        %v4216 = vunpack.c.l.b16 %v3921
        %v4217 = vunpack.c.l.b16 %v3922
        %v4218 = vunpack.c.l.b16 %v3923
        %v4219 = vunpack.c.l.b16 %v3924
        %v4220 = vunpack.c.l.b16 %v3925
        %v4221 = vunpack.c.l.b16 %v3926
        %v4222 = vunpack.c.l.b16 %v3927
        %v4223 = vunpack.c.l.b16 %v3928
        %v4224 = vunpack.c.l.b16 %v3929
        %v4225 = vunpack.c.l.b16 %v3930
        %v4226 = vunpack.c.l.b16 %v3931
        %v4227 = vunpack.c.l.b16 %v3932
        %v4228 = vunpack.c.l.b16 %v3933
        %v4229 = vunpack.c.l.b16 %v3934
        %v4230 = vunpack.c.l.b16 %v3935
        %v4231 = vunpack.c.l.b16 %v3936
        %v4232 = vunpack.c.l.b16 %v3937
        %v4233 = vunpack.c.l.b16 %v3938
        %v4234 = vunpack.c.l.b16 %v3939
        %v4235 = vunpack.c.l.b16 %v3940
        %v4236 = vunpack.c.l.b16 %v3941
        %v4237 = vunpack.c.l.b16 %v3942
        %v4238 = vunpack.c.l.b16 %v3943
        %v4239 = vunpack.c.l.b16 %v3944
        %v4240 = vunpack.c.l.b16 %v3945
        %v4241 = vunpack.c.l.b16 %v3946
        %v4242 = vunpack.c.l.b16 %v3947
        %v4243 = vunpack.c.l.b16 %v3948
        %v4244 = vunpack.c.l.b16 %v3949
        %v4245 = vunpack.c.l.b16 %v3950
        %v4246 = vunpack.c.l.b16 %v3951
        %v4247 = vunpack.c.l.b16 %v3952
        %v4248 = vunpack.c.l.b16 %v3953
        %v4249 = vunpack.c.l.b16 %v3954
        %v4250 = vunpack.c.l.b16 %v3955
        %v4251 = vunpack.c.l.b16 %v3956
        %v4252 = vunpack.c.l.b16 %v3957
        %v4253 = vunpack.c.l.b16 %v3958
        %v4254 = vunpack.c.l.b16 %v3959
        %v4255 = vunpack.c.l.b16 %v3960
        %v4256 = vpack.c.b16 %v4113, %v4112
        %v4257 = vpack.c.b16 %v4115, %v4114
        %v4258 = vpack.c.b16 %v4117, %v4116
        %v4259 = vpack.c.b16 %v4119, %v4118
        %v4260 = vpack.c.b16 %v4121, %v4120
        %v4261 = vpack.c.b16 %v4123, %v4122
        %v4262 = vpack.c.b16 %v4125, %v4124
        %v4263 = vpack.c.b16 %v4127, %v4126
        %v4264 = vpack.c.b16 %v4129, %v4128
        %v4265 = vpack.c.b16 %v4131, %v4130
        %v4266 = vpack.c.b16 %v4133, %v4132
        %v4267 = vpack.c.b16 %v4135, %v4134
        %v4268 = vpack.c.b16 %v4137, %v4136
        %v4269 = vpack.c.b16 %v4139, %v4138
        %v4270 = vpack.c.b16 %v4141, %v4140
        %v4271 = vpack.c.b16 %v4143, %v4142
        %v4272 = vpack.c.b16 %v4145, %v4144
        %v4273 = vpack.c.b16 %v4147, %v4146
        %v4274 = vpack.c.b16 %v4149, %v4148
        %v4275 = vpack.c.b16 %v4151, %v4150
        %v4276 = vpack.c.b16 %v4153, %v4152
        %v4277 = vpack.c.b16 %v4155, %v4154
        %v4278 = vpack.c.b16 %v4157, %v4156
        %v4279 = vpack.c.b16 %v4159, %v4158
        %v4280 = vpack.c.b16 %v4161, %v4160
        %v4281 = vpack.c.b16 %v4163, %v4162
        %v4282 = vpack.c.b16 %v4165, %v4164
        %v4283 = vpack.c.b16 %v4167, %v4166
        %v4284 = vpack.c.b16 %v4169, %v4168
        %v4285 = vpack.c.b16 %v4171, %v4170
        %v4286 = vpack.c.b16 %v4173, %v4172
        %v4287 = vpack.c.b16 %v4175, %v4174
        %v4288 = vpack.c.b16 %v4177, %v4176
        %v4289 = vpack.c.b16 %v4179, %v4178
        %v4290 = vpack.c.b16 %v4181, %v4180
        %v4291 = vpack.c.b16 %v4183, %v4182
        %v4292 = vpack.c.b16 %v4185, %v4184
        %v4293 = vpack.c.b16 %v4187, %v4186
        %v4294 = vpack.c.b16 %v4189, %v4188
        %v4295 = vpack.c.b16 %v4191, %v4190
        %v4296 = vpack.c.b16 %v4193, %v4192
        %v4297 = vpack.c.b16 %v4195, %v4194
        %v4298 = vpack.c.b16 %v4197, %v4196
        %v4299 = vpack.c.b16 %v4199, %v4198
        %v4300 = vpack.c.b16 %v4201, %v4200
        %v4301 = vpack.c.b16 %v4203, %v4202
        %v4302 = vpack.c.b16 %v4205, %v4204
        %v4303 = vpack.c.b16 %v4207, %v4206
        %v4304 = vpack.c.b16 %v4209, %v4208
        %v4305 = vpack.c.b16 %v4211, %v4210
        %v4306 = vpack.c.b16 %v4213, %v4212
        %v4307 = vpack.c.b16 %v4215, %v4214
        %v4308 = vpack.c.b16 %v4217, %v4216
        %v4309 = vpack.c.b16 %v4219, %v4218
        %v4310 = vpack.c.b16 %v4221, %v4220
        %v4311 = vpack.c.b16 %v4223, %v4222
        %v4312 = vpack.c.b16 %v4225, %v4224
        %v4313 = vpack.c.b16 %v4227, %v4226
        %v4314 = vpack.c.b16 %v4229, %v4228
        %v4315 = vpack.c.b16 %v4231, %v4230
        %v4316 = vpack.c.b16 %v4233, %v4232
        %v4317 = vpack.c.b16 %v4235, %v4234
        %v4318 = vpack.c.b16 %v4237, %v4236
        %v4319 = vpack.c.b16 %v4239, %v4238
        %v4320 = vpack.c.b16 %v4241, %v4240
        %v4321 = vpack.c.b16 %v4243, %v4242
        %v4322 = vpack.c.b16 %v4245, %v4244
        %v4323 = vpack.c.b16 %v4247, %v4246
        %v4324 = vpack.c.b16 %v4249, %v4248
        %v4325 = vpack.c.b16 %v4251, %v4250
        %v4326 = vpack.c.b16 %v4253, %v4252
        %v4327 = vpack.c.b16 %v4255, %v4254
        %4400 = vmatprep.subr.bf16.mxu0 0
        %4401 = vmatpush1.bf16.msra.mxu0 %v4256
        %4402 = vmatprep.subr.bf16.mxu0 0
        %4403 = vmatpush1.bf16.msra.mxu0 %v4257
        %4404 = vmatprep.subr.bf16.mxu0 0
        %4405 = vmatpush1.bf16.msra.mxu0 %v4258
        %4406 = vmatprep.subr.bf16.mxu0 0
        %4407 = vmatpush1.bf16.msra.mxu0 %v4259
        %4408 = vmatprep.subr.bf16.mxu0 0
        %4409 = vmatpush1.bf16.msra.mxu0 %v4260
        %4410 = vmatprep.subr.bf16.mxu0 0
        %4411 = vmatpush1.bf16.msra.mxu0 %v4261
        %4412 = vmatprep.subr.bf16.mxu0 0
        %4413 = vmatpush1.bf16.msra.mxu0 %v4262
        %4414 = vmatprep.subr.bf16.mxu0 0
        %4415 = vmatpush1.bf16.msra.mxu0 %v4263
        %4416 = vmatprep.subr.bf16.mxu0 0
        %4417 = vmatpush1.bf16.msra.mxu0 %v4264
        %4418 = vmatprep.subr.bf16.mxu0 0
        %4419 = vmatpush1.bf16.msra.mxu0 %v4265
        %4420 = vmatprep.subr.bf16.mxu0 0
        %4421 = vmatpush1.bf16.msra.mxu0 %v4266
        %4422 = vmatprep.subr.bf16.mxu0 0
        %4423 = vmatpush1.bf16.msra.mxu0 %v4267
        %4424 = vmatprep.subr.bf16.mxu0 0
        %4425 = vmatpush1.bf16.msra.mxu0 %v4268
        %4426 = vmatprep.subr.bf16.mxu0 0
        %4427 = vmatpush1.bf16.msra.mxu0 %v4269
        %4428 = vmatprep.subr.bf16.mxu0 0
        %4429 = vmatpush1.bf16.msra.mxu0 %v4270
        %4430 = vmatprep.subr.bf16.mxu0 0
        %4431 = vmatpush1.bf16.msra.mxu0 %v4271
        %4432 = vmatprep.mubr.bf16.mxu0 %v3504
        %4433 = vmatmul.mubr.bf16.gmra.mrb[0].mxu0 %v3413
        %v4434 = vpop.f32.mrb[0].mxu0
        %v4435 = vadd.f32 %v3966, %v4434
        %v4436 = vpop.f32.mrb[0].mxu0
        %v4437 = vpop.f32.mrb[0].mxu0
        %v4438 = vadd.f32 %v3966, %v4437
        %v4439 = vpop.f32.mrb[0].mxu0
        %4440 = vmatprep.mubr.bf16.mxu0 %v3516
        %4441 = vmatmul.mubr.bf16.gmra.mrb[0].mxu0 %v3414
        %v4442 = vpop.f32.mrb[0].mxu0
        %v4443 = vadd.f32 %v3966, %v4442
        %v4444 = vpop.f32.mrb[0].mxu0
        %v4445 = vpop.f32.mrb[0].mxu0
        %v4446 = vadd.f32 %v3966, %v4445
        %v4447 = vpop.f32.mrb[0].mxu0
        %4448 = vmatprep.mubr.bf16.mxu0 %v3528
        %4449 = vmatmul.mubr.bf16.gmra.mrb[0].mxu0 %v3415
        %v4450 = vpop.f32.mrb[0].mxu0
        %v4451 = vadd.f32 %v3966, %v4450
        %v4452 = vpop.f32.mrb[0].mxu0
        %v4453 = vpop.f32.mrb[0].mxu0
        %v4454 = vadd.f32 %v3966, %v4453
        %v4455 = vpop.f32.mrb[0].mxu0
        %4456 = vmatprep.mubr.bf16.mxu0 %v3540
        %4457 = vmatmul.mubr.bf16.gmra.mrb[0].mxu0 %v3416
        %v4458 = vpop.f32.mrb[0].mxu0
        %v4459 = vadd.f32 %v3966, %v4458
        %v4460 = vpop.f32.mrb[0].mxu0
        %v4461 = vpop.f32.mrb[0].mxu0
        %v4462 = vadd.f32 %v3966, %v4461
        %v4463 = vpop.f32.mrb[0].mxu0
        %4464 = vmatprep.mubr.bf16.mxu0 %v3552
        %4465 = vmatmul.mubr.bf16.gmra.mrb[0].mxu0 %v3417
        %v4466 = vpop.f32.mrb[0].mxu0
        %v4467 = vadd.f32 %v3966, %v4466
        %v4468 = vpop.f32.mrb[0].mxu0
        %v4469 = vpop.f32.mrb[0].mxu0
        %v4470 = vadd.f32 %v3966, %v4469
        %v4471 = vpop.f32.mrb[0].mxu0
        %4472 = vmatprep.mubr.bf16.mxu0 %v3564
        %4473 = vmatmul.mubr.bf16.gmra.mrb[0].mxu0 %v3418
        %v4474 = vpop.f32.mrb[0].mxu0
        %v4475 = vadd.f32 %v3966, %v4474
        %v4476 = vpop.f32.mrb[0].mxu0
        %v4477 = vpop.f32.mrb[0].mxu0
        %v4478 = vadd.f32 %v3966, %v4477
        %v4479 = vpop.f32.mrb[0].mxu0
        %4480 = vmatprep.mubr.bf16.mxu0 %v3576
        %4481 = vmatmul.mubr.bf16.gmra.mrb[0].mxu0 %v3419
        %v4482 = vpop.f32.mrb[0].mxu0
        %v4483 = vadd.f32 %v3966, %v4482
        %v4484 = vpop.f32.mrb[0].mxu0
        %v4485 = vpop.f32.mrb[0].mxu0
        %v4486 = vadd.f32 %v3966, %v4485
        %v4487 = vpop.f32.mrb[0].mxu0
        %4488 = vmatprep.mubr.bf16.mxu0 %v3588
        %4489 = vmatmul.mubr.bf16.gmra.mrb[0].mxu0 %v3420
        %v4490 = vpop.f32.mrb[0].mxu0
        %v4491 = vadd.f32 %v3966, %v4490
        %v4492 = vpop.f32.mrb[0].mxu0
        %v4493 = vpop.f32.mrb[0].mxu0
        %v4494 = vadd.f32 %v3966, %v4493
        %v4495 = vpop.f32.mrb[0].mxu0
        %4496 = vmatprep.mubr.bf16.mxu0 %v3600
        %4497 = vmatmul.mubr.bf16.gmra.mrb[0].mxu0 %v3421
        %v4498 = vpop.f32.mrb[0].mxu0
        %v4499 = vadd.f32 %v3966, %v4498
        %v4500 = vpop.f32.mrb[0].mxu0
        %v4501 = vpop.f32.mrb[0].mxu0
        %v4502 = vadd.f32 %v3966, %v4501
        %v4503 = vpop.f32.mrb[0].mxu0
        %4504 = vmatprep.mubr.bf16.mxu0 %v3612
        %4505 = vmatmul.mubr.bf16.gmra.mrb[0].mxu0 %v3422
        %v4506 = vpop.f32.mrb[0].mxu0
        %v4507 = vadd.f32 %v3966, %v4506
        %v4508 = vpop.f32.mrb[0].mxu0
        %v4509 = vpop.f32.mrb[0].mxu0
        %v4510 = vadd.f32 %v3966, %v4509
        %v4511 = vpop.f32.mrb[0].mxu0
        %4512 = vmatprep.mubr.bf16.mxu0 %v3624
        %4513 = vmatmul.mubr.bf16.gmra.mrb[0].mxu0 %v3423
        %v4514 = vpop.f32.mrb[0].mxu0
        %v4515 = vadd.f32 %v3966, %v4514
        %v4516 = vpop.f32.mrb[0].mxu0
        %v4517 = vpop.f32.mrb[0].mxu0
        %v4518 = vadd.f32 %v3966, %v4517
        %v4519 = vpop.f32.mrb[0].mxu0
        %4520 = vmatprep.mubr.bf16.mxu0 %v3636
        %4521 = vmatmul.mubr.bf16.gmra.mrb[0].mxu0 %v3424
        %v4522 = vpop.f32.mrb[0].mxu0
        %v4523 = vadd.f32 %v3966, %v4522
        %v4524 = vpop.f32.mrb[0].mxu0
        %v4525 = vpop.f32.mrb[0].mxu0
        %v4526 = vadd.f32 %v3966, %v4525
        %v4527 = vpop.f32.mrb[0].mxu0
        %4528 = vmatprep.mubr.bf16.mxu0 %v3648
        %4529 = vmatmul.mubr.bf16.gmra.mrb[0].mxu0 %v3425
        %v4530 = vpop.f32.mrb[0].mxu0
        %v4531 = vadd.f32 %v3966, %v4530
        %v4532 = vpop.f32.mrb[0].mxu0
        %v4533 = vpop.f32.mrb[0].mxu0
        %v4534 = vadd.f32 %v3966, %v4533
        %v4535 = vpop.f32.mrb[0].mxu0
        %4536 = vmatprep.mubr.bf16.mxu0 %v3660
        %4537 = vmatmul.mubr.bf16.gmra.mrb[0].mxu0 %v3426
        %v4538 = vpop.f32.mrb[0].mxu0
        %v4539 = vadd.f32 %v3966, %v4538
        %v4540 = vpop.f32.mrb[0].mxu0
        %v4541 = vpop.f32.mrb[0].mxu0
        %v4542 = vadd.f32 %v3966, %v4541
        %v4543 = vpop.f32.mrb[0].mxu0
        %4544 = vmatprep.mubr.bf16.mxu0 %v3672
        %4545 = vmatmul.mubr.bf16.gmra.mrb[0].mxu0 %v3427
        %v4546 = vpop.f32.mrb[0].mxu0
        %v4547 = vadd.f32 %v3966, %v4546
        %v4548 = vpop.f32.mrb[0].mxu0
        %v4549 = vpop.f32.mrb[0].mxu0
        %v4550 = vadd.f32 %v3966, %v4549
        %v4551 = vpop.f32.mrb[0].mxu0
        %4552 = vmatprep.mubr.bf16.mxu0 %v3684
        %4553 = vmatmul.mubr.bf16.gmra.mrb[0].mxu0 %v3428
        %v4554 = vpop.f32.mrb[0].mxu0
        %v4555 = vadd.f32 %v3966, %v4554
        %v4556 = vpop.f32.mrb[0].mxu0
        %v4557 = vpop.f32.mrb[0].mxu0
        %v4558 = vadd.f32 %v3966, %v4557
        %v4559 = vpop.f32.mrb[0].mxu0
        %4560 = vdwg.mxu0
        %4561 = vmatprep.subr.bf16.mxu0 0
        %4562 = vmatpush1.bf16.msra.mxu0 %v4272
        %4563 = vmatprep.subr.bf16.mxu0 0
        %4564 = vmatpush1.bf16.msra.mxu0 %v4273
        %4565 = vmatprep.subr.bf16.mxu0 0
        %4566 = vmatpush1.bf16.msra.mxu0 %v4274
        %4567 = vmatprep.subr.bf16.mxu0 0
        %4568 = vmatpush1.bf16.msra.mxu0 %v4275
        %4569 = vmatprep.subr.bf16.mxu0 0
        %4570 = vmatpush1.bf16.msra.mxu0 %v4276
        %4571 = vmatprep.subr.bf16.mxu0 0
        %4572 = vmatpush1.bf16.msra.mxu0 %v4277
        %4573 = vmatprep.subr.bf16.mxu0 0
        %4574 = vmatpush1.bf16.msra.mxu0 %v4278
        %4575 = vmatprep.subr.bf16.mxu0 0
        %4576 = vmatpush1.bf16.msra.mxu0 %v4279
        %4577 = vmatprep.subr.bf16.mxu0 0
        %4578 = vmatpush1.bf16.msra.mxu0 %v4280
        %4579 = vmatprep.subr.bf16.mxu0 0
        %4580 = vmatpush1.bf16.msra.mxu0 %v4281
        %4581 = vmatprep.subr.bf16.mxu0 0
        %4582 = vmatpush1.bf16.msra.mxu0 %v4282
        %4583 = vmatprep.subr.bf16.mxu0 0
        %4584 = vmatpush1.bf16.msra.mxu0 %v4283
        %4585 = vmatprep.subr.bf16.mxu0 0
        %4586 = vmatpush1.bf16.msra.mxu0 %v4284
        %4587 = vmatprep.subr.bf16.mxu0 0
        %4588 = vmatpush1.bf16.msra.mxu0 %v4285
        %4589 = vmatprep.subr.bf16.mxu0 0
        %4590 = vmatpush1.bf16.msra.mxu0 %v4286
        %4591 = vmatprep.subr.bf16.mxu0 0
        %4592 = vmatpush1.bf16.msra.mxu0 %v4287
        %4593 = vmatprep.mubr.bf16.mxu0 %v3414
        %4594 = vmatmul.mubr.bf16.gmra.mrb[0].mxu0 %v3703
        %v4595 = vpop.f32.mrb[0].mxu0
        %v4596 = vadd.f32 %v4435, %v4595
        %v4597 = vpop.f32.mrb[0].mxu0
        %v4598 = vpop.f32.mrb[0].mxu0
        %v4599 = vadd.f32 %v4438, %v4598
        %v4600 = vpop.f32.mrb[0].mxu0
        %4601 = vmatprep.mubr.bf16.mxu0 %v3415
        %4602 = vmatmul.mubr.bf16.gmra.mrb[0].mxu0 %v3706
        %v4603 = vpop.f32.mrb[0].mxu0
        %v4604 = vadd.f32 %v4443, %v4603
        %v4605 = vpop.f32.mrb[0].mxu0
        %v4606 = vpop.f32.mrb[0].mxu0
        %v4607 = vadd.f32 %v4446, %v4606
        %v4608 = vpop.f32.mrb[0].mxu0
        %4609 = vmatprep.mubr.bf16.mxu0 %v3416
        %4610 = vmatmul.mubr.bf16.gmra.mrb[0].mxu0 %v3709
        %v4611 = vpop.f32.mrb[0].mxu0
        %v4612 = vadd.f32 %v4451, %v4611
        %v4613 = vpop.f32.mrb[0].mxu0
        %v4614 = vpop.f32.mrb[0].mxu0
        %v4615 = vadd.f32 %v4454, %v4614
        %v4616 = vpop.f32.mrb[0].mxu0
        %4617 = vmatprep.mubr.bf16.mxu0 %v3417
        %4618 = vmatmul.mubr.bf16.gmra.mrb[0].mxu0 %v3712
        %v4619 = vpop.f32.mrb[0].mxu0
        %v4620 = vadd.f32 %v4459, %v4619
        %v4621 = vpop.f32.mrb[0].mxu0
        %v4622 = vpop.f32.mrb[0].mxu0
        %v4623 = vadd.f32 %v4462, %v4622
        %v4624 = vpop.f32.mrb[0].mxu0
        %4625 = vmatprep.mubr.bf16.mxu0 %v3418
        %4626 = vmatmul.mubr.bf16.gmra.mrb[0].mxu0 %v3715
        %v4627 = vpop.f32.mrb[0].mxu0
        %v4628 = vadd.f32 %v4467, %v4627
        %v4629 = vpop.f32.mrb[0].mxu0
        %v4630 = vpop.f32.mrb[0].mxu0
        %v4631 = vadd.f32 %v4470, %v4630
        %v4632 = vpop.f32.mrb[0].mxu0
        %4633 = vmatprep.mubr.bf16.mxu0 %v3419
        %4634 = vmatmul.mubr.bf16.gmra.mrb[0].mxu0 %v3718
        %v4635 = vpop.f32.mrb[0].mxu0
        %v4636 = vadd.f32 %v4475, %v4635
        %v4637 = vpop.f32.mrb[0].mxu0
        %v4638 = vpop.f32.mrb[0].mxu0
        %v4639 = vadd.f32 %v4478, %v4638
        %v4640 = vpop.f32.mrb[0].mxu0
        %4641 = vmatprep.mubr.bf16.mxu0 %v3420
        %4642 = vmatmul.mubr.bf16.gmra.mrb[0].mxu0 %v3721
        %v4643 = vpop.f32.mrb[0].mxu0
        %v4644 = vadd.f32 %v4483, %v4643
        %v4645 = vpop.f32.mrb[0].mxu0
        %v4646 = vpop.f32.mrb[0].mxu0
        %v4647 = vadd.f32 %v4486, %v4646
        %v4648 = vpop.f32.mrb[0].mxu0
        %4649 = vmatprep.mubr.bf16.mxu0 %v3421
        %4650 = vmatmul.mubr.bf16.gmra.mrb[0].mxu0 %v3724
        %v4651 = vpop.f32.mrb[0].mxu0
        %v4652 = vadd.f32 %v4491, %v4651
        %v4653 = vpop.f32.mrb[0].mxu0
        %v4654 = vpop.f32.mrb[0].mxu0
        %v4655 = vadd.f32 %v4494, %v4654
        %v4656 = vpop.f32.mrb[0].mxu0
        %4657 = vmatprep.mubr.bf16.mxu0 %v3422
        %4658 = vmatmul.mubr.bf16.gmra.mrb[0].mxu0 %v3727
        %v4659 = vpop.f32.mrb[0].mxu0
        %v4660 = vadd.f32 %v4499, %v4659
        %v4661 = vpop.f32.mrb[0].mxu0
        %v4662 = vpop.f32.mrb[0].mxu0
        %v4663 = vadd.f32 %v4502, %v4662
        %v4664 = vpop.f32.mrb[0].mxu0
        %4665 = vmatprep.mubr.bf16.mxu0 %v3423
        %4666 = vmatmul.mubr.bf16.gmra.mrb[0].mxu0 %v3730
        %v4667 = vpop.f32.mrb[0].mxu0
        %v4668 = vadd.f32 %v4507, %v4667
        %v4669 = vpop.f32.mrb[0].mxu0
        %v4670 = vpop.f32.mrb[0].mxu0
        %v4671 = vadd.f32 %v4510, %v4670
        %v4672 = vpop.f32.mrb[0].mxu0
        %4673 = vmatprep.mubr.bf16.mxu0 %v3424
        %4674 = vmatmul.mubr.bf16.gmra.mrb[0].mxu0 %v3733
        %v4675 = vpop.f32.mrb[0].mxu0
        %v4676 = vadd.f32 %v4515, %v4675
        %v4677 = vpop.f32.mrb[0].mxu0
        %v4678 = vpop.f32.mrb[0].mxu0
        %v4679 = vadd.f32 %v4518, %v4678
        %v4680 = vpop.f32.mrb[0].mxu0
        %4681 = vmatprep.mubr.bf16.mxu0 %v3425
        %4682 = vmatmul.mubr.bf16.gmra.mrb[0].mxu0 %v3736
        %v4683 = vpop.f32.mrb[0].mxu0
        %v4684 = vadd.f32 %v4523, %v4683
        %v4685 = vpop.f32.mrb[0].mxu0
        %v4686 = vpop.f32.mrb[0].mxu0
        %v4687 = vadd.f32 %v4526, %v4686
        %v4688 = vpop.f32.mrb[0].mxu0
        %4689 = vmatprep.mubr.bf16.mxu0 %v3426
        %4690 = vmatmul.mubr.bf16.gmra.mrb[0].mxu0 %v3739
        %v4691 = vpop.f32.mrb[0].mxu0
        %v4692 = vadd.f32 %v4531, %v4691
        %v4693 = vpop.f32.mrb[0].mxu0
        %v4694 = vpop.f32.mrb[0].mxu0
        %v4695 = vadd.f32 %v4534, %v4694
        %v4696 = vpop.f32.mrb[0].mxu0
        %4697 = vmatprep.mubr.bf16.mxu0 %v3427
        %4698 = vmatmul.mubr.bf16.gmra.mrb[0].mxu0 %v3742
        %v4699 = vpop.f32.mrb[0].mxu0
        %v4700 = vadd.f32 %v4539, %v4699
        %v4701 = vpop.f32.mrb[0].mxu0
        %v4702 = vpop.f32.mrb[0].mxu0
        %v4703 = vadd.f32 %v4542, %v4702
        %v4704 = vpop.f32.mrb[0].mxu0
        %4705 = vmatprep.mubr.bf16.mxu0 %v3428
        %4706 = vmatmul.mubr.bf16.gmra.mrb[0].mxu0 %v3745
        %v4707 = vpop.f32.mrb[0].mxu0
        %v4708 = vadd.f32 %v4547, %v4707
        %v4709 = vpop.f32.mrb[0].mxu0
        %v4710 = vpop.f32.mrb[0].mxu0
        %v4711 = vadd.f32 %v4550, %v4710
        %v4712 = vpop.f32.mrb[0].mxu0
        %4713 = vmatprep.mubr.bf16.mxu0 %v3769
        %4714 = vmatmul.mubr.bf16.gmra.mrb[0].mxu0 %v3748
        %v4715 = vpop.f32.mrb[0].mxu0
        %v4716 = vadd.f32 %v4555, %v4715
        %v4717 = vpop.f32.mrb[0].mxu0
        %v4718 = vpop.f32.mrb[0].mxu0
        %v4719 = vadd.f32 %v4558, %v4718
        %v4720 = vpop.f32.mrb[0].mxu0
        %4721 = vdwg.mxu0
        %4722 = vmatprep.subr.bf16.mxu0 0
        %4723 = vmatpush1.bf16.msra.mxu0 %v4288
        %4724 = vmatprep.subr.bf16.mxu0 0
        %4725 = vmatpush1.bf16.msra.mxu0 %v4289
        %4726 = vmatprep.subr.bf16.mxu0 0
        %4727 = vmatpush1.bf16.msra.mxu0 %v4290
        %4728 = vmatprep.subr.bf16.mxu0 0
        %4729 = vmatpush1.bf16.msra.mxu0 %v4291
        %4730 = vmatprep.subr.bf16.mxu0 0
        %4731 = vmatpush1.bf16.msra.mxu0 %v4292
        %4732 = vmatprep.subr.bf16.mxu0 0
        %4733 = vmatpush1.bf16.msra.mxu0 %v4293
        %4734 = vmatprep.subr.bf16.mxu0 0
        %4735 = vmatpush1.bf16.msra.mxu0 %v4294
        %4736 = vmatprep.subr.bf16.mxu0 0
        %4737 = vmatpush1.bf16.msra.mxu0 %v4295
        %4738 = vmatprep.subr.bf16.mxu0 0
        %4739 = vmatpush1.bf16.msra.mxu0 %v4296
        %4740 = vmatprep.subr.bf16.mxu0 0
        %4741 = vmatpush1.bf16.msra.mxu0 %v4297
        %4742 = vmatprep.subr.bf16.mxu0 0
        %4743 = vmatpush1.bf16.msra.mxu0 %v4298
        %4744 = vmatprep.subr.bf16.mxu0 0
        %4745 = vmatpush1.bf16.msra.mxu0 %v4299
        %4746 = vmatprep.subr.bf16.mxu0 0
        %4747 = vmatpush1.bf16.msra.mxu0 %v4300
        %4748 = vmatprep.subr.bf16.mxu0 0
        %4749 = vmatpush1.bf16.msra.mxu0 %v4301
        %4750 = vmatprep.subr.bf16.mxu0 0
        %4751 = vmatpush1.bf16.msra.mxu0 %v4302
        %4752 = vmatprep.subr.bf16.mxu0 0
        %4753 = vmatpush1.bf16.msra.mxu0 %v4303
        %4754 = vmatprep.mubr.bf16.mxu0 %v3706
        %4755 = vmatmul.mubr.bf16.gmra.mrb[0].mxu0 %v3516
        %v4756 = vpop.f32.mrb[0].mxu0
        %v4757 = vadd.f32 %v4596, %v4756
        %v4758 = vpop.f32.mrb[0].mxu0
        %v4759 = vpop.f32.mrb[0].mxu0
        %v4760 = vadd.f32 %v4599, %v4759
        %v4761 = vpop.f32.mrb[0].mxu0
        %4762 = vmatprep.mubr.bf16.mxu0 %v3709
        %4763 = vmatmul.mubr.bf16.gmra.mrb[0].mxu0 %v3528
        %v4764 = vpop.f32.mrb[0].mxu0
        %v4765 = vadd.f32 %v4604, %v4764
        %v4766 = vpop.f32.mrb[0].mxu0
        %v4767 = vpop.f32.mrb[0].mxu0
        %v4768 = vadd.f32 %v4607, %v4767
        %v4769 = vpop.f32.mrb[0].mxu0
        %4770 = vmatprep.mubr.bf16.mxu0 %v3712
        %4771 = vmatmul.mubr.bf16.gmra.mrb[0].mxu0 %v3540
        %v4772 = vpop.f32.mrb[0].mxu0
        %v4773 = vadd.f32 %v4612, %v4772
        %v4774 = vpop.f32.mrb[0].mxu0
        %v4775 = vpop.f32.mrb[0].mxu0
        %v4776 = vadd.f32 %v4615, %v4775
        %v4777 = vpop.f32.mrb[0].mxu0
        %4778 = vmatprep.mubr.bf16.mxu0 %v3715
        %4779 = vmatmul.mubr.bf16.gmra.mrb[0].mxu0 %v3552
        %v4780 = vpop.f32.mrb[0].mxu0
        %v4781 = vadd.f32 %v4620, %v4780
        %v4782 = vpop.f32.mrb[0].mxu0
        %v4783 = vpop.f32.mrb[0].mxu0
        %v4784 = vadd.f32 %v4623, %v4783
        %v4785 = vpop.f32.mrb[0].mxu0
        %4786 = vmatprep.mubr.bf16.mxu0 %v3718
        %4787 = vmatmul.mubr.bf16.gmra.mrb[0].mxu0 %v3564
        %v4788 = vpop.f32.mrb[0].mxu0
        %v4789 = vadd.f32 %v4628, %v4788
        %v4790 = vpop.f32.mrb[0].mxu0
        %v4791 = vpop.f32.mrb[0].mxu0
        %v4792 = vadd.f32 %v4631, %v4791
        %v4793 = vpop.f32.mrb[0].mxu0
        %4794 = vmatprep.mubr.bf16.mxu0 %v3721
        %4795 = vmatmul.mubr.bf16.gmra.mrb[0].mxu0 %v3576
        %v4796 = vpop.f32.mrb[0].mxu0
        %v4797 = vadd.f32 %v4636, %v4796
        %v4798 = vpop.f32.mrb[0].mxu0
        %v4799 = vpop.f32.mrb[0].mxu0
        %v4800 = vadd.f32 %v4639, %v4799
        %v4801 = vpop.f32.mrb[0].mxu0
        %4802 = vmatprep.mubr.bf16.mxu0 %v3724
        %4803 = vmatmul.mubr.bf16.gmra.mrb[0].mxu0 %v3588
        %v4804 = vpop.f32.mrb[0].mxu0
        %v4805 = vadd.f32 %v4644, %v4804
        %v4806 = vpop.f32.mrb[0].mxu0
        %v4807 = vpop.f32.mrb[0].mxu0
        %v4808 = vadd.f32 %v4647, %v4807
        %v4809 = vpop.f32.mrb[0].mxu0
        %4810 = vmatprep.mubr.bf16.mxu0 %v3727
        %4811 = vmatmul.mubr.bf16.gmra.mrb[0].mxu0 %v3600
        %v4812 = vpop.f32.mrb[0].mxu0
        %v4813 = vadd.f32 %v4652, %v4812
        %v4814 = vpop.f32.mrb[0].mxu0
        %v4815 = vpop.f32.mrb[0].mxu0
        %v4816 = vadd.f32 %v4655, %v4815
        %v4817 = vpop.f32.mrb[0].mxu0
        %4818 = vmatprep.mubr.bf16.mxu0 %v3730
        %4819 = vmatmul.mubr.bf16.gmra.mrb[0].mxu0 %v3612
        %v4820 = vpop.f32.mrb[0].mxu0
        %v4821 = vadd.f32 %v4660, %v4820
        %v4822 = vpop.f32.mrb[0].mxu0
        %v4823 = vpop.f32.mrb[0].mxu0
        %v4824 = vadd.f32 %v4663, %v4823
        %v4825 = vpop.f32.mrb[0].mxu0
        %4826 = vmatprep.mubr.bf16.mxu0 %v3733
        %4827 = vmatmul.mubr.bf16.gmra.mrb[0].mxu0 %v3624
        %v4828 = vpop.f32.mrb[0].mxu0
        %v4829 = vadd.f32 %v4668, %v4828
        %v4830 = vpop.f32.mrb[0].mxu0
        %v4831 = vpop.f32.mrb[0].mxu0
        %v4832 = vadd.f32 %v4671, %v4831
        %v4833 = vpop.f32.mrb[0].mxu0
        %4834 = vmatprep.mubr.bf16.mxu0 %v3736
        %4835 = vmatmul.mubr.bf16.gmra.mrb[0].mxu0 %v3636
        %v4836 = vpop.f32.mrb[0].mxu0
        %v4837 = vadd.f32 %v4676, %v4836
        %v4838 = vpop.f32.mrb[0].mxu0
        %v4839 = vpop.f32.mrb[0].mxu0
        %v4840 = vadd.f32 %v4679, %v4839
        %v4841 = vpop.f32.mrb[0].mxu0
        %4842 = vmatprep.mubr.bf16.mxu0 %v3739
        %4843 = vmatmul.mubr.bf16.gmra.mrb[0].mxu0 %v3648
        %v4844 = vpop.f32.mrb[0].mxu0
        %v4845 = vadd.f32 %v4684, %v4844
        %v4846 = vpop.f32.mrb[0].mxu0
        %v4847 = vpop.f32.mrb[0].mxu0
        %v4848 = vadd.f32 %v4687, %v4847
        %v4849 = vpop.f32.mrb[0].mxu0
        %4850 = vmatprep.mubr.bf16.mxu0 %v3742
        %4851 = vmatmul.mubr.bf16.gmra.mrb[0].mxu0 %v3660
        %v4852 = vpop.f32.mrb[0].mxu0
        %v4853 = vadd.f32 %v4692, %v4852
        %v4854 = vpop.f32.mrb[0].mxu0
        %v4855 = vpop.f32.mrb[0].mxu0
        %v4856 = vadd.f32 %v4695, %v4855
        %v4857 = vpop.f32.mrb[0].mxu0
        %4858 = vmatprep.mubr.bf16.mxu0 %v3745
        %4859 = vmatmul.mubr.bf16.gmra.mrb[0].mxu0 %v3672
        %v4860 = vpop.f32.mrb[0].mxu0
        %v4861 = vadd.f32 %v4700, %v4860
        %v4862 = vpop.f32.mrb[0].mxu0
        %v4863 = vpop.f32.mrb[0].mxu0
        %v4864 = vadd.f32 %v4703, %v4863
        %v4865 = vpop.f32.mrb[0].mxu0
        %4866 = vmatprep.mubr.bf16.mxu0 %v3748
        %4867 = vmatmul.mubr.bf16.gmra.mrb[0].mxu0 %v3684
        %v4868 = vpop.f32.mrb[0].mxu0
        %v4869 = vadd.f32 %v4708, %v4868
        %v4870 = vpop.f32.mrb[0].mxu0
        %v4871 = vpop.f32.mrb[0].mxu0
        %v4872 = vadd.f32 %v4711, %v4871
        %v4873 = vpop.f32.mrb[0].mxu0
        %4874 = vmatprep.mubr.bf16.mxu0 %v3789
        %4875 = vmatmul.mubr.bf16.gmra.mrb[0].mxu0 %v3785
        %v4876 = vpop.f32.mrb[0].mxu0
        %v4877 = vadd.f32 %v4716, %v4876
        %v4878 = vpop.f32.mrb[0].mxu0
        %v4879 = vpop.f32.mrb[0].mxu0
        %v4880 = vadd.f32 %v4719, %v4879
        %v4881 = vpop.f32.mrb[0].mxu0
        %4882 = vdwg.mxu0
        %4883 = vmatprep.subr.bf16.mxu0 0
        %4884 = vmatpush1.bf16.msra.mxu0 %v4304
        %4885 = vmatprep.subr.bf16.mxu0 0
        %4886 = vmatpush1.bf16.msra.mxu0 %v4305
        %4887 = vmatprep.subr.bf16.mxu0 0
        %4888 = vmatpush1.bf16.msra.mxu0 %v4306
        %4889 = vmatprep.subr.bf16.mxu0 0
        %4890 = vmatpush1.bf16.msra.mxu0 %v4307
        %4891 = vmatprep.subr.bf16.mxu0 0
        %4892 = vmatpush1.bf16.msra.mxu0 %v4308
        %4893 = vmatprep.subr.bf16.mxu0 0
        %4894 = vmatpush1.bf16.msra.mxu0 %v4309
        %4895 = vmatprep.subr.bf16.mxu0 0
        %4896 = vmatpush1.bf16.msra.mxu0 %v4310
        %4897 = vmatprep.subr.bf16.mxu0 0
        %4898 = vmatpush1.bf16.msra.mxu0 %v4311
        %4899 = vmatprep.subr.bf16.mxu0 0
        %4900 = vmatpush1.bf16.msra.mxu0 %v4312
        %4901 = vmatprep.subr.bf16.mxu0 0
        %4902 = vmatpush1.bf16.msra.mxu0 %v4313
        %4903 = vmatprep.subr.bf16.mxu0 0
        %4904 = vmatpush1.bf16.msra.mxu0 %v4314
        %4905 = vmatprep.subr.bf16.mxu0 0
        %4906 = vmatpush1.bf16.msra.mxu0 %v4315
        %4907 = vmatprep.subr.bf16.mxu0 0
        %4908 = vmatpush1.bf16.msra.mxu0 %v4316
        %4909 = vmatprep.subr.bf16.mxu0 0
        %4910 = vmatpush1.bf16.msra.mxu0 %v4317
        %4911 = vmatprep.subr.bf16.mxu0 0
        %4912 = vmatpush1.bf16.msra.mxu0 %v4318
        %4913 = vmatprep.subr.bf16.mxu0 0
        %4914 = vmatpush1.bf16.msra.mxu0 %v4319
        %4915 = vmatprep.mubr.bf16.mxu0 %v3528
        %4916 = vmatmul.mubr.bf16.gmra.mrb[0].mxu0 %v3415
        %v4917 = vpop.f32.mrb[0].mxu0
        %v4918 = vadd.f32 %v4757, %v4917
        %v4919 = vpop.f32.mrb[0].mxu0
        %v4920 = vpop.f32.mrb[0].mxu0
        %v4921 = vadd.f32 %v4760, %v4920
        %v4922 = vpop.f32.mrb[0].mxu0
        %4923 = vmatprep.mubr.bf16.mxu0 %v3540
        %4924 = vmatmul.mubr.bf16.gmra.mrb[0].mxu0 %v3416
        %v4925 = vpop.f32.mrb[0].mxu0
        %v4926 = vadd.f32 %v4765, %v4925
        %v4927 = vpop.f32.mrb[0].mxu0
        %v4928 = vpop.f32.mrb[0].mxu0
        %v4929 = vadd.f32 %v4768, %v4928
        %v4930 = vpop.f32.mrb[0].mxu0
        %4931 = vmatprep.mubr.bf16.mxu0 %v3552
        %4932 = vmatmul.mubr.bf16.gmra.mrb[0].mxu0 %v3417
        %v4933 = vpop.f32.mrb[0].mxu0
        %v4934 = vadd.f32 %v4773, %v4933
        %v4935 = vpop.f32.mrb[0].mxu0
        %v4936 = vpop.f32.mrb[0].mxu0
        %v4937 = vadd.f32 %v4776, %v4936
        %v4938 = vpop.f32.mrb[0].mxu0
        %4939 = vmatprep.mubr.bf16.mxu0 %v3564
        %4940 = vmatmul.mubr.bf16.gmra.mrb[0].mxu0 %v3418
        %v4941 = vpop.f32.mrb[0].mxu0
        %v4942 = vadd.f32 %v4781, %v4941
        %v4943 = vpop.f32.mrb[0].mxu0
        %v4944 = vpop.f32.mrb[0].mxu0
        %v4945 = vadd.f32 %v4784, %v4944
        %v4946 = vpop.f32.mrb[0].mxu0
        %4947 = vmatprep.mubr.bf16.mxu0 %v3576
        %4948 = vmatmul.mubr.bf16.gmra.mrb[0].mxu0 %v3419
        %v4949 = vpop.f32.mrb[0].mxu0
        %v4950 = vadd.f32 %v4789, %v4949
        %v4951 = vpop.f32.mrb[0].mxu0
        %v4952 = vpop.f32.mrb[0].mxu0
        %v4953 = vadd.f32 %v4792, %v4952
        %v4954 = vpop.f32.mrb[0].mxu0
        %4955 = vmatprep.mubr.bf16.mxu0 %v3588
        %4956 = vmatmul.mubr.bf16.gmra.mrb[0].mxu0 %v3420
        %v4957 = vpop.f32.mrb[0].mxu0
        %v4958 = vadd.f32 %v4797, %v4957
        %v4959 = vpop.f32.mrb[0].mxu0
        %v4960 = vpop.f32.mrb[0].mxu0
        %v4961 = vadd.f32 %v4800, %v4960
        %v4962 = vpop.f32.mrb[0].mxu0
        %4963 = vmatprep.mubr.bf16.mxu0 %v3600
        %4964 = vmatmul.mubr.bf16.gmra.mrb[0].mxu0 %v3421
        %v4965 = vpop.f32.mrb[0].mxu0
        %v4966 = vadd.f32 %v4805, %v4965
        %v4967 = vpop.f32.mrb[0].mxu0
        %v4968 = vpop.f32.mrb[0].mxu0
        %v4969 = vadd.f32 %v4808, %v4968
        %v4970 = vpop.f32.mrb[0].mxu0
        %4971 = vmatprep.mubr.bf16.mxu0 %v3612
        %4972 = vmatmul.mubr.bf16.gmra.mrb[0].mxu0 %v3422
        %v4973 = vpop.f32.mrb[0].mxu0
        %v4974 = vadd.f32 %v4813, %v4973
        %v4975 = vpop.f32.mrb[0].mxu0
        %v4976 = vpop.f32.mrb[0].mxu0
        %v4977 = vadd.f32 %v4816, %v4976
        %v4978 = vpop.f32.mrb[0].mxu0
        %4979 = vmatprep.mubr.bf16.mxu0 %v3624
        %4980 = vmatmul.mubr.bf16.gmra.mrb[0].mxu0 %v3423
        %v4981 = vpop.f32.mrb[0].mxu0
        %v4982 = vadd.f32 %v4821, %v4981
        %v4983 = vpop.f32.mrb[0].mxu0
        %v4984 = vpop.f32.mrb[0].mxu0
        %v4985 = vadd.f32 %v4824, %v4984
        %v4986 = vpop.f32.mrb[0].mxu0
        %4987 = vmatprep.mubr.bf16.mxu0 %v3636
        %4988 = vmatmul.mubr.bf16.gmra.mrb[0].mxu0 %v3424
        %v4989 = vpop.f32.mrb[0].mxu0
        %v4990 = vadd.f32 %v4829, %v4989
        %v4991 = vpop.f32.mrb[0].mxu0
        %v4992 = vpop.f32.mrb[0].mxu0
        %v4993 = vadd.f32 %v4832, %v4992
        %v4994 = vpop.f32.mrb[0].mxu0
        %4995 = vmatprep.mubr.bf16.mxu0 %v3648
        %4996 = vmatmul.mubr.bf16.gmra.mrb[0].mxu0 %v3425
        %v4997 = vpop.f32.mrb[0].mxu0
        %v4998 = vadd.f32 %v4837, %v4997
        %v4999 = vpop.f32.mrb[0].mxu0
        %v5000 = vpop.f32.mrb[0].mxu0
        %v5001 = vadd.f32 %v4840, %v5000
        %v5002 = vpop.f32.mrb[0].mxu0
        %5003 = vmatprep.mubr.bf16.mxu0 %v3660
        %5004 = vmatmul.mubr.bf16.gmra.mrb[0].mxu0 %v3426
        %v5005 = vpop.f32.mrb[0].mxu0
        %v5006 = vadd.f32 %v4845, %v5005
        %v5007 = vpop.f32.mrb[0].mxu0
        %v5008 = vpop.f32.mrb[0].mxu0
        %v5009 = vadd.f32 %v4848, %v5008
        %v5010 = vpop.f32.mrb[0].mxu0
        %5011 = vmatprep.mubr.bf16.mxu0 %v3672
        %5012 = vmatmul.mubr.bf16.gmra.mrb[0].mxu0 %v3427
        %v5013 = vpop.f32.mrb[0].mxu0
        %v5014 = vadd.f32 %v4853, %v5013
        %v5015 = vpop.f32.mrb[0].mxu0
        %v5016 = vpop.f32.mrb[0].mxu0
        %v5017 = vadd.f32 %v4856, %v5016
        %v5018 = vpop.f32.mrb[0].mxu0
        %5019 = vmatprep.mubr.bf16.mxu0 %v3684
        %5020 = vmatmul.mubr.bf16.gmra.mrb[0].mxu0 %v3428
        %v5021 = vpop.f32.mrb[0].mxu0
        %v5022 = vadd.f32 %v4861, %v5021
        %v5023 = vpop.f32.mrb[0].mxu0
        %v5024 = vpop.f32.mrb[0].mxu0
        %v5025 = vadd.f32 %v4864, %v5024
        %v5026 = vpop.f32.mrb[0].mxu0
        %5027 = vmatprep.mubr.bf16.mxu0 %v3785
        %5028 = vmatmul.mubr.bf16.gmra.mrb[0].mxu0 %v3769
        %v5029 = vpop.f32.mrb[0].mxu0
        %v5030 = vadd.f32 %v4869, %v5029
        %v5031 = vpop.f32.mrb[0].mxu0
        %v5032 = vpop.f32.mrb[0].mxu0
        %v5033 = vadd.f32 %v4872, %v5032
        %v5034 = vpop.f32.mrb[0].mxu0
        %5035 = vmatprep.mubr.bf16.mxu0 %v3811
        %5036 = vmatmul.mubr.bf16.gmra.mrb[0].mxu0 %v3795
        %v5037 = vpop.f32.mrb[0].mxu0
        %v5038 = vadd.f32 %v4877, %v5037
        %v5039 = vpop.f32.mrb[0].mxu0
        %v5040 = vpop.f32.mrb[0].mxu0
        %v5041 = vadd.f32 %v4880, %v5040
        %v5042 = vpop.f32.mrb[0].mxu0
        %5043 = vdwg.mxu0
        %5044 = vmatprep.subr.bf16.mxu0 0
        %5045 = vmatpush1.bf16.msra.mxu0 %v4320
        %5046 = vmatprep.subr.bf16.mxu0 0
        %5047 = vmatpush1.bf16.msra.mxu0 %v4321
        %5048 = vmatprep.subr.bf16.mxu0 0
        %5049 = vmatpush1.bf16.msra.mxu0 %v4322
        %5050 = vmatprep.subr.bf16.mxu0 0
        %5051 = vmatpush1.bf16.msra.mxu0 %v4323
        %5052 = vmatprep.subr.bf16.mxu0 0
        %5053 = vmatpush1.bf16.msra.mxu0 %v4324
        %5054 = vmatprep.subr.bf16.mxu0 0
        %5055 = vmatpush1.bf16.msra.mxu0 %v4325
        %5056 = vmatprep.subr.bf16.mxu0 0
        %5057 = vmatpush1.bf16.msra.mxu0 %v4326
        %5058 = vmatprep.subr.bf16.mxu0 0
        %5059 = vmatpush1.bf16.msra.mxu0 %v4327
        %5060 = vmatprep.subr.bf16.mxu0 0
        %5061 = vmatpush1.bf16.msra.mxu0 0
        %5062 = vmatprep.subr.bf16.mxu0 0
        %5063 = vmatpush1.bf16.msra.mxu0 0
        %5064 = vmatprep.subr.bf16.mxu0 0
        %5065 = vmatpush1.bf16.msra.mxu0 0
        %5066 = vmatprep.subr.bf16.mxu0 0
        %5067 = vmatpush1.bf16.msra.mxu0 0
        %5068 = vmatprep.subr.bf16.mxu0 0
        %5069 = vmatpush1.bf16.msra.mxu0 0
        %5070 = vmatprep.subr.bf16.mxu0 0
        %5071 = vmatpush1.bf16.msra.mxu0 0
        %5072 = vmatprep.subr.bf16.mxu0 0
        %5073 = vmatpush1.bf16.msra.mxu0 0
        %5074 = vmatprep.subr.bf16.mxu0 0
        %5075 = vmatpush1.bf16.msra.mxu0 0
        %5076 = vmatprep.mubr.bf16.mxu0 0
        %5077 = vmatmul.mubr.bf16.gmra.mrb[0].mxu0 %v3709
        %v5078 = vpop.f32.mrb[0].mxu0
        %v5079 = vadd.f32 %v4918, %v5078
        %v5080 = vpop.f32.mrb[0].mxu0
        %v5081 = vpop.f32.mrb[0].mxu0
        %v5082 = vadd.f32 %v4921, %v5081
        %v5083 = vpop.f32.mrb[0].mxu0
        %5084 = vmatprep.mubr.bf16.mxu0 0
        %5085 = vmatmul.mubr.bf16.gmra.mrb[0].mxu0 %v3712
        %v5086 = vpop.f32.mrb[0].mxu0
        %v5087 = vadd.f32 %v4926, %v5086
        %v5088 = vpop.f32.mrb[0].mxu0
        %v5089 = vpop.f32.mrb[0].mxu0
        %v5090 = vadd.f32 %v4929, %v5089
        %v5091 = vpop.f32.mrb[0].mxu0
        %5092 = vmatprep.mubr.bf16.mxu0 0
        %5093 = vmatmul.mubr.bf16.gmra.mrb[0].mxu0 %v3715
        %v5094 = vpop.f32.mrb[0].mxu0
        %v5095 = vadd.f32 %v4934, %v5094
        %v5096 = vpop.f32.mrb[0].mxu0
        %v5097 = vpop.f32.mrb[0].mxu0
        %v5098 = vadd.f32 %v4937, %v5097
        %v5099 = vpop.f32.mrb[0].mxu0
        %5100 = vmatprep.mubr.bf16.mxu0 0
        %5101 = vmatmul.mubr.bf16.gmra.mrb[0].mxu0 %v3718
        %v5102 = vpop.f32.mrb[0].mxu0
        %v5103 = vadd.f32 %v4942, %v5102
        %v5104 = vpop.f32.mrb[0].mxu0
        %v5105 = vpop.f32.mrb[0].mxu0
        %v5106 = vadd.f32 %v4945, %v5105
        %v5107 = vpop.f32.mrb[0].mxu0
        %5108 = vmatprep.mubr.bf16.mxu0 0
        %5109 = vmatmul.mubr.bf16.gmra.mrb[0].mxu0 %v3721
        %v5110 = vpop.f32.mrb[0].mxu0
        %v5111 = vadd.f32 %v4950, %v5110
        %v5112 = vpop.f32.mrb[0].mxu0
        %v5113 = vpop.f32.mrb[0].mxu0
        %v5114 = vadd.f32 %v4953, %v5113
        %v5115 = vpop.f32.mrb[0].mxu0
        %5116 = vmatprep.mubr.bf16.mxu0 0
        %5117 = vmatmul.mubr.bf16.gmra.mrb[0].mxu0 %v3724
        %v5118 = vpop.f32.mrb[0].mxu0
        %v5119 = vadd.f32 %v4958, %v5118
        %v5120 = vpop.f32.mrb[0].mxu0
        %v5121 = vpop.f32.mrb[0].mxu0
        %v5122 = vadd.f32 %v4961, %v5121
        %v5123 = vpop.f32.mrb[0].mxu0
        %5124 = vmatprep.mubr.bf16.mxu0 0
        %5125 = vmatmul.mubr.bf16.gmra.mrb[0].mxu0 %v3727
        %v5126 = vpop.f32.mrb[0].mxu0
        %v5127 = vadd.f32 %v4966, %v5126
        %v5128 = vpop.f32.mrb[0].mxu0
        %v5129 = vpop.f32.mrb[0].mxu0
        %v5130 = vadd.f32 %v4969, %v5129
        %v5131 = vpop.f32.mrb[0].mxu0
        %5132 = vmatprep.mubr.bf16.mxu0 0
        %5133 = vmatmul.mubr.bf16.gmra.mrb[0].mxu0 %v3730
        %v5134 = vpop.f32.mrb[0].mxu0
        %v5135 = vadd.f32 %v4974, %v5134
        %v5136 = vpop.f32.mrb[0].mxu0
        %v5137 = vpop.f32.mrb[0].mxu0
        %v5138 = vadd.f32 %v4977, %v5137
        %v5139 = vpop.f32.mrb[0].mxu0
        %5140 = vmatprep.mubr.bf16.mxu0 0
        %5141 = vmatmul.mubr.bf16.gmra.mrb[0].mxu0 %v3733
        %v5142 = vpop.f32.mrb[0].mxu0
        %v5143 = vadd.f32 %v4982, %v5142
        %v5144 = vpop.f32.mrb[0].mxu0
        %v5145 = vpop.f32.mrb[0].mxu0
        %v5146 = vadd.f32 %v4985, %v5145
        %v5147 = vpop.f32.mrb[0].mxu0
        %5148 = vmatprep.mubr.bf16.mxu0 0
        %5149 = vmatmul.mubr.bf16.gmra.mrb[0].mxu0 %v3736
        %v5150 = vpop.f32.mrb[0].mxu0
        %v5151 = vadd.f32 %v4990, %v5150
        %v5152 = vpop.f32.mrb[0].mxu0
        %v5153 = vpop.f32.mrb[0].mxu0
        %v5154 = vadd.f32 %v4993, %v5153
        %v5155 = vpop.f32.mrb[0].mxu0
        %5156 = vmatprep.mubr.bf16.mxu0 0
        %5157 = vmatmul.mubr.bf16.gmra.mrb[0].mxu0 %v3739
        %v5158 = vpop.f32.mrb[0].mxu0
        %v5159 = vadd.f32 %v4998, %v5158
        %v5160 = vpop.f32.mrb[0].mxu0
        %v5161 = vpop.f32.mrb[0].mxu0
        %v5162 = vadd.f32 %v5001, %v5161
        %v5163 = vpop.f32.mrb[0].mxu0
        %5164 = vmatprep.mubr.bf16.mxu0 0
        %5165 = vmatmul.mubr.bf16.gmra.mrb[0].mxu0 %v3742
        %v5166 = vpop.f32.mrb[0].mxu0
        %v5167 = vadd.f32 %v5006, %v5166
        %v5168 = vpop.f32.mrb[0].mxu0
        %v5169 = vpop.f32.mrb[0].mxu0
        %v5170 = vadd.f32 %v5009, %v5169
        %v5171 = vpop.f32.mrb[0].mxu0
        %5172 = vmatprep.mubr.bf16.mxu0 0
        %5173 = vmatmul.mubr.bf16.gmra.mrb[0].mxu0 %v3745
        %v5174 = vpop.f32.mrb[0].mxu0
        %v5175 = vadd.f32 %v5014, %v5174
        %v5176 = vpop.f32.mrb[0].mxu0
        %v5177 = vpop.f32.mrb[0].mxu0
        %v5178 = vadd.f32 %v5017, %v5177
        %v5179 = vpop.f32.mrb[0].mxu0
        %5180 = vmatprep.mubr.bf16.mxu0 0
        %5181 = vmatmul.mubr.bf16.gmra.mrb[0].mxu0 %v3748
        %v5182 = vpop.f32.mrb[0].mxu0
        %v5183 = vadd.f32 %v5022, %v5182
        %v5184 = vpop.f32.mrb[0].mxu0
        %v5185 = vpop.f32.mrb[0].mxu0
        %v5186 = vadd.f32 %v5025, %v5185
        %v5187 = vpop.f32.mrb[0].mxu0
        %5188 = vmatprep.mubr.bf16.mxu0 0
        %5189 = vmatmul.mubr.bf16.gmra.mrb[0].mxu0 %v3789
        %v5190 = vpop.f32.mrb[0].mxu0
        %v5191 = vadd.f32 %v5030, %v5190
        %v5192 = vpop.f32.mrb[0].mxu0
        %v5193 = vpop.f32.mrb[0].mxu0
        %v5194 = vadd.f32 %v5033, %v5193
        %v5195 = vpop.f32.mrb[0].mxu0
        %5196 = vmatprep.mubr.bf16.mxu0 0
        %5197 = vmatmul.mubr.bf16.gmra.mrb[0].mxu0 %v3815
        %v5198 = vpop.f32.mrb[0].mxu0
        %v5199 = vadd.f32 %v5038, %v5198
        %v5200 = vpop.f32.mrb[0].mxu0
        %v5201 = vpop.f32.mrb[0].mxu0
        %v5202 = vadd.f32 %v5041, %v5201
        %v5203 = vpop.f32.mrb[0].mxu0
        %5204 = vdwg.mxu0
        %v5205 = vmax.f32 %v5079, 0.0
        %v5206 = vmax.f32 %v5082, 0.0
        %v5207 = vmax.f32 %v5087, 0.0
        %v5208 = vmax.f32 %v5090, 0.0
        %v5209 = vmax.f32 %v5095, 0.0
        %v5210 = vmax.f32 %v5098, 0.0
        %v5211 = vmax.f32 %v5103, 0.0
        %v5212 = vmax.f32 %v5106, 0.0
        %v5213 = vmax.f32 %v5111, 0.0
        %v5214 = vmax.f32 %v5114, 0.0
        %v5215 = vmax.f32 %v5119, 0.0
        %v5216 = vmax.f32 %v5122, 0.0
        %v5217 = vmax.f32 %v5127, 0.0
        %v5218 = vmax.f32 %v5130, 0.0
        %v5219 = vmax.f32 %v5135, 0.0
        %v5220 = vmax.f32 %v5138, 0.0
        %v5221 = vmax.f32 %v5143, 0.0
        %v5222 = vmax.f32 %v5146, 0.0
        %v5223 = vmax.f32 %v5151, 0.0
        %v5224 = vmax.f32 %v5154, 0.0
        %v5225 = vmax.f32 %v5159, 0.0
        %v5226 = vmax.f32 %v5162, 0.0
        %v5227 = vmax.f32 %v5167, 0.0
        %v5228 = vmax.f32 %v5170, 0.0
        %v5229 = vmax.f32 %v5175, 0.0
        %v5230 = vmax.f32 %v5178, 0.0
        %v5231 = vmax.f32 %v5183, 0.0
        %v5232 = vmax.f32 %v5186, 0.0
        %v5233 = vmax.f32 %v5191, 0.0
        %v5234 = vmax.f32 %v5194, 0.0
        %v5235 = vmax.f32 %v5199, 0.0
        %v5236 = vmax.f32 %v5202, 0.0
        %5237 = vst [vmem:[%s239] sm:$0xff] %v5205
        %5238 = vst [vmem:[%s239 + $0x8] sm:$0xff] %v5206
        %5239 = vst [vmem:[%s239 + $0x10] sm:$0xff] %v5207
        %5240 = vst [vmem:[%s239 + $0x18] sm:$0xff] %v5208
        %5241 = vst [vmem:[%s239 + $0x20] sm:$0xff] %v5209
        %5242 = vst [vmem:[%s239 + $0x28] sm:$0xff] %v5210
        %5243 = vst [vmem:[%s239 + $0x30] sm:$0xff] %v5211
        %5244 = vst [vmem:[%s239 + $0x38] sm:$0xff] %v5212
        %5245 = vst [vmem:[%s239 + $0x40] sm:$0xff] %v5213
        %5246 = vst [vmem:[%s239 + $0x48] sm:$0xff] %v5214
        %5247 = vst [vmem:[%s239 + $0x50] sm:$0xff] %v5215
        %5248 = vst [vmem:[%s239 + $0x58] sm:$0xff] %v5216
        %5249 = vst [vmem:[%s239 + $0x60] sm:$0xff] %v5217
        %5250 = vst [vmem:[%s239 + $0x68] sm:$0xff] %v5218
        %5251 = vst [vmem:[%s239 + $0x70] sm:$0xff] %v5219
        %5252 = vst [vmem:[%s239 + $0x78] sm:$0xff] %v5220
        %5253 = vst [vmem:[%s239 + $0x80] sm:$0xff] %v5221
        %5254 = vst [vmem:[%s239 + $0x88] sm:$0xff] %v5222
        %5255 = vst [vmem:[%s239 + $0x90] sm:$0xff] %v5223
        %5256 = vst [vmem:[%s239 + $0x98] sm:$0xff] %v5224
        %5257 = vst [vmem:[%s239 + $0xa0] sm:$0xff] %v5225
        %5258 = vst [vmem:[%s239 + $0xa8] sm:$0xff] %v5226
        %5259 = vst [vmem:[%s239 + $0xb0] sm:$0xff] %v5227
        %5260 = vst [vmem:[%s239 + $0xb8] sm:$0xff] %v5228
        %5261 = vst [vmem:[%s239 + $0xc0] sm:$0xff] %v5229
        %5262 = vst [vmem:[%s239 + $0xc8] sm:$0xff] %v5230
        %5263 = vst [vmem:[%s239 + $0xd0] sm:$0xff] %v5231
        %5264 = vst [vmem:[%s239 + $0xd8] sm:$0xff] %v5232
        %5265 = vst [vmem:[%s239 + $0xe0] sm:$0xff] %v5233
        %5266 = vst [vmem:[%s239 + $0xe8] sm:$0xff] %v5234
        %5267 = vst [vmem:[%s239 + $0xf0] sm:$0xff] %v5235
        %5268 = vst [vmem:[%s239 + $0xf8] sm:$0xff] %v5236
        %p5269 = scmp.lt.s32.totalorder %s17, 1
        %s5270 = scalar_select %p5269, %s17, 1
        %s5271 = smul.addr %s5270, 32
        %s5272 = smul.addr %s5271, 8
        %s5273 = scalar_lea.vmem %s5, %s5272
        // Predicated region
        $region45: #{basic_block_forward.1} parent=39 // pred_check
          %p5274 = pneg %p145
        $region46: #{basic_block_forward.1} parent=39 // pred_check_branch
          %5276 = sbr.rel (%p5274) target = $region48
        $region47: #{basic_block_forward.1} parent=39 // pred_region
          _
        $region48: #{basic_block_forward.1} parent=39 // pred_fallthru
          _
      $region40: #{basic_block_forward.1} parent=5 // pred_fallthru
        _
      %p5277 = scmp.le.s32.totalorder 2, %s12
      // Predicated region
      $region49: #{basic_block_forward.1} parent=5 // pred_check
        %p5278 = pneg %p5277
      $region50: #{basic_block_forward.1} parent=5 // pred_check_branch
        %5280 = sbr.rel (%p5278) target = $region52
      $region51: #{basic_block_forward.1} parent=5 // pred_region
        %s5281 = ssub.s32 %s12, 2
        // Predicated region
        $region53: #{basic_block_forward.1} parent=51 // pred_check
          %p5282 = pneg %p151
        $region54: #{basic_block_forward.1} parent=51 // pred_check_branch
          %5284 = sbr.rel (%p5282) target = $region56
        $region55: #{basic_block_forward.1} parent=51 // pred_region
          %p5285 = scmp.lt.s32.totalorder %s18, 1
          %s5286 = scalar_select %p5285, %s18, 1
          %s5287 = smul.addr %s5286, 32
          %s5288 = smul.addr %s5287, 8
          %s5289 = scalar_lea.vmem %s5, %s5288
        $region56: #{basic_block_forward.1} parent=51 // pred_fallthru
          _
      $region52: #{basic_block_forward.1} parent=5 // pred_fallthru
        _
    $region6: #{basic_block_forward.1} parent=1 // loop_footer
      %s16 = sadd.s32 1, %s12
    $region7: #{basic_block_forward.1} parent=1 // loop_footer_branch
      %11 = sbr.rel target = $region3
    $region8: #{basic_block_forward.1} parent=1 // loop_exit
      _
    %5290 = vsyncpa [#allocation5], 1
    %s5291 = scalar_lea.sflag [#allocation5], 1
    %5292 = vsyncpa %s5291, 1

</llo_original>
